<compile_context>
chip_gen: v6e
topology: v6e:2x2x1
jax: 0.10.0
libtpu: 0.0.40
codegen_flags: <defaults>
</compile_context>

<pallas_src>
import functools

import jax
import jax.numpy as jnp
from jax import lax
from jax.experimental import pallas as pl
from jax.experimental.pallas import tpu as pltpu

# Safe on every generation (v7x scoped default is 32 MiB of its 64 MiB VMEM).
_VMEM_LIMIT = 32 * 1024 * 1024


def _round_up(x, m):
    return ((x + m - 1) // m) * m


# --------------------------- tile-size selection -----------------------------
def _pick_dim_tile(dim, target, align):
    """Block size for one matmul dim -> (tile, padded_dim).

    Blocks must be multiples of `align` (8 sublanes / 128 lanes) or span the
    full dim.  Prefer the full dim when small (no pad), then an aligned tile
    that divides the dim (no pad), else pad the dim up to an aligned tile.
    """
    if dim <= target:
        return dim, dim
    t = (target // align) * align
    while t >= align:
        if dim % t == 0:
            return t, dim
        t -= align
    t = (target // align) * align
    return t, _round_up(dim, t)


def _matmul_tiles(M, N, K, tm, tn, tk):
    tm, Mp = _pick_dim_tile(M, tm, 8)
    tn, Np = _pick_dim_tile(N, tn, 128)
    tk, Kp = _pick_dim_tile(K, tk, 128)
    # v7x megacore: give the "parallel" row axis >=2 blocks when the split is free.
    if Mp // tm < 2 and tm >= 16 and tm % 16 == 0:
        tm //= 2
    return (tm, tn, tk), (Mp, Np, Kp)


# ----------------------------- generic matmul --------------------------------
def _matmul_kernel(a_ref, b_ref, o_ref, acc_ref):
    @pl.when(pl.program_id(2) == 0)
    def _():
        acc_ref[...] = jnp.zeros_like(acc_ref)

    acc_ref[...] += jnp.dot(a_ref[...].astype(jnp.bfloat16),
                            b_ref[...].astype(jnp.bfloat16),
                            preferred_element_type=jnp.float32)

    @pl.when(pl.program_id(2) == pl.num_programs(2) - 1)
    def _():
        o_ref[...] = acc_ref[...].astype(o_ref.dtype)


def pallas_matmul(a, b, *, out_dtype=None, tm=256, tn=256, tk=512):
    """a @ b on the MXU (bf16 operands, f32 accumulation)."""
    M, K = a.shape
    K2, N = b.shape
    assert K == K2
    out_dtype = a.dtype if out_dtype is None else out_dtype
    (tm, tn, tk), (Mp, Np, Kp) = _matmul_tiles(M, N, K, tm, tn, tk)

    if (Mp, Kp) != (M, K):
        a = jnp.pad(a, ((0, Mp - M), (0, Kp - K)))
    if (Kp, Np) != (K, N):
        b = jnp.pad(b, ((0, Kp - K), (0, Np - N)))

    out = pl.pallas_call(
        _matmul_kernel,
        out_shape=jax.ShapeDtypeStruct((Mp, Np), out_dtype),
        grid_spec=pltpu.PrefetchScalarGridSpec(
            num_scalar_prefetch=0,
            grid=(Mp // tm, Np // tn, Kp // tk),
            in_specs=[
                pl.BlockSpec((tm, tk), lambda i, j, kk: (i, kk)),
                pl.BlockSpec((tk, tn), lambda i, j, kk: (kk, j)),
            ],
            out_specs=pl.BlockSpec((tm, tn), lambda i, j, kk: (i, j)),
            scratch_shapes=[pltpu.VMEM((tm, tn), jnp.float32)],
        ),
        compiler_params=pltpu.CompilerParams(
            dimension_semantics=("parallel", "parallel", "arbitrary"),
            vmem_limit_bytes=_VMEM_LIMIT,
        ),
    )(a, b)

    if (Mp, Np) != (M, N):
        out = out[:M, :N]
    return out


# --------------------- fused qkv projection (3 outputs) ----------------------
def _qkv_matmul_kernel(x_ref, wq_ref, wk_ref, wv_ref, q_ref, k_ref, v_ref,
                       acc_q, acc_k, acc_v):
    kk = pl.program_id(2)

    @pl.when(kk == 0)
    def _():
        acc_q[...] = jnp.zeros_like(acc_q)
        acc_k[...] = jnp.zeros_like(acc_k)
        acc_v[...] = jnp.zeros_like(acc_v)

    x = x_ref[...].astype(jnp.bfloat16)
    acc_q[...] += jnp.dot(x, wq_ref[...].astype(jnp.bfloat16),
                          preferred_element_type=jnp.float32)
    acc_k[...] += jnp.dot(x, wk_ref[...].astype(jnp.bfloat16),
                          preferred_element_type=jnp.float32)
    acc_v[...] += jnp.dot(x, wv_ref[...].astype(jnp.bfloat16),
                          preferred_element_type=jnp.float32)

    @pl.when(kk == pl.num_programs(2) - 1)
    def _():
        q_ref[...] = acc_q[...].astype(q_ref.dtype)
        k_ref[...] = acc_k[...].astype(k_ref.dtype)
        v_ref[...] = acc_v[...].astype(v_ref.dtype)


def pallas_qkv_proj(x, wq, wk, wv, *, out_dtype=jnp.bfloat16,
                    tm=256, tn=256, tk=512):
    """Single pass over x -> q, k, v, each (M, attention_dim)."""
    M, K = x.shape
    Kw, AD = wq.shape
    assert K == Kw and wk.shape == wq.shape and wv.shape == wq.shape
    (tm, tn, tk), (Mp, Np, Kp) = _matmul_tiles(M, AD, K, tm, tn, tk)

    if (Mp, Kp) != (M, K):
        x = jnp.pad(x, ((0, Mp - M), (0, Kp - K)))
    if (Kp, Np) != (K, AD):
        wpad = ((0, Kp - K), (0, Np - AD))
        wq = jnp.pad(wq, wpad)
        wk = jnp.pad(wk, wpad)
        wv = jnp.pad(wv, wpad)

    spec_x = pl.BlockSpec((tm, tk), lambda i, j, kk: (i, kk))
    spec_w = pl.BlockSpec((tk, tn), lambda i, j, kk: (kk, j))
    spec_o = pl.BlockSpec((tm, tn), lambda i, j, kk: (i, j))

    q, k, v = pl.pallas_call(
        _qkv_matmul_kernel,
        out_shape=[jax.ShapeDtypeStruct((Mp, Np), out_dtype) for _ in range(3)],
        grid_spec=pltpu.PrefetchScalarGridSpec(
            num_scalar_prefetch=0,
            grid=(Mp // tm, Np // tn, Kp // tk),
            in_specs=[spec_x, spec_w, spec_w, spec_w],
            out_specs=[spec_o, spec_o, spec_o],
            scratch_shapes=[pltpu.VMEM((tm, tn), jnp.float32) for _ in range(3)],
        ),
        compiler_params=pltpu.CompilerParams(
            dimension_semantics=("parallel", "parallel", "arbitrary"),
            vmem_limit_bytes=_VMEM_LIMIT,
        ),
    )(x, wq, wk, wv)

    if (Mp, Np) != (M, AD):
        q, k, v = q[:M, :AD], k[:M, :AD], v[:M, :AD]
    return q, k, v


# -------------------- multi-head flash attention kernel ----------------------
def _mha_flash_kernel(q_ref, k_ref, v_ref, o_ref, m_sc, l_sc, acc_sc,
                      *, num_heads, head_dim, seq_len, mask_kv):
    ki = pl.program_id(2)
    tkv = k_ref.shape[1]

    @pl.when(ki == 0)
    def _():
        m_sc[...] = jnp.full(m_sc.shape, -jnp.inf, m_sc.dtype)
        l_sc[...] = jnp.zeros(l_sc.shape, l_sc.dtype)
        acc_sc[...] = jnp.zeros(acc_sc.shape, acc_sc.dtype)

    if mask_kv:
        key_idx = ki * tkv + lax.broadcasted_iota(jnp.int32, (1, tkv), 1)
        kv_valid = key_idx < seq_len                              # (1, tkv)

    # Per-head flash update.  q/k/v are bf16, scores & stats stay f32.
    # The softmax scale is already folded into W_q (hence into q).
    for h in range(num_heads):
        sl = slice(h * head_dim, (h + 1) * head_dim)
        qh = q_ref[0, :, sl]                                      # (tq, hd) bf16
        kh = k_ref[0, :, sl]                                      # (tkv, hd) bf16
        s = lax.dot_general(qh, kh, (((1,), (1,)), ((), ())),
                            preferred_element_type=jnp.float32)   # (tq, tkv) f32
        if mask_kv:
            s = jnp.where(kv_valid, s, -jnp.inf)

        m_prev = m_sc[:, h:h + 1]                                 # (tq, 1)
        m_new = jnp.maximum(m_prev, jnp.max(s, axis=-1, keepdims=True))
        alpha = jnp.exp(m_prev - m_new)
        p = jnp.exp(s - m_new)                                    # f32

        l_sc[:, h:h + 1] = alpha * l_sc[:, h:h + 1] + jnp.sum(p, axis=-1,
                                                              keepdims=True)
        pv = jnp.dot(p.astype(jnp.bfloat16), v_ref[0, :, sl],
                     preferred_element_type=jnp.float32)          # (tq, hd) f32
        acc_sc[:, sl] = alpha * acc_sc[:, sl] + pv
        m_sc[:, h:h + 1] = m_new

    @pl.when(ki == pl.num_programs(2) - 1)
    def _():
        for h in range(num_heads):
            sl = slice(h * head_dim, (h + 1) * head_dim)
            inv = pl.reciprocal(l_sc[:, h:h + 1], approx=True)    # EUP
            o_ref[0, :, sl] = (acc_sc[:, sl] * inv).astype(o_ref.dtype)


def _pick_seq_tile(n, target):
    """Sequence tile -> (tile, padded_n).  Padded keys are masked in-kernel."""
    if n <= target:
        t = n if n % 8 == 0 else _round_up(n, 8)
        return t, t
    t = (target // 8) * 8
    while t >= 8:
        if n % t == 0:
            return t, n
        t -= 8
    t = (target // 8) * 8
    return t, _round_up(n, t)


def pallas_attention(q, k, v, *, num_heads, head_dim, seq_tile=512):
    """Multi-head softmax(q k^T) v over (B, N, num_heads*head_dim) tensors."""
    B, N, AD = q.shape
    assert AD == num_heads * head_dim
    tile, Np = _pick_seq_tile(N, seq_tile)
    if Np != N:
        pad = ((0, 0), (0, Np - N), (0, 0))
        q = jnp.pad(q, pad)
        k = jnp.pad(k, pad)
        v = jnp.pad(v, pad)

    kernel = functools.partial(_mha_flash_kernel, num_heads=num_heads,
                               head_dim=head_dim, seq_len=N,
                               mask_kv=(Np != N))

    out = pl.pallas_call(
        kernel,
        out_shape=jax.ShapeDtypeStruct((B, Np, AD), q.dtype),
        grid_spec=pltpu.PrefetchScalarGridSpec(
            num_scalar_prefetch=0,
            grid=(B, Np // tile, Np // tile),
            in_specs=[
                pl.BlockSpec((1, tile, AD), lambda b, qi, ki: (b, qi, 0)),
                pl.BlockSpec((1, tile, AD), lambda b, qi, ki: (b, ki, 0)),
                pl.BlockSpec((1, tile, AD), lambda b, qi, ki: (b, ki, 0)),
            ],
            out_specs=pl.BlockSpec((1, tile, AD), lambda b, qi, ki: (b, qi, 0)),
            scratch_shapes=[
                pltpu.VMEM((tile, num_heads), jnp.float32),   # running max per head
                pltpu.VMEM((tile, num_heads), jnp.float32),   # running denom per head
                pltpu.VMEM((tile, AD), jnp.float32),          # output accumulator
            ],
        ),
        compiler_params=pltpu.CompilerParams(
            dimension_semantics=("parallel", "parallel", "arbitrary"),
            vmem_limit_bytes=_VMEM_LIMIT,
        ),
    )(q, k, v)

    if Np != N:
        out = out[:, :N, :]
    return out


# ------------------------------ full forward ---------------------------------
def attention_forward(x, w_qkv, w_proj, *, num_heads, head_dim):
    """PyTorch Attention.forward: x (B, H, W, C) -> (B, H, W, C).

    w_qkv:  (C, 3 * num_heads * head_dim)   (== PyTorch qkv.weight.T)
    w_proj: (num_heads * head_dim, C)       (== PyTorch proj.weight.T)
    """
    B, H, W, C = x.shape
    N = H * W
    AD = num_heads * head_dim
    scale = head_dim ** (-0.5)

    # Weight prep (tiny): split into per-slot lane-dense slabs, fold the softmax
    # scale into W_q, cast weights to bf16 for the MXU.
    wq = (w_qkv[:, :AD] * scale).astype(jnp.bfloat16)
    wk = w_qkv[:, AD:2 * AD].astype(jnp.bfloat16)
    wv = w_qkv[:, 2 * AD:].astype(jnp.bfloat16)
    wp = w_proj.astype(jnp.bfloat16)

    xf = x.reshape(B * N, C)
    q, k, v = pallas_qkv_proj(xf, wq, wk, wv)          # each (B*N, AD) bf16
    q = q.reshape(B, N, AD)
    k = k.reshape(B, N, AD)
    v = v.reshape(B, N, AD)

    o = pallas_attention(q, k, v, num_heads=num_heads, head_dim=head_dim)
    y = pallas_matmul(o.reshape(B * N, AD), wp, out_dtype=x.dtype)  # (B*N, C) f32
    # TODO(synk): attn_drop / proj_drop omitted — p=0.0 default / eval mode => identity.
    return y.reshape(B, H, W, C)


# -------------------------------- reference -----------------------------------
def reference_forward(x, w_qkv, w_proj, *, num_heads, head_dim):
    B, H, W, C = x.shape
    N = H * W
    AD = num_heads * head_dim
    scale = head_dim ** (-0.5)
    qkv = (x.reshape(B, N, C) @ w_qkv).reshape(B, N, 3, num_heads, head_dim)
    qkv = jnp.transpose(qkv, (2, 0, 3, 1, 4))
    q, k, v = qkv[0], qkv[1], qkv[2]
    attn = jax.nn.softmax((q @ jnp.swapaxes(k, -1, -2)) * scale, axis=-1)
    o = jnp.transpose(attn @ v, (0, 2, 1, 3)).reshape(B, N, AD)
    return (o @ w_proj).reshape(B, H, W, C)


def _check(y, y_ref, label):
    assert y.shape == y_ref.shape, (label, y.shape, y_ref.shape)
    err = float(jnp.max(jnp.abs(y - y_ref)))
    rel = float(jnp.linalg.norm((y - y_ref).astype(jnp.float32))
                / jnp.linalg.norm(y_ref.astype(jnp.float32)))
    # bf16 MXU operands end-to-end => a few-percent relative error vs f32 ref.
    assert err < 1e-1 and rel < 5e-2, (label, err, rel)


if __name__ == "__main__":
    key = jax.random.PRNGKey(0)
    keys = jax.random.split(key, 6)
    head_dim = 32

    # Case 1: B=2, 8x8 tokens (N=64), C=64 -> 2 heads; everything tile-aligned.
    B, H, W, C = 2, 8, 8, 64
    num_heads = max(C // head_dim, 1)
    AD = num_heads * head_dim
    x = jax.random.normal(keys[0], (B, H, W, C), jnp.float32)
    w_qkv = jax.random.normal(keys[1], (C, 3 * AD), jnp.float32) / jnp.sqrt(C)
    w_proj = jax.random.normal(keys[2], (AD, C), jnp.float32) / jnp.sqrt(AD)
    fwd = jax.jit(functools.partial(attention_forward,
                                    num_heads=num_heads, head_dim=head_dim))
    y = jax.block_until_ready(fwd(x, w_qkv, w_proj))
    y_ref = reference_forward(x, w_qkv, w_proj,
                              num_heads=num_heads, head_dim=head_dim)
    _check(y, y_ref, "case1")

    # Case 2: ragged sequence (N=25 -> padded to 32, keys masked), 3 heads.
    B, H, W, C = 1, 5, 5, 96
    num_heads = max(C // head_dim, 1)
    AD = num_heads * head_dim
    x = jax.random.normal(keys[3], (B, H, W, C), jnp.float32)
    w_qkv = jax.random.normal(keys[4], (C, 3 * AD), jnp.float32) / jnp.sqrt(C)
    w_proj = jax.random.normal(keys[5], (AD, C), jnp.float32) / jnp.sqrt(AD)
    fwd2 = jax.jit(functools.partial(attention_forward,
                                     num_heads=num_heads, head_dim=head_dim))
    y = jax.block_until_ready(fwd2(x, w_qkv, w_proj))
    y_ref = reference_forward(x, w_qkv, w_proj,
                              num_heads=num_heads, head_dim=head_dim)
    _check(y, y_ref, "case2")

    print("KERNEL_OK")
</pallas_src>

<mosaic_0001>
module attributes {stable_mosaic.version = 11 : i64} {
  func.func @_qkv_matmul_kernel(%arg0: i32, %arg1: i32, %arg2: i32, %arg3: memref<64x64xf32, #tpu.memory_space<vmem>>, %arg4: memref<64x64xbf16, #tpu.memory_space<vmem>>, %arg5: memref<64x64xbf16, #tpu.memory_space<vmem>>, %arg6: memref<64x64xbf16, #tpu.memory_space<vmem>>, %arg7: memref<64x64xbf16, #tpu.memory_space<vmem>>, %arg8: memref<64x64xbf16, #tpu.memory_space<vmem>>, %arg9: memref<64x64xbf16, #tpu.memory_space<vmem>>, %arg10: memref<64x64xf32, #tpu.memory_space<vmem>>, %arg11: memref<64x64xf32, #tpu.memory_space<vmem>>, %arg12: memref<64x64xf32, #tpu.memory_space<vmem>>) attributes {dimension_semantics = [#tpu.dimension_semantics<parallel>, #tpu.dimension_semantics<parallel>, #tpu.dimension_semantics<arbitrary>], iteration_bounds = array<i64: 2, 1, 1>, scalar_prefetch = 0 : i64, scratch_operands = 3 : i64, tpu.core_type = #tpu.core_type<tc>, window_params = [{transform_indices = @transform_0, window_bounds = array<i64: 64, 64>}, {transform_indices = @transform_1, window_bounds = array<i64: 64, 64>}, {transform_indices = @transform_2, window_bounds = array<i64: 64, 64>}, {transform_indices = @transform_3, window_bounds = array<i64: 64, 64>}, {transform_indices = @transform_4, window_bounds = array<i64: 64, 64>}, {transform_indices = @transform_5, window_bounds = array<i64: 64, 64>}, {transform_indices = @transform_6, window_bounds = array<i64: 64, 64>}]} {
    %c0_i32 = arith.constant 0 : i32
    %0 = arith.cmpi eq, %arg2, %c0_i32 : i32
    %1 = arith.extui %0 : i1 to i32
    %c0_i32_0 = arith.constant 0 : i32
    %2 = arith.cmpi ne, %1, %c0_i32_0 : i32
    scf.if %2 {
      %cst_24 = arith.constant 0.000000e+00 : f32
      %23 = vector.broadcast %cst_24 : f32 to vector<64x64xf32>
      %c0_25 = arith.constant 0 : index
      %c0_26 = arith.constant 0 : index
      %24 = vector.load %arg10[%c0_25, %c0_26] : memref<64x64xf32, #tpu.memory_space<vmem>>, vector<64x64xf32>
      tpu.vector_store %arg10[%c0_25, %c0_26], %23 {strides = array<i32>} : memref<64x64xf32, #tpu.memory_space<vmem>>, vector<64x64xf32>,
      %cst_27 = arith.constant 0.000000e+00 : f32
      %25 = vector.broadcast %cst_27 : f32 to vector<64x64xf32>
      %c0_28 = arith.constant 0 : index
      %c0_29 = arith.constant 0 : index
      %26 = vector.load %arg11[%c0_28, %c0_29] : memref<64x64xf32, #tpu.memory_space<vmem>>, vector<64x64xf32>
      tpu.vector_store %arg11[%c0_28, %c0_29], %25 {strides = array<i32>} : memref<64x64xf32, #tpu.memory_space<vmem>>, vector<64x64xf32>,
      %cst_30 = arith.constant 0.000000e+00 : f32
      %27 = vector.broadcast %cst_30 : f32 to vector<64x64xf32>
      %c0_31 = arith.constant 0 : index
      %c0_32 = arith.constant 0 : index
      %28 = vector.load %arg12[%c0_31, %c0_32] : memref<64x64xf32, #tpu.memory_space<vmem>>, vector<64x64xf32>
      tpu.vector_store %arg12[%c0_31, %c0_32], %27 {strides = array<i32>} : memref<64x64xf32, #tpu.memory_space<vmem>>, vector<64x64xf32>,
    } else {
    }
    %c0 = arith.constant 0 : index
    %c0_1 = arith.constant 0 : index
    %3 = vector.load %arg3[%c0, %c0_1] : memref<64x64xf32, #tpu.memory_space<vmem>>, vector<64x64xf32>
    %4 = arith.truncf %3 : vector<64x64xf32> to vector<64x64xbf16>
    %c0_2 = arith.constant 0 : index
    %c0_3 = arith.constant 0 : index
    %5 = vector.load %arg10[%c0_2, %c0_3] : memref<64x64xf32, #tpu.memory_space<vmem>>, vector<64x64xf32>
    %c0_4 = arith.constant 0 : index
    %c0_5 = arith.constant 0 : index
    %6 = vector.load %arg4[%c0_4, %c0_5] : memref<64x64xbf16, #tpu.memory_space<vmem>>, vector<64x64xbf16>
    %cst = arith.constant dense<0.000000e+00> : vector<64x64xf32>
    %7 = tpu.matmul %4, %6, %cst {dimension_numbers = #tpu.dot_dimension_numbers<[1], [0], [0], [1], [0, 0, 1, 1], [], []>} : vector<64x64xbf16>, vector<64x64xbf16>, vector<64x64xf32> -> vector<64x64xf32>
    %8 = arith.addf %5, %7 : vector<64x64xf32>
    %c0_6 = arith.constant 0 : index
    %c0_7 = arith.constant 0 : index
    %9 = vector.load %arg10[%c0_6, %c0_7] : memref<64x64xf32, #tpu.memory_space<vmem>>, vector<64x64xf32>
    tpu.vector_store %arg10[%c0_6, %c0_7], %8 {strides = array<i32>} : memref<64x64xf32, #tpu.memory_space<vmem>>, vector<64x64xf32>,
    %c0_8 = arith.constant 0 : index
    %c0_9 = arith.constant 0 : index
    %10 = vector.load %arg11[%c0_8, %c0_9] : memref<64x64xf32, #tpu.memory_space<vmem>>, vector<64x64xf32>
    %c0_10 = arith.constant 0 : index
    %c0_11 = arith.constant 0 : index
    %11 = vector.load %arg5[%c0_10, %c0_11] : memref<64x64xbf16, #tpu.memory_space<vmem>>, vector<64x64xbf16>
    %cst_12 = arith.constant dense<0.000000e+00> : vector<64x64xf32>
    %12 = tpu.matmul %4, %11, %cst_12 {dimension_numbers = #tpu.dot_dimension_numbers<[1], [0], [0], [1], [0, 0, 1, 1], [], []>} : vector<64x64xbf16>, vector<64x64xbf16>, vector<64x64xf32> -> vector<64x64xf32>
    %13 = arith.addf %10, %12 : vector<64x64xf32>
    %c0_13 = arith.constant 0 : index
    %c0_14 = arith.constant 0 : index
    %14 = vector.load %arg11[%c0_13, %c0_14] : memref<64x64xf32, #tpu.memory_space<vmem>>, vector<64x64xf32>
    tpu.vector_store %arg11[%c0_13, %c0_14], %13 {strides = array<i32>} : memref<64x64xf32, #tpu.memory_space<vmem>>, vector<64x64xf32>,
    %c0_15 = arith.constant 0 : index
    %c0_16 = arith.constant 0 : index
    %15 = vector.load %arg12[%c0_15, %c0_16] : memref<64x64xf32, #tpu.memory_space<vmem>>, vector<64x64xf32>
    %c0_17 = arith.constant 0 : index
    %c0_18 = arith.constant 0 : index
    %16 = vector.load %arg6[%c0_17, %c0_18] : memref<64x64xbf16, #tpu.memory_space<vmem>>, vector<64x64xbf16>
    %cst_19 = arith.constant dense<0.000000e+00> : vector<64x64xf32>
    %17 = tpu.matmul %4, %16, %cst_19 {dimension_numbers = #tpu.dot_dimension_numbers<[1], [0], [0], [1], [0, 0, 1, 1], [], []>} : vector<64x64xbf16>, vector<64x64xbf16>, vector<64x64xf32> -> vector<64x64xf32>
    %18 = arith.addf %15, %17 : vector<64x64xf32>
    %c0_20 = arith.constant 0 : index
    %c0_21 = arith.constant 0 : index
    %19 = vector.load %arg12[%c0_20, %c0_21] : memref<64x64xf32, #tpu.memory_space<vmem>>, vector<64x64xf32>
    tpu.vector_store %arg12[%c0_20, %c0_21], %18 {strides = array<i32>} : memref<64x64xf32, #tpu.memory_space<vmem>>, vector<64x64xf32>,
    %c0_i32_22 = arith.constant 0 : i32
    %20 = arith.cmpi eq, %arg2, %c0_i32_22 : i32
    %21 = arith.extui %20 : i1 to i32
    %c0_i32_23 = arith.constant 0 : i32
    %22 = arith.cmpi ne, %21, %c0_i32_23 : i32
    scf.if %22 {
      %c0_24 = arith.constant 0 : index
      %c0_25 = arith.constant 0 : index
      %23 = vector.load %arg10[%c0_24, %c0_25] : memref<64x64xf32, #tpu.memory_space<vmem>>, vector<64x64xf32>
      %24 = arith.truncf %23 : vector<64x64xf32> to vector<64x64xbf16>
      %c0_26 = arith.constant 0 : index
      %c0_27 = arith.constant 0 : index
      %25 = vector.load %arg7[%c0_26, %c0_27] : memref<64x64xbf16, #tpu.memory_space<vmem>>, vector<64x64xbf16>
      tpu.vector_store %arg7[%c0_26, %c0_27], %24 {strides = array<i32>} : memref<64x64xbf16, #tpu.memory_space<vmem>>, vector<64x64xbf16>,
      %c0_28 = arith.constant 0 : index
      %c0_29 = arith.constant 0 : index
      %26 = vector.load %arg11[%c0_28, %c0_29] : memref<64x64xf32, #tpu.memory_space<vmem>>, vector<64x64xf32>
      %27 = arith.truncf %26 : vector<64x64xf32> to vector<64x64xbf16>
      %c0_30 = arith.constant 0 : index
      %c0_31 = arith.constant 0 : index
      %28 = vector.load %arg8[%c0_30, %c0_31] : memref<64x64xbf16, #tpu.memory_space<vmem>>, vector<64x64xbf16>
      tpu.vector_store %arg8[%c0_30, %c0_31], %27 {strides = array<i32>} : memref<64x64xbf16, #tpu.memory_space<vmem>>, vector<64x64xbf16>,
      %c0_32 = arith.constant 0 : index
      %c0_33 = arith.constant 0 : index
      %29 = vector.load %arg12[%c0_32, %c0_33] : memref<64x64xf32, #tpu.memory_space<vmem>>, vector<64x64xf32>
      %30 = arith.truncf %29 : vector<64x64xf32> to vector<64x64xbf16>
      %c0_34 = arith.constant 0 : index
      %c0_35 = arith.constant 0 : index
      %31 = vector.load %arg9[%c0_34, %c0_35] : memref<64x64xbf16, #tpu.memory_space<vmem>>, vector<64x64xbf16>
      tpu.vector_store %arg9[%c0_34, %c0_35], %30 {strides = array<i32>} : memref<64x64xbf16, #tpu.memory_space<vmem>>, vector<64x64xbf16>,
    } else {
    }
    return
  }
  func.func @transform_0(%arg0: i32, %arg1: i32, %arg2: i32) -> (i32, i32) {
    %c0_i32 = arith.constant 0 : i32
    return %arg0, %arg2 : i32, i32
  }
  func.func @transform_1(%arg0: i32, %arg1: i32, %arg2: i32) -> (i32, i32) {
    %c0_i32 = arith.constant 0 : i32
    return %arg2, %arg1 : i32, i32
  }
  func.func @transform_2(%arg0: i32, %arg1: i32, %arg2: i32) -> (i32, i32) {
    %c0_i32 = arith.constant 0 : i32
    return %arg2, %arg1 : i32, i32
  }
  func.func @transform_3(%arg0: i32, %arg1: i32, %arg2: i32) -> (i32, i32) {
    %c0_i32 = arith.constant 0 : i32
    return %arg2, %arg1 : i32, i32
  }
  func.func @transform_4(%arg0: i32, %arg1: i32, %arg2: i32) -> (i32, i32) {
    %c0_i32 = arith.constant 0 : i32
    return %arg0, %arg1 : i32, i32
  }
  func.func @transform_5(%arg0: i32, %arg1: i32, %arg2: i32) -> (i32, i32) {
    %c0_i32 = arith.constant 0 : i32
    return %arg0, %arg1 : i32, i32
  }
  func.func @transform_6(%arg0: i32, %arg1: i32, %arg2: i32) -> (i32, i32) {
    %c0_i32 = arith.constant 0 : i32
    return %arg0, %arg1 : i32, i32
  }
}

module attributes {stable_mosaic.version = 11 : i64} {
  func.func @_matmul_kernel(%arg0: i32, %arg1: i32, %arg2: i32, %arg3: memref<64x64xbf16, #tpu.memory_space<vmem>>, %arg4: memref<64x64xbf16, #tpu.memory_space<vmem>>, %arg5: memref<64x64xf32, #tpu.memory_space<vmem>>, %arg6: memref<64x64xf32, #tpu.memory_space<vmem>>) attributes {dimension_semantics = [#tpu.dimension_semantics<parallel>, #tpu.dimension_semantics<parallel>, #tpu.dimension_semantics<arbitrary>], iteration_bounds = array<i64: 2, 1, 1>, scalar_prefetch = 0 : i64, scratch_operands = 1 : i64, tpu.core_type = #tpu.core_type<tc>, window_params = [{transform_indices = @transform_0, window_bounds = array<i64: 64, 64>}, {transform_indices = @transform_1, window_bounds = array<i64: 64, 64>}, {transform_indices = @transform_2, window_bounds = array<i64: 64, 64>}]} {
    %c0_i32 = arith.constant 0 : i32
    %0 = arith.cmpi eq, %arg2, %c0_i32 : i32
    %1 = arith.extui %0 : i1 to i32
    %c0_i32_0 = arith.constant 0 : i32
    %2 = arith.cmpi ne, %1, %c0_i32_0 : i32
    scf.if %2 {
      %cst_10 = arith.constant 0.000000e+00 : f32
      %12 = vector.broadcast %cst_10 : f32 to vector<64x64xf32>
      %c0_11 = arith.constant 0 : index
      %c0_12 = arith.constant 0 : index
      %13 = vector.load %arg6[%c0_11, %c0_12] : memref<64x64xf32, #tpu.memory_space<vmem>>, vector<64x64xf32>
      tpu.vector_store %arg6[%c0_11, %c0_12], %12 {strides = array<i32>} : memref<64x64xf32, #tpu.memory_space<vmem>>, vector<64x64xf32>,
    } else {
    }
    %c0 = arith.constant 0 : index
    %c0_1 = arith.constant 0 : index
    %3 = vector.load %arg6[%c0, %c0_1] : memref<64x64xf32, #tpu.memory_space<vmem>>, vector<64x64xf32>
    %c0_2 = arith.constant 0 : index
    %c0_3 = arith.constant 0 : index
    %4 = vector.load %arg3[%c0_2, %c0_3] : memref<64x64xbf16, #tpu.memory_space<vmem>>, vector<64x64xbf16>
    %c0_4 = arith.constant 0 : index
    %c0_5 = arith.constant 0 : index
    %5 = vector.load %arg4[%c0_4, %c0_5] : memref<64x64xbf16, #tpu.memory_space<vmem>>, vector<64x64xbf16>
    %cst = arith.constant dense<0.000000e+00> : vector<64x64xf32>
    %6 = tpu.matmul %4, %5, %cst {dimension_numbers = #tpu.dot_dimension_numbers<[1], [0], [0], [1], [0, 0, 1, 1], [], []>} : vector<64x64xbf16>, vector<64x64xbf16>, vector<64x64xf32> -> vector<64x64xf32>
    %7 = arith.addf %3, %6 : vector<64x64xf32>
    %c0_6 = arith.constant 0 : index
    %c0_7 = arith.constant 0 : index
    %8 = vector.load %arg6[%c0_6, %c0_7] : memref<64x64xf32, #tpu.memory_space<vmem>>, vector<64x64xf32>
    tpu.vector_store %arg6[%c0_6, %c0_7], %7 {strides = array<i32>} : memref<64x64xf32, #tpu.memory_space<vmem>>, vector<64x64xf32>,
    %c0_i32_8 = arith.constant 0 : i32
    %9 = arith.cmpi eq, %arg2, %c0_i32_8 : i32
    %10 = arith.extui %9 : i1 to i32
    %c0_i32_9 = arith.constant 0 : i32
    %11 = arith.cmpi ne, %10, %c0_i32_9 : i32
    scf.if %11 {
      %c0_10 = arith.constant 0 : index
      %c0_11 = arith.constant 0 : index
      %12 = vector.load %arg6[%c0_10, %c0_11] : memref<64x64xf32, #tpu.memory_space<vmem>>, vector<64x64xf32>
      %c0_12 = arith.constant 0 : index
      %c0_13 = arith.constant 0 : index
      %13 = vector.load %arg5[%c0_12, %c0_13] : memref<64x64xf32, #tpu.memory_space<vmem>>, vector<64x64xf32>
      tpu.vector_store %arg5[%c0_12, %c0_13], %12 {strides = array<i32>} : memref<64x64xf32, #tpu.memory_space<vmem>>, vector<64x64xf32>,
    } else {
    }
    return
  }
  func.func @transform_0(%arg0: i32, %arg1: i32, %arg2: i32) -> (i32, i32) {
    %c0_i32 = arith.constant 0 : i32
    return %arg0, %arg2 : i32, i32
  }
  func.func @transform_1(%arg0: i32, %arg1: i32, %arg2: i32) -> (i32, i32) {
    %c0_i32 = arith.constant 0 : i32
    return %arg2, %arg1 : i32, i32
  }
  func.func @transform_2(%arg0: i32, %arg1: i32, %arg2: i32) -> (i32, i32) {
    %c0_i32 = arith.constant 0 : i32
    return %arg0, %arg1 : i32, i32
  }
}

module attributes {stable_mosaic.version = 11 : i64} {
  func.func @_mha_flash_kernel(%arg0: i32, %arg1: i32, %arg2: i32, %arg3: memref<1x64x64xbf16, #tpu.memory_space<vmem>>, %arg4: memref<1x64x64xbf16, #tpu.memory_space<vmem>>, %arg5: memref<1x64x64xbf16, #tpu.memory_space<vmem>>, %arg6: memref<1x64x64xbf16, #tpu.memory_space<vmem>>, %arg7: memref<64x2xf32, #tpu.memory_space<vmem>>, %arg8: memref<64x2xf32, #tpu.memory_space<vmem>>, %arg9: memref<64x64xf32, #tpu.memory_space<vmem>>) attributes {dimension_semantics = [#tpu.dimension_semantics<parallel>, #tpu.dimension_semantics<parallel>, #tpu.dimension_semantics<arbitrary>], iteration_bounds = array<i64: 2, 1, 1>, scalar_prefetch = 0 : i64, scratch_operands = 3 : i64, tpu.core_type = #tpu.core_type<tc>, window_params = [{transform_indices = @transform_0, window_bounds = array<i64: 1, 64, 64>}, {transform_indices = @transform_1, window_bounds = array<i64: 1, 64, 64>}, {transform_indices = @transform_2, window_bounds = array<i64: 1, 64, 64>}, {transform_indices = @transform_3, window_bounds = array<i64: 1, 64, 64>}]} {
    %c0_i32 = arith.constant 0 : i32
    %0 = arith.cmpi eq, %arg2, %c0_i32 : i32
    %1 = arith.extui %0 : i1 to i32
    %c0_i32_0 = arith.constant 0 : i32
    %2 = arith.cmpi ne, %1, %c0_i32_0 : i32
    scf.if %2 {
      %cst_49 = arith.constant 0xFF800000 : f32
      %66 = vector.broadcast %cst_49 : f32 to vector<64x2xf32>
      %c0_50 = arith.constant 0 : index
      %c0_51 = arith.constant 0 : index
      %67 = vector.load %arg7[%c0_50, %c0_51] : memref<64x2xf32, #tpu.memory_space<vmem>>, vector<64x2xf32>
      tpu.vector_store %arg7[%c0_50, %c0_51], %66 {strides = array<i32>} : memref<64x2xf32, #tpu.memory_space<vmem>>, vector<64x2xf32>,
      %cst_52 = arith.constant 0.000000e+00 : f32
      %68 = vector.broadcast %cst_52 : f32 to vector<64x2xf32>
      %c0_53 = arith.constant 0 : index
      %c0_54 = arith.constant 0 : index
      %69 = vector.load %arg8[%c0_53, %c0_54] : memref<64x2xf32, #tpu.memory_space<vmem>>, vector<64x2xf32>
      tpu.vector_store %arg8[%c0_53, %c0_54], %68 {strides = array<i32>} : memref<64x2xf32, #tpu.memory_space<vmem>>, vector<64x2xf32>,
      %cst_55 = arith.constant 0.000000e+00 : f32
      %70 = vector.broadcast %cst_55 : f32 to vector<64x64xf32>
      %c0_56 = arith.constant 0 : index
      %c0_57 = arith.constant 0 : index
      %71 = vector.load %arg9[%c0_56, %c0_57] : memref<64x64xf32, #tpu.memory_space<vmem>>, vector<64x64xf32>
      tpu.vector_store %arg9[%c0_56, %c0_57], %70 {strides = array<i32>} : memref<64x64xf32, #tpu.memory_space<vmem>>, vector<64x64xf32>,
    } else {
    }
    %c0 = arith.constant 0 : index
    %c0_1 = arith.constant 0 : index
    %c0_2 = arith.constant 0 : index
    %3 = vector.load %arg3[%c0, %c0_1, %c0_2] : memref<1x64x64xbf16, #tpu.memory_space<vmem>>, vector<1x64x32xbf16>
    %4 = vector.shape_cast %3 : vector<1x64x32xbf16> to vector<64x32xbf16>
    %c0_3 = arith.constant 0 : index
    %c0_4 = arith.constant 0 : index
    %c0_5 = arith.constant 0 : index
    %5 = vector.load %arg4[%c0_3, %c0_4, %c0_5] : memref<1x64x64xbf16, #tpu.memory_space<vmem>>, vector<1x64x32xbf16>
    %6 = vector.shape_cast %5 : vector<1x64x32xbf16> to vector<64x32xbf16>
    %cst = arith.constant dense<0.000000e+00> : vector<64x64xf32>
    %7 = tpu.matmul %4, %6, %cst {dimension_numbers = #tpu.dot_dimension_numbers<[1], [1], [0], [0], [0, 0, 1, 0], [], []>} : vector<64x32xbf16>, vector<64x32xbf16>, vector<64x64xf32> -> vector<64x64xf32>
    %c0_6 = arith.constant 0 : index
    %c0_7 = arith.constant 0 : index
    %8 = vector.load %arg7[%c0_6, %c0_7] : memref<64x2xf32, #tpu.memory_space<vmem>>, vector<64x1xf32>
    %cst_8 = arith.constant dense<0xFF800000> : vector<64xf32>
    %9 = vector.multi_reduction <maximumf>, %7, %cst_8 [1] : vector<64x64xf32> to vector<64xf32>
    %10 = vector.shape_cast %9 : vector<64xf32> to vector<64x1xf32>
    %11 = arith.maximumf %8, %10 : vector<64x1xf32>
    %12 = arith.subf %8, %11 : vector<64x1xf32>
    %13 = math.exp %12 : vector<64x1xf32>
    %14 = vector.broadcast %11 : vector<64x1xf32> to vector<64x64xf32>
    %15 = arith.subf %7, %14 : vector<64x64xf32>
    %16 = math.exp %15 : vector<64x64xf32>
    %c0_9 = arith.constant 0 : index
    %c0_10 = arith.constant 0 : index
    %17 = vector.load %arg8[%c0_9, %c0_10] : memref<64x2xf32, #tpu.memory_space<vmem>>, vector<64x1xf32>
    %18 = arith.mulf %13, %17 : vector<64x1xf32>
    %cst_11 = arith.constant dense<0.000000e+00> : vector<64xf32>
    %19 = vector.multi_reduction <add>, %16, %cst_11 [1] : vector<64x64xf32> to vector<64xf32>
    %20 = vector.shape_cast %19 : vector<64xf32> to vector<64x1xf32>
    %21 = arith.addf %18, %20 : vector<64x1xf32>
    %c0_12 = arith.constant 0 : index
    %c0_13 = arith.constant 0 : index
    %22 = vector.load %arg8[%c0_12, %c0_13] : memref<64x2xf32, #tpu.memory_space<vmem>>, vector<64x1xf32>
    tpu.vector_store %arg8[%c0_12, %c0_13], %21 {strides = array<i32>} : memref<64x2xf32, #tpu.memory_space<vmem>>, vector<64x1xf32>,
    %23 = arith.truncf %16 : vector<64x64xf32> to vector<64x64xbf16>
    %c0_14 = arith.constant 0 : index
    %c0_15 = arith.constant 0 : index
    %c0_16 = arith.constant 0 : index
    %24 = vector.load %arg5[%c0_14, %c0_15, %c0_16] : memref<1x64x64xbf16, #tpu.memory_space<vmem>>, vector<1x64x32xbf16>
    %25 = vector.shape_cast %24 : vector<1x64x32xbf16> to vector<64x32xbf16>
    %cst_17 = arith.constant dense<0.000000e+00> : vector<64x32xf32>
    %26 = tpu.matmul %23, %25, %cst_17 {dimension_numbers = #tpu.dot_dimension_numbers<[1], [0], [0], [1], [0, 0, 1, 1], [], []>} : vector<64x64xbf16>, vector<64x32xbf16>, vector<64x32xf32> -> vector<64x32xf32>
    %c0_18 = arith.constant 0 : index
    %c0_19 = arith.constant 0 : index
    %27 = vector.load %arg9[%c0_18, %c0_19] : memref<64x64xf32, #tpu.memory_space<vmem>>, vector<64x32xf32>
    %28 = vector.broadcast %13 : vector<64x1xf32> to vector<64x32xf32>
    %29 = arith.mulf %28, %27 : vector<64x32xf32>
    %30 = arith.addf %29, %26 : vector<64x32xf32>
    %c0_20 = arith.constant 0 : index
    %c0_21 = arith.constant 0 : index
    %31 = vector.load %arg9[%c0_20, %c0_21] : memref<64x64xf32, #tpu.memory_space<vmem>>, vector<64x32xf32>
    tpu.vector_store %arg9[%c0_20, %c0_21], %30 {strides = array<i32>} : memref<64x64xf32, #tpu.memory_space<vmem>>, vector<64x32xf32>,
    %c0_22 = arith.constant 0 : index
    %c0_23 = arith.constant 0 : index
    %32 = vector.load %arg7[%c0_22, %c0_23] : memref<64x2xf32, #tpu.memory_space<vmem>>, vector<64x1xf32>
    tpu.vector_store %arg7[%c0_22, %c0_23], %11 {strides = array<i32>} : memref<64x2xf32, #tpu.memory_space<vmem>>, vector<64x1xf32>,
    %c0_24 = arith.constant 0 : index
    %c0_25 = arith.constant 0 : index
    %c32 = arith.constant 32 : index
    %33 = vector.load %arg3[%c0_24, %c0_25, %c32] : memref<1x64x64xbf16, #tpu.memory_space<vmem>>, vector<1x64x32xbf16>
    %34 = vector.shape_cast %33 : vector<1x64x32xbf16> to vector<64x32xbf16>
    %c0_26 = arith.constant 0 : index
    %c0_27 = arith.constant 0 : index
    %c32_28 = arith.constant 32 : index
    %35 = vector.load %arg4[%c0_26, %c0_27, %c32_28] : memref<1x64x64xbf16, #tpu.memory_space<vmem>>, vector<1x64x32xbf16>
    %36 = vector.shape_cast %35 : vector<1x64x32xbf16> to vector<64x32xbf16>
    %cst_29 = arith.constant dense<0.000000e+00> : vector<64x64xf32>
    %37 = tpu.matmul %34, %36, %cst_29 {dimension_numbers = #tpu.dot_dimension_numbers<[1], [1], [0], [0], [0, 0, 1, 0], [], []>} : vector<64x32xbf16>, vector<64x32xbf16>, vector<64x64xf32> -> vector<64x64xf32>
    %c0_30 = arith.constant 0 : index
    %c1 = arith.constant 1 : index
    %38 = vector.load %arg7[%c0_30, %c1] : memref<64x2xf32, #tpu.memory_space<vmem>>, vector<64x1xf32>
    %cst_31 = arith.constant dense<0xFF800000> : vector<64xf32>
    %39 = vector.multi_reduction <maximumf>, %37, %cst_31 [1] : vector<64x64xf32> to vector<64xf32>
    %40 = vector.shape_cast %39 : vector<64xf32> to vector<64x1xf32>
    %41 = arith.maximumf %38, %40 : vector<64x1xf32>
    %42 = arith.subf %38, %41 : vector<64x1xf32>
    %43 = math.exp %42 : vector<64x1xf32>
    %44 = vector.broadcast %41 : vector<64x1xf32> to vector<64x64xf32>
    %45 = arith.subf %37, %44 : vector<64x64xf32>
    %46 = math.exp %45 : vector<64x64xf32>
    %c0_32 = arith.constant 0 : index
    %c1_33 = arith.constant 1 : index
    %47 = vector.load %arg8[%c0_32, %c1_33] : memref<64x2xf32, #tpu.memory_space<vmem>>, vector<64x1xf32>
    %48 = arith.mulf %43, %47 : vector<64x1xf32>
    %cst_34 = arith.constant dense<0.000000e+00> : vector<64xf32>
    %49 = vector.multi_reduction <add>, %46, %cst_34 [1] : vector<64x64xf32> to vector<64xf32>
    %50 = vector.shape_cast %49 : vector<64xf32> to vector<64x1xf32>
    %51 = arith.addf %48, %50 : vector<64x1xf32>
    %c0_35 = arith.constant 0 : index
    %c1_36 = arith.constant 1 : index
    %52 = vector.load %arg8[%c0_35, %c1_36] : memref<64x2xf32, #tpu.memory_space<vmem>>, vector<64x1xf32>
    tpu.vector_store %arg8[%c0_35, %c1_36], %51 {strides = array<i32>} : memref<64x2xf32, #tpu.memory_space<vmem>>, vector<64x1xf32>,
    %53 = arith.truncf %46 : vector<64x64xf32> to vector<64x64xbf16>
    %c0_37 = arith.constant 0 : index
    %c0_38 = arith.constant 0 : index
    %c32_39 = arith.constant 32 : index
    %54 = vector.load %arg5[%c0_37, %c0_38, %c32_39] : memref<1x64x64xbf16, #tpu.memory_space<vmem>>, vector<1x64x32xbf16>
    %55 = vector.shape_cast %54 : vector<1x64x32xbf16> to vector<64x32xbf16>
    %cst_40 = arith.constant dense<0.000000e+00> : vector<64x32xf32>
    %56 = tpu.matmul %53, %55, %cst_40 {dimension_numbers = #tpu.dot_dimension_numbers<[1], [0], [0], [1], [0, 0, 1, 1], [], []>} : vector<64x64xbf16>, vector<64x32xbf16>, vector<64x32xf32> -> vector<64x32xf32>
    %c0_41 = arith.constant 0 : index
    %c32_42 = arith.constant 32 : index
    %57 = vector.load %arg9[%c0_41, %c32_42] : memref<64x64xf32, #tpu.memory_space<vmem>>, vector<64x32xf32>
    %58 = vector.broadcast %43 : vector<64x1xf32> to vector<64x32xf32>
    %59 = arith.mulf %58, %57 : vector<64x32xf32>
    %60 = arith.addf %59, %56 : vector<64x32xf32>
    %c0_43 = arith.constant 0 : index
    %c32_44 = arith.constant 32 : index
    %61 = vector.load %arg9[%c0_43, %c32_44] : memref<64x64xf32, #tpu.memory_space<vmem>>, vector<64x32xf32>
    tpu.vector_store %arg9[%c0_43, %c32_44], %60 {strides = array<i32>} : memref<64x64xf32, #tpu.memory_space<vmem>>, vector<64x32xf32>,
    %c0_45 = arith.constant 0 : index
    %c1_46 = arith.constant 1 : index
    %62 = vector.load %arg7[%c0_45, %c1_46] : memref<64x2xf32, #tpu.memory_space<vmem>>, vector<64x1xf32>
    tpu.vector_store %arg7[%c0_45, %c1_46], %41 {strides = array<i32>} : memref<64x2xf32, #tpu.memory_space<vmem>>, vector<64x1xf32>,
    %c0_i32_47 = arith.constant 0 : i32
    %63 = arith.cmpi eq, %arg2, %c0_i32_47 : i32
    %64 = arith.extui %63 : i1 to i32
    %c0_i32_48 = arith.constant 0 : i32
    %65 = arith.cmpi ne, %64, %c0_i32_48 : i32
    scf.if %65 {
      %c0_49 = arith.constant 0 : index
      %c0_50 = arith.constant 0 : index
      %66 = vector.load %arg8[%c0_49, %c0_50] : memref<64x2xf32, #tpu.memory_space<vmem>>, vector<64x1xf32>
      %67 = tpu.reciprocal %66 {approx = true} : vector<64x1xf32> -> vector<64x1xf32>
      %c0_51 = arith.constant 0 : index
      %c0_52 = arith.constant 0 : index
      %68 = vector.load %arg9[%c0_51, %c0_52] : memref<64x64xf32, #tpu.memory_space<vmem>>, vector<64x32xf32>
      %69 = vector.broadcast %67 : vector<64x1xf32> to vector<64x32xf32>
      %70 = arith.mulf %68, %69 : vector<64x32xf32>
      %71 = arith.truncf %70 : vector<64x32xf32> to vector<64x32xbf16>
      %c0_53 = arith.constant 0 : index
      %c0_54 = arith.constant 0 : index
      %c0_55 = arith.constant 0 : index
      %72 = vector.load %arg6[%c0_53, %c0_54, %c0_55] : memref<1x64x64xbf16, #tpu.memory_space<vmem>>, vector<1x64x32xbf16>
      %73 = vector.shape_cast %72 : vector<1x64x32xbf16> to vector<64x32xbf16>
      %74 = vector.shape_cast %71 : vector<64x32xbf16> to vector<1x64x32xbf16>
      tpu.vector_store %arg6[%c0_53, %c0_54, %c0_55], %74 {strides = array<i32>} : memref<1x64x64xbf16, #tpu.memory_space<vmem>>, vector<1x64x32xbf16>,
      %c0_56 = arith.constant 0 : index
      %c1_57 = arith.constant 1 : index
      %75 = vector.load %arg8[%c0_56, %c1_57] : memref<64x2xf32, #tpu.memory_space<vmem>>, vector<64x1xf32>
      %76 = tpu.reciprocal %75 {approx = true} : vector<64x1xf32> -> vector<64x1xf32>
      %c0_58 = arith.constant 0 : index
      %c32_59 = arith.constant 32 : index
      %77 = vector.load %arg9[%c0_58, %c32_59] : memref<64x64xf32, #tpu.memory_space<vmem>>, vector<64x32xf32>
      %78 = vector.broadcast %76 : vector<64x1xf32> to vector<64x32xf32>
      %79 = arith.mulf %77, %78 : vector<64x32xf32>
      %80 = arith.truncf %79 : vector<64x32xf32> to vector<64x32xbf16>
      %c0_60 = arith.constant 0 : index
      %c0_61 = arith.constant 0 : index
      %c32_62 = arith.constant 32 : index
      %81 = vector.load %arg6[%c0_60, %c0_61, %c32_62] : memref<1x64x64xbf16, #tpu.memory_space<vmem>>, vector<1x64x32xbf16>
      %82 = vector.shape_cast %81 : vector<1x64x32xbf16> to vector<64x32xbf16>
      %83 = vector.shape_cast %80 : vector<64x32xbf16> to vector<1x64x32xbf16>
      tpu.vector_store %arg6[%c0_60, %c0_61, %c32_62], %83 {strides = array<i32>} : memref<1x64x64xbf16, #tpu.memory_space<vmem>>, vector<1x64x32xbf16>,
    } else {
    }
    return
  }
  func.func @transform_0(%arg0: i32, %arg1: i32, %arg2: i32) -> (i32, i32, i32) {
    %c0_i32 = arith.constant 0 : i32
    %c0_i32_0 = arith.constant 0 : i32
    return %arg0, %arg1, %c0_i32 : i32, i32, i32
  }
  func.func @transform_1(%arg0: i32, %arg1: i32, %arg2: i32) -> (i32, i32, i32) {
    %c0_i32 = arith.constant 0 : i32
    %c0_i32_0 = arith.constant 0 : i32
    return %arg0, %arg2, %c0_i32 : i32, i32, i32
  }
  func.func @transform_2(%arg0: i32, %arg1: i32, %arg2: i32) -> (i32, i32, i32) {
    %c0_i32 = arith.constant 0 : i32
    %c0_i32_0 = arith.constant 0 : i32
    return %arg0, %arg2, %c0_i32 : i32, i32, i32
  }
  func.func @transform_3(%arg0: i32, %arg1: i32, %arg2: i32) -> (i32, i32, i32) {
    %c0_i32 = arith.constant 0 : i32
    %c0_i32_0 = arith.constant 0 : i32
    return %arg0, %arg1, %c0_i32 : i32, i32, i32
  }
}

</mosaic_0001>

<llo_original>
// kernel: attention_forward.5
$region0: #{attention_forward.5}
  #allocation0 [shape = 'u32[]', space=smem, size = 0x4, offset = 0x4, fixed_abs, tag = 'smem constant byte address 0x4 - core index']
  #allocation1 [shape = 'u32[144,128]{1,0:T(1,128)}', space=vmem, size = 0x12000, scoped, tag = 'internal scratch']
  #allocation2 [shape = 'f32[64,64]{1,0:T(8,128)}', space=vmem, size = 0x8000, scoped, tag = 'scratch operand']
  %s0 = inlined_call_operand.vmem [shape: bf16[128,64], index: 0, kind: input, shape index: {}]
  %s1 = inlined_call_operand.vmem [shape: bf16[64,64], index: 1, kind: input, shape index: {}]
  %s2 = inlined_call_operand.hbm [shape: f32[128,64], index: 2, kind: output, shape index: {}]
  %s3 = sld [smem:[#allocation0]]
  $region49: #{attention_forward.5} parent=0
    _
  %s5 = ssub.s32 1, %s3
  %s6 = scalar_select 0, %s5, %s3
  $region1: #{attention_forward.5} parent=0
    #allocation3 [shape = 'u8[65536]{0}', space=vmem, size = 0x10000, scoped, tag = 'output window, operand 0']
    #allocation4 [shape = 's32[2]{0}', space=sflag, size = 0x8, scoped, tag = 'scoped memory for attention_forward.5']
    %7 = vsyncpa [#allocation4], 0
    %s8 = scalar_lea.sflag [#allocation4], 1
    %9 = vsyncpa %s8, 0
    loop: start=0, step=1, limit=4
    $region2: #{attention_forward.5} parent=1 // loop_pre_header
      _
    $region3: #{attention_forward.5} parent=1 // loop_header
      %s11 = sphi 0, %s15
      %p12 = scmp.ge.s32.totalorder %s11, 4
      %s18 = sphi 0, %s37
      %s19 = sphi 0, %s33
      %s20 = sphi 0, %s29
      %s21 = sphi 0, %s18
      %s22 = sphi 0, %s19
      %s23 = sphi 0, %s20
      %s24 = sphi 0, %s21
      %s25 = sphi 0, %s22
      %s26 = sphi 0, %s23
      %s42 = sphi 0, %s44
      %s45 = sphi 0, %s42
      %s46 = sphi 0, %s45
      %s62 = sphi 0, %s46
      %s70 = sphi 0, %s72
      %s73 = sphi 0, %s70
      %s74 = sphi 0, %s73
      %s90 = sphi 0, %s74
      %s98 = sphi 0, %s100
      %s101 = sphi 0, %s98
      %s102 = sphi 0, %s101
      %s118 = sphi 0, %s102
    $region4: #{attention_forward.5} parent=1 // loop_header_branch
      %14 = sbr.rel (%p12) target = $region8
    $region5: #{attention_forward.5} parent=1 // loop_body
      %s16 = ssub.s32 %s11, 1
      %s17 = ssub.s32 %s11, 2
      %s27 = sadd.s32 1, %s20
      %p28 = scmp.ge.s32.totalorder %s27, 1
      %s29 = scalar_select %p28, 0, %s27
      %s30 = sadd.s32 1, %s19
      %s31 = scalar_select %p28, %s30, %s19
      %p32 = scmp.ge.s32.totalorder %s31, 1
      %s33 = scalar_select %p32, 0, %s31
      %s34 = sadd.s32 1, %s18
      %s35 = scalar_select %p32, %s34, %s18
      %p36 = scmp.ge.s32.totalorder %s35, 2
      %s37 = scalar_select %p36, 0, %s35
      %s38 = ssub.s32 %s18, %s37
      %s39 = ssub.s32 %s20, %s29
      %s40 = sor.u32 %s38, %s39
      %p41 = scmp.eq.s32.totalorder %s40, 0
      %s43 = sadd.s32 %s42, 1
      %s44 = scalar_select %p41, %s42, %s43
      %p47 = pneg %p41
      %p48 = scmp.eq.s32.totalorder %s11, 1
      %p49 = por %p47, %p48
      %p50 = scmp.ne.s32.totalorder %s42, %s45
      %p51 = scmp.eq.s32.totalorder %s11, 0
      %p52 = por %p50, %p51
      %p53 = scmp.ne.s32.totalorder %s42, %s45
      %p54 = scmp.eq.s32.totalorder %s16, 1
      %p55 = por %p53, %p54
      %p56 = scmp.ne.s32.totalorder %s45, %s46
      %p57 = scmp.eq.s32.totalorder %s16, 0
      %p58 = por %p56, %p57
      %p59 = scmp.ne.s32.totalorder %s45, %s46
      %p60 = scmp.eq.s32.totalorder %s17, 1
      %p61 = por %p59, %p60
      %p63 = scmp.ne.s32.totalorder %s46, %s62
      %p64 = scmp.eq.s32.totalorder %s17, 0
      %p65 = por %p63, %p64
      %s66 = ssub.s32 %s20, %s29
      %s67 = ssub.s32 %s19, %s33
      %s68 = sor.u32 %s66, %s67
      %p69 = scmp.eq.s32.totalorder %s68, 0
      %s71 = sadd.s32 %s70, 1
      %s72 = scalar_select %p69, %s70, %s71
      %p75 = pneg %p69
      %p76 = scmp.eq.s32.totalorder %s11, 1
      %p77 = por %p75, %p76
      %p78 = scmp.ne.s32.totalorder %s70, %s73
      %p79 = scmp.eq.s32.totalorder %s11, 0
      %p80 = por %p78, %p79
      %p81 = scmp.ne.s32.totalorder %s70, %s73
      %p82 = scmp.eq.s32.totalorder %s16, 1
      %p83 = por %p81, %p82
      %p84 = scmp.ne.s32.totalorder %s73, %s74
      %p85 = scmp.eq.s32.totalorder %s16, 0
      %p86 = por %p84, %p85
      %p87 = scmp.ne.s32.totalorder %s73, %s74
      %p88 = scmp.eq.s32.totalorder %s17, 1
      %p89 = por %p87, %p88
      %p91 = scmp.ne.s32.totalorder %s74, %s90
      %p92 = scmp.eq.s32.totalorder %s17, 0
      %p93 = por %p91, %p92
      %s94 = ssub.s32 %s18, %s37
      %s95 = ssub.s32 %s19, %s33
      %s96 = sor.u32 %s94, %s95
      %p97 = scmp.eq.s32.totalorder %s96, 0
      %s99 = sadd.s32 %s98, 1
      %s100 = scalar_select %p97, %s98, %s99
      %p103 = pneg %p97
      %p104 = scmp.eq.s32.totalorder %s11, 1
      %p105 = por %p103, %p104
      %p106 = scmp.ne.s32.totalorder %s98, %s101
      %p107 = scmp.eq.s32.totalorder %s11, 0
      %p108 = por %p106, %p107
      %p109 = scmp.ne.s32.totalorder %s98, %s101
      %p110 = scmp.eq.s32.totalorder %s16, 1
      %p111 = por %p109, %p110
      %p112 = scmp.ne.s32.totalorder %s101, %s102
      %p113 = scmp.eq.s32.totalorder %s16, 0
      %p114 = por %p112, %p113
      %p115 = scmp.ne.s32.totalorder %s101, %s102
      %p116 = scmp.eq.s32.totalorder %s17, 1
      %p117 = por %p115, %p116
      %p119 = scmp.ne.s32.totalorder %s102, %s118
      %p120 = scmp.eq.s32.totalorder %s17, 0
      %p121 = por %p119, %p120
      %p122 = scmp.le.s32.totalorder 1, %s11
      %p123 = scmp.lt.s32.totalorder %s11, 3
      %p124 = pnand %p122, %p123
      %p125 = pneg %p124
      // Predicated region
      $region9: #{attention_forward.5} parent=5 // pred_check
        _
      $region10: #{attention_forward.5} parent=5 // pred_check_branch
        %127 = sbr.rel (%p124) target = $region12
      $region11: #{attention_forward.5} parent=5 // pred_region
        %s128 = ssub.s32 %s11, 1
        // Predicated region
        $region13: #{attention_forward.5} parent=11 // pred_check
          %p129 = pneg %p86
        $region14: #{attention_forward.5} parent=11 // pred_check_branch
          %131 = sbr.rel (%p129) target = $region16
        $region15: #{attention_forward.5} parent=11 // pred_region
          %s132 = smul.u32 8, %s23
          %p133 = scmp.lt.s32.totalorder %s132, 7
          %s134 = scalar_select %p133, %s132, 7
          %p135 = scmp.lt.s32.totalorder %s22, 0
          %s136 = scalar_select %p135, %s22, 0
          %s137 = sadd.s32 %s136, %s134
          %s138 = smul.addr %s137, 4
          %s139 = scalar_lea.vmem %s1, %s138
          %s140 = smul.u32 8, %s23
        $region16: #{attention_forward.5} parent=11 // pred_fallthru
          _
      $region12: #{attention_forward.5} parent=5 // pred_fallthru
        _
      %p141 = scmp.lt.s32.totalorder %s11, 2
      // Predicated region
      $region17: #{attention_forward.5} parent=5 // pred_check
        %p142 = pneg %p141
      $region18: #{attention_forward.5} parent=5 // pred_check_branch
        %144 = sbr.rel (%p142) target = $region20
      $region19: #{attention_forward.5} parent=5 // pred_region
        // Predicated region
        $region21: #{attention_forward.5} parent=19 // pred_check
          %p145 = pneg %p52
        $region22: #{attention_forward.5} parent=19 // pred_check_branch
          %147 = sbr.rel (%p145) target = $region24
        $region23: #{attention_forward.5} parent=19 // pred_region
          %s148 = smul.u32 8, %s18
          %p149 = scmp.lt.s32.totalorder %s148, 15
          %s150 = scalar_select %p149, %s148, 15
          %p151 = scmp.lt.s32.totalorder %s20, 0
          %s152 = scalar_select %p151, %s20, 0
          %s153 = sadd.s32 %s152, %s150
          %s154 = smul.addr %s153, 4
          %s155 = scalar_lea.vmem %s0, %s154
          %s156 = smul.u32 8, %s18
        $region24: #{attention_forward.5} parent=19 // pred_fallthru
          _
      $region20: #{attention_forward.5} parent=5 // pred_fallthru
        _
      %p157 = scmp.le.s32.totalorder 1, %s11
      %p158 = scmp.lt.s32.totalorder %s11, 3
      %p159 = pnand %p157, %p158
      %p160 = pneg %p159
      // Predicated region
      $region25: #{attention_forward.5} parent=5 // pred_check
        _
      $region26: #{attention_forward.5} parent=5 // pred_check_branch
        %162 = sbr.rel (%p159) target = $region28
      $region27: #{attention_forward.5} parent=5 // pred_region
        %s163 = ssub.s32 %s11, 1
        %s164 = smul.u32 8, %s21
        %p165 = scmp.lt.s32.totalorder %s164, 15
        %s166 = scalar_select %p165, %s164, 15
        %p167 = scmp.lt.s32.totalorder %s23, 0
        %s168 = scalar_select %p167, %s23, 0
        %s169 = sadd.s32 %s168, %s166
        %s170 = smul.addr %s169, 4
        %s171 = scalar_lea.vmem %s0, %s170
        %p172 = pneg %p58
        %p173 = pneg %p55
        %s174 = smul.u32 8, %s23
        %p175 = scmp.lt.s32.totalorder %s174, 7
        %s176 = scalar_select %p175, %s174, 7
        %p177 = scmp.lt.s32.totalorder %s22, 0
        %s178 = scalar_select %p177, %s22, 0
        %s179 = sadd.s32 %s178, %s176
        %s180 = smul.addr %s179, 4
        %s181 = scalar_lea.vmem %s1, %s180
        %p182 = pneg %p86
        %p183 = pneg %p83
        %p184 = pneg %p114
        %p185 = pneg %p111
        %s186 = sand.u32 %s101, 1
        %s187 = scalar_lea.sflag [#allocation4], %s186
        %s188 = sand.u32 %s101, 1
        %s189 = smul.addr %s188, 64
        %s190 = scalar_lea.vmem [#allocation3], %s189
        %s191 = smul.u32 8, %s21
        %p192 = scmp.lt.s32.totalorder %s191, 15
        %s193 = scalar_select %p192, %s191, 15
        %p194 = scmp.lt.s32.totalorder %s23, 0
        %s195 = scalar_select %p194, %s23, 0
        %s196 = sadd.s32 %s195, %s193
        %s197 = smul.addr %s196, 4
        %s198 = scalar_lea.vmem %s0, %s197
        %s199 = smul.u32 8, %s21
        %s200 = smul.u32 8, %s23
        %p201 = scmp.lt.s32.totalorder %s200, 7
        %s202 = scalar_select %p201, %s200, 7
        %p203 = scmp.lt.s32.totalorder %s22, 0
        %s204 = scalar_select %p203, %s22, 0
        %s205 = sadd.s32 %s204, %s202
        %s206 = smul.addr %s205, 4
        %s207 = scalar_lea.vmem %s1, %s206
        %s208 = smul.u32 8, %s23
        %s209 = smul.u32 8, %s21
        %p211 = scmp.eq.s32.totalorder %s23, 0
        // Predicated region
        $region29: #{attention_forward.5} parent=27 // pred_check
          %p212 = pneg %p211
        $region30: #{attention_forward.5} parent=27 // pred_check_branch
          %214 = sbr.rel (%p212) target = $region32
        $region31: #{attention_forward.5} parent=27 // pred_region
          %vm215 = vcmask 523264
          %216 = vst.msk [vmem:[#allocation2] sm:$0xff] %vm215, 0.0
          %217 = vst.msk [vmem:[#allocation2 + $0x8] sm:$0xff] %vm215, 0.0
          %218 = vst.msk [vmem:[#allocation2 + $0x10] sm:$0xff] %vm215, 0.0
          %219 = vst.msk [vmem:[#allocation2 + $0x18] sm:$0xff] %vm215, 0.0
          %220 = vst.msk [vmem:[#allocation2 + $0x20] sm:$0xff] %vm215, 0.0
          %221 = vst.msk [vmem:[#allocation2 + $0x28] sm:$0xff] %vm215, 0.0
          %222 = vst.msk [vmem:[#allocation2 + $0x30] sm:$0xff] %vm215, 0.0
          %223 = vst.msk [vmem:[#allocation2 + $0x38] sm:$0xff] %vm215, 0.0
        $region32: #{attention_forward.5} parent=27 // pred_fallthru
          _
        %v224 = vld [vmem:[#allocation2] sm:$0xff]
        %v225 = vld [vmem:[#allocation2 + $0x8] sm:$0xff]
        %v226 = vld [vmem:[#allocation2 + $0x10] sm:$0xff]
        %v227 = vld [vmem:[#allocation2 + $0x18] sm:$0xff]
        %v228 = vld [vmem:[#allocation2 + $0x20] sm:$0xff]
        %v229 = vld [vmem:[#allocation2 + $0x28] sm:$0xff]
        %v230 = vld [vmem:[#allocation2 + $0x30] sm:$0xff]
        %v231 = vld [vmem:[#allocation2 + $0x38] sm:$0xff]
        %v232 = vld [vmem:[%s198] sm:$0xf]
        %v233 = vld [vmem:[%s198 + $0x4] sm:$0xf]
        %v234 = vld [vmem:[%s198 + $0x8] sm:$0xf]
        %v235 = vld [vmem:[%s198 + $0xc] sm:$0xf]
        %v236 = vld [vmem:[%s198 + $0x10] sm:$0xf]
        %v237 = vld [vmem:[%s198 + $0x14] sm:$0xf]
        %v238 = vld [vmem:[%s198 + $0x18] sm:$0xf]
        %v239 = vld [vmem:[%s198 + $0x1c] sm:$0xf]
        %v240 = vld [vmem:[%s207] sm:$0xf]
        %v241 = vld [vmem:[%s207 + $0x4] sm:$0xf]
        %v242 = vld [vmem:[%s207 + $0x8] sm:$0xf]
        %v243 = vld [vmem:[%s207 + $0xc] sm:$0xf]
        %v244 = vld [vmem:[%s207 + $0x10] sm:$0xf]
        %v245 = vld [vmem:[%s207 + $0x14] sm:$0xf]
        %v246 = vld [vmem:[%s207 + $0x18] sm:$0xf]
        %v247 = vld [vmem:[%s207 + $0x1c] sm:$0xf]
        %v256 = vunpack.c.l.b16 %v232
        %v257 = vunpack.c.l.b16 %v233
        %v258 = vunpack.c.l.b16 %v234
        %v259 = vunpack.c.l.b16 %v235
        %v260 = vunpack.c.l.b16 %v236
        %v261 = vunpack.c.l.b16 %v237
        %v262 = vunpack.c.l.b16 %v238
        %v263 = vunpack.c.l.b16 %v239
        %v264 = vpack.c.b16 %v257, %v256
        %v265 = vpack.c.b16 %v259, %v258
        %v266 = vpack.c.b16 %v261, %v260
        %v267 = vpack.c.b16 %v263, %v262
        %v276 = vunpack.c.l.b16 %v240
        %v277 = vunpack.c.l.b16 %v241
        %v278 = vunpack.c.l.b16 %v242
        %v279 = vunpack.c.l.b16 %v243
        %v280 = vunpack.c.l.b16 %v244
        %v281 = vunpack.c.l.b16 %v245
        %v282 = vunpack.c.l.b16 %v246
        %v283 = vunpack.c.l.b16 %v247
        %v284 = vpack.c.b16 %v277, %v276
        %v285 = vpack.c.b16 %v279, %v278
        %v286 = vpack.c.b16 %v281, %v280
        %v287 = vpack.c.b16 %v283, %v282
        %vm292 = vcmask 523264
        %v294 = vsel %vm292, %v264, 0
        %v297 = vsel %vm292, %v265, 0
        %v300 = vsel %vm292, %v266, 0
        %v303 = vsel %vm292, %v267, 0
        %305 = vmatprep.subr.bf16.mxu0 0
        %306 = vmatpush1.bf16.msra.mxu0 0
        %307 = vmatprep.subr.bf16.mxu0 0
        %308 = vmatpush1.bf16.msra.mxu0 0
        %309 = vmatprep.subr.bf16.mxu0 0
        %310 = vmatpush1.bf16.msra.mxu0 0
        %311 = vmatprep.subr.bf16.mxu0 0
        %312 = vmatpush1.bf16.msra.mxu0 0
        %313 = vmatprep.subr.bf16.mxu0 0
        %314 = vmatpush1.bf16.msra.mxu0 %v287
        %315 = vmatprep.subr.bf16.mxu0 0
        %316 = vmatpush1.bf16.msra.mxu0 %v286
        %317 = vmatprep.subr.bf16.mxu0 0
        %318 = vmatpush1.bf16.msra.mxu0 %v285
        %319 = vmatprep.subr.bf16.mxu0 0
        %320 = vmatpush1.bf16.msra.mxu0 %v284
        %321 = vmatprep.subr.bf16.mxu0 0
        %322 = vmatpush2.bf16.msra.mxu0 0
        %323 = vmatprep.subr.bf16.mxu0 0
        %324 = vmatpush2.bf16.msra.mxu0 0
        %325 = vmatprep.subr.bf16.mxu0 0
        %326 = vmatpush2.bf16.msra.mxu0 0
        %327 = vmatprep.subr.bf16.mxu0 0
        %328 = vmatpush2.bf16.msra.mxu0 0
        %329 = vmatprep.subr.bf16.mxu0 0
        %330 = vmatpush2.bf16.msra.mxu0 0
        %331 = vmatprep.subr.bf16.mxu0 0
        %332 = vmatpush2.bf16.msra.mxu0 0
        %333 = vmatprep.subr.bf16.mxu0 0
        %334 = vmatpush2.bf16.msra.mxu0 0
        %335 = vmatprep.subr.bf16.mxu0 0
        %336 = vmatpush2.bf16.msra.mxu0 0
        %337 = vmatprep.mubr.bf16.mxu0 0
        %338 = vmatmul.mubr.bf16.gmra.mxu0 %v294
        %v339 = vpop.f32.mrf.mxu0
        %v340 = vadd.f32 0.0, %v339
        %v341 = vpop.f32.mrf.mxu0
        %v342 = vpop.f32.mrf.mxu0
        %v343 = vadd.f32 0.0, %v342
        %v344 = vpop.f32.mrf.mxu0
        %345 = vmatprep.mubr.bf16.mxu0 0
        %346 = vmatmul.mubr.bf16.gmra.mxu0 %v297
        %v347 = vpop.f32.mrf.mxu0
        %v348 = vadd.f32 0.0, %v347
        %v349 = vpop.f32.mrf.mxu0
        %v350 = vpop.f32.mrf.mxu0
        %v351 = vadd.f32 0.0, %v350
        %v352 = vpop.f32.mrf.mxu0
        %353 = vmatprep.mubr.bf16.mxu0 0
        %354 = vmatmul.mubr.bf16.gmra.mxu0 %v300
        %v355 = vpop.f32.mrf.mxu0
        %v356 = vadd.f32 0.0, %v355
        %v357 = vpop.f32.mrf.mxu0
        %v358 = vpop.f32.mrf.mxu0
        %v359 = vadd.f32 0.0, %v358
        %v360 = vpop.f32.mrf.mxu0
        %361 = vmatprep.mubr.bf16.mxu0 0
        %362 = vmatmul.mubr.bf16.gmra.mxu0 %v303
        %v363 = vpop.f32.mrf.mxu0
        %v364 = vadd.f32 0.0, %v363
        %v365 = vpop.f32.mrf.mxu0
        %v366 = vpop.f32.mrf.mxu0
        %v367 = vadd.f32 0.0, %v366
        %v368 = vpop.f32.mrf.mxu0
        %369 = vdwg.mxu0
        %v370 = vadd.f32 %v224, %v340
        %v371 = vadd.f32 %v225, %v343
        %v372 = vadd.f32 %v226, %v348
        %v373 = vadd.f32 %v227, %v351
        %v374 = vadd.f32 %v228, %v356
        %v375 = vadd.f32 %v229, %v359
        %v376 = vadd.f32 %v230, %v364
        %v377 = vadd.f32 %v231, %v367
        %378 = vst.msk [vmem:[#allocation2] sm:$0xff] %vm292, %v370
        %379 = vst.msk [vmem:[#allocation2 + $0x8] sm:$0xff] %vm292, %v371
        %380 = vst.msk [vmem:[#allocation2 + $0x10] sm:$0xff] %vm292, %v372
        %381 = vst.msk [vmem:[#allocation2 + $0x18] sm:$0xff] %vm292, %v373
        %382 = vst.msk [vmem:[#allocation2 + $0x20] sm:$0xff] %vm292, %v374
        %383 = vst.msk [vmem:[#allocation2 + $0x28] sm:$0xff] %vm292, %v375
        %384 = vst.msk [vmem:[#allocation2 + $0x30] sm:$0xff] %vm292, %v376
        %385 = vst.msk [vmem:[#allocation2 + $0x38] sm:$0xff] %vm292, %v377
        // Predicated region
        $region33: #{attention_forward.5} parent=27 // pred_check
          %p386 = pneg %p211
        $region34: #{attention_forward.5} parent=27 // pred_check_branch
          %388 = sbr.rel (%p386) target = $region36
        $region35: #{attention_forward.5} parent=27 // pred_region
          %v389 = vld [vmem:[#allocation2] sm:$0xff]
          %v390 = vld [vmem:[#allocation2 + $0x8] sm:$0xff]
          %v391 = vld [vmem:[#allocation2 + $0x10] sm:$0xff]
          %v392 = vld [vmem:[#allocation2 + $0x18] sm:$0xff]
          %v393 = vld [vmem:[#allocation2 + $0x20] sm:$0xff]
          %v394 = vld [vmem:[#allocation2 + $0x28] sm:$0xff]
          %v395 = vld [vmem:[#allocation2 + $0x30] sm:$0xff]
          %v396 = vld [vmem:[#allocation2 + $0x38] sm:$0xff]
          %397 = vst.msk [vmem:[%s190] sm:$0xff] %vm292, %v389
          %398 = vst.msk [vmem:[%s190 + $0x8] sm:$0xff] %vm292, %v390
          %399 = vst.msk [vmem:[%s190 + $0x10] sm:$0xff] %vm292, %v391
          %400 = vst.msk [vmem:[%s190 + $0x18] sm:$0xff] %vm292, %v392
          %401 = vst.msk [vmem:[%s190 + $0x20] sm:$0xff] %vm292, %v393
          %402 = vst.msk [vmem:[%s190 + $0x28] sm:$0xff] %vm292, %v394
          %403 = vst.msk [vmem:[%s190 + $0x30] sm:$0xff] %vm292, %v395
          %404 = vst.msk [vmem:[%s190 + $0x38] sm:$0xff] %vm292, %v396
        $region36: #{attention_forward.5} parent=27 // pred_fallthru
          _
        %s405 = sand.u32 %s101, 1
        %s406 = scalar_lea.sflag [#allocation4], %s405
        %s407 = sand.u32 %s101, 1
        %s408 = smul.addr %s407, 64
        %s409 = scalar_lea.vmem [#allocation3], %s408
        // Predicated region
        $region37: #{attention_forward.5} parent=27 // pred_check
          %p410 = pneg %p111
        $region38: #{attention_forward.5} parent=27 // pred_check_branch
          %412 = sbr.rel (%p410) target = $region40
        $region39: #{attention_forward.5} parent=27 // pred_region
          %s413 = smul.u32 8, %s21
          %s415 = ssub.s32 1024, 1024
          %416 = vsyncadd %s406, %s415
          %s417 = sadd.s32 %s22, %s413
          %s418 = smul.addr %s417, 128
          %s419 = scalar_lea.hbm %s2, %s418
          %s420 = sshll.u32 %s409, 4
          %s421 = int_to_ptr.vmem [resolvable:$true] %s420
          %426 = dma.vmem_to_hbm [thread:$0]  %s421, 1024, %s419, %s406, 128, 128, 8
        $region40: #{attention_forward.5} parent=27 // pred_fallthru
          _
      $region28: #{attention_forward.5} parent=5 // pred_fallthru
        _
      %p427 = scmp.le.s32.totalorder 2, %s11
      // Predicated region
      $region41: #{attention_forward.5} parent=5 // pred_check
        %p428 = pneg %p427
      $region42: #{attention_forward.5} parent=5 // pred_check_branch
        %430 = sbr.rel (%p428) target = $region44
      $region43: #{attention_forward.5} parent=5 // pred_region
        %s431 = ssub.s32 %s11, 2
        // Predicated region
        $region45: #{attention_forward.5} parent=43 // pred_check
          %p432 = pneg %p117
        $region46: #{attention_forward.5} parent=43 // pred_check_branch
          %434 = sbr.rel (%p432) target = $region48
        $region47: #{attention_forward.5} parent=43 // pred_region
          %s435 = sand.u32 %s102, 1
          %s436 = scalar_lea.sflag [#allocation4], %s435
          %s437 = sand.u32 %s102, 1
          %s438 = smul.addr %s437, 64
          %s439 = scalar_lea.vmem [#allocation3], %s438
          %440 = dma.done %s436, 1024
        $region48: #{attention_forward.5} parent=43 // pred_fallthru
          _
      $region44: #{attention_forward.5} parent=5 // pred_fallthru
        _
    $region6: #{attention_forward.5} parent=1 // loop_footer
      %s15 = sadd.s32 1, %s11
    $region7: #{attention_forward.5} parent=1 // loop_footer_branch
      %10 = sbr.rel target = $region3
    $region8: #{attention_forward.5} parent=1 // loop_exit
      _
    %441 = vsyncpa [#allocation4], 1
    %s442 = scalar_lea.sflag [#allocation4], 1
    %443 = vsyncpa %s442, 1

// kernel: attention_forward.3
$region0: #{attention_forward.3}
  #allocation0 [shape = 'u32[]', space=smem, size = 0x4, offset = 0x4, fixed_abs, tag = 'smem constant byte address 0x4 - core index']
  #allocation1 [shape = 'u32[144,128]{1,0:T(1,128)}', space=vmem, size = 0x12000, scoped, tag = 'internal scratch']
  #allocation2 [shape = 'f32[64,64]{1,0:T(8,128)}', space=vmem, size = 0x8000, scoped, tag = 'scratch operand']
  #allocation3 [shape = 'f32[64,64]{1,0:T(8,128)}', space=vmem, size = 0x8000, scoped, tag = 'scratch operand']
  #allocation4 [shape = 'f32[64,64]{1,0:T(8,128)}', space=vmem, size = 0x8000, scoped, tag = 'scratch operand']
  %s0 = inlined_call_operand.vmem [shape: f32[128,64], index: 0, kind: input, shape index: {}]
  %s1 = inlined_call_operand.vmem [shape: bf16[64,64], index: 1, kind: input, shape index: {}]
  %s2 = inlined_call_operand.vmem [shape: bf16[64,64], index: 2, kind: input, shape index: {}]
  %s3 = inlined_call_operand.vmem [shape: bf16[64,64], index: 3, kind: input, shape index: {}]
  %s4 = inlined_call_operand.vmem [shape: bf16[128,64], index: 4, kind: output, shape index: {0}]
  %s5 = inlined_call_operand.vmem [shape: bf16[128,64], index: 5, kind: output, shape index: {1}]
  %s6 = inlined_call_operand.vmem [shape: bf16[128,64], index: 6, kind: output, shape index: {2}]
  %7 = xla_tuple %s4, %s5, %s6
  %s8 = sld [smem:[#allocation0]]
  $region73: #{attention_forward.3} parent=0
    _
  %s10 = ssub.s32 1, %s8
  %s11 = scalar_select 0, %s10, %s8
  loop: start=0, step=1, limit=4
  $region2: #{attention_forward.3} parent=0 // loop_pre_header
    _
  $region3: #{attention_forward.3} parent=0 // loop_header
    %s13 = sphi 0, %s17
    %p14 = scmp.ge.s32.totalorder %s13, 4
    %s20 = sphi 0, %s39
    %s21 = sphi 0, %s35
    %s22 = sphi 0, %s31
    %s23 = sphi 0, %s20
    %s24 = sphi 0, %s21
    %s25 = sphi 0, %s22
    %s26 = sphi 0, %s23
    %s27 = sphi 0, %s24
    %s28 = sphi 0, %s25
    %s44 = sphi 0, %s46
    %s47 = sphi 0, %s44
    %s48 = sphi 0, %s47
    %s64 = sphi 0, %s48
    %s72 = sphi 0, %s74
    %s75 = sphi 0, %s72
    %s76 = sphi 0, %s75
    %s92 = sphi 0, %s76
    %s100 = sphi 0, %s102
    %s103 = sphi 0, %s100
    %s104 = sphi 0, %s103
    %s120 = sphi 0, %s104
    %s128 = sphi 0, %s130
    %s131 = sphi 0, %s128
    %s132 = sphi 0, %s131
    %s148 = sphi 0, %s132
    %s156 = sphi 0, %s158
    %s159 = sphi 0, %s156
    %s160 = sphi 0, %s159
    %s176 = sphi 0, %s160
    %s184 = sphi 0, %s186
    %s187 = sphi 0, %s184
    %s188 = sphi 0, %s187
    %s204 = sphi 0, %s188
    %s212 = sphi 0, %s214
    %s215 = sphi 0, %s212
    %s216 = sphi 0, %s215
    %s232 = sphi 0, %s216
  $region4: #{attention_forward.3} parent=0 // loop_header_branch
    %16 = sbr.rel (%p14) target = $region8
  $region5: #{attention_forward.3} parent=0 // loop_body
    %s18 = ssub.s32 %s13, 1
    %s19 = ssub.s32 %s13, 2
    %s29 = sadd.s32 1, %s22
    %p30 = scmp.ge.s32.totalorder %s29, 1
    %s31 = scalar_select %p30, 0, %s29
    %s32 = sadd.s32 1, %s21
    %s33 = scalar_select %p30, %s32, %s21
    %p34 = scmp.ge.s32.totalorder %s33, 1
    %s35 = scalar_select %p34, 0, %s33
    %s36 = sadd.s32 1, %s20
    %s37 = scalar_select %p34, %s36, %s20
    %p38 = scmp.ge.s32.totalorder %s37, 2
    %s39 = scalar_select %p38, 0, %s37
    %s40 = ssub.s32 %s20, %s39
    %s41 = ssub.s32 %s22, %s31
    %s42 = sor.u32 %s40, %s41
    %p43 = scmp.eq.s32.totalorder %s42, 0
    %s45 = sadd.s32 %s44, 1
    %s46 = scalar_select %p43, %s44, %s45
    %p49 = pneg %p43
    %p50 = scmp.eq.s32.totalorder %s13, 1
    %p51 = por %p49, %p50
    %p52 = scmp.ne.s32.totalorder %s44, %s47
    %p53 = scmp.eq.s32.totalorder %s13, 0
    %p54 = por %p52, %p53
    %p55 = scmp.ne.s32.totalorder %s44, %s47
    %p56 = scmp.eq.s32.totalorder %s18, 1
    %p57 = por %p55, %p56
    %p58 = scmp.ne.s32.totalorder %s47, %s48
    %p59 = scmp.eq.s32.totalorder %s18, 0
    %p60 = por %p58, %p59
    %p61 = scmp.ne.s32.totalorder %s47, %s48
    %p62 = scmp.eq.s32.totalorder %s19, 1
    %p63 = por %p61, %p62
    %p65 = scmp.ne.s32.totalorder %s48, %s64
    %p66 = scmp.eq.s32.totalorder %s19, 0
    %p67 = por %p65, %p66
    %s68 = ssub.s32 %s22, %s31
    %s69 = ssub.s32 %s21, %s35
    %s70 = sor.u32 %s68, %s69
    %p71 = scmp.eq.s32.totalorder %s70, 0
    %s73 = sadd.s32 %s72, 1
    %s74 = scalar_select %p71, %s72, %s73
    %p77 = pneg %p71
    %p78 = scmp.eq.s32.totalorder %s13, 1
    %p79 = por %p77, %p78
    %p80 = scmp.ne.s32.totalorder %s72, %s75
    %p81 = scmp.eq.s32.totalorder %s13, 0
    %p82 = por %p80, %p81
    %p83 = scmp.ne.s32.totalorder %s72, %s75
    %p84 = scmp.eq.s32.totalorder %s18, 1
    %p85 = por %p83, %p84
    %p86 = scmp.ne.s32.totalorder %s75, %s76
    %p87 = scmp.eq.s32.totalorder %s18, 0
    %p88 = por %p86, %p87
    %p89 = scmp.ne.s32.totalorder %s75, %s76
    %p90 = scmp.eq.s32.totalorder %s19, 1
    %p91 = por %p89, %p90
    %p93 = scmp.ne.s32.totalorder %s76, %s92
    %p94 = scmp.eq.s32.totalorder %s19, 0
    %p95 = por %p93, %p94
    %s96 = ssub.s32 %s22, %s31
    %s97 = ssub.s32 %s21, %s35
    %s98 = sor.u32 %s96, %s97
    %p99 = scmp.eq.s32.totalorder %s98, 0
    %s101 = sadd.s32 %s100, 1
    %s102 = scalar_select %p99, %s100, %s101
    %p105 = pneg %p99
    %p106 = scmp.eq.s32.totalorder %s13, 1
    %p107 = por %p105, %p106
    %p108 = scmp.ne.s32.totalorder %s100, %s103
    %p109 = scmp.eq.s32.totalorder %s13, 0
    %p110 = por %p108, %p109
    %p111 = scmp.ne.s32.totalorder %s100, %s103
    %p112 = scmp.eq.s32.totalorder %s18, 1
    %p113 = por %p111, %p112
    %p114 = scmp.ne.s32.totalorder %s103, %s104
    %p115 = scmp.eq.s32.totalorder %s18, 0
    %p116 = por %p114, %p115
    %p117 = scmp.ne.s32.totalorder %s103, %s104
    %p118 = scmp.eq.s32.totalorder %s19, 1
    %p119 = por %p117, %p118
    %p121 = scmp.ne.s32.totalorder %s104, %s120
    %p122 = scmp.eq.s32.totalorder %s19, 0
    %p123 = por %p121, %p122
    %s124 = ssub.s32 %s22, %s31
    %s125 = ssub.s32 %s21, %s35
    %s126 = sor.u32 %s124, %s125
    %p127 = scmp.eq.s32.totalorder %s126, 0
    %s129 = sadd.s32 %s128, 1
    %s130 = scalar_select %p127, %s128, %s129
    %p133 = pneg %p127
    %p134 = scmp.eq.s32.totalorder %s13, 1
    %p135 = por %p133, %p134
    %p136 = scmp.ne.s32.totalorder %s128, %s131
    %p137 = scmp.eq.s32.totalorder %s13, 0
    %p138 = por %p136, %p137
    %p139 = scmp.ne.s32.totalorder %s128, %s131
    %p140 = scmp.eq.s32.totalorder %s18, 1
    %p141 = por %p139, %p140
    %p142 = scmp.ne.s32.totalorder %s131, %s132
    %p143 = scmp.eq.s32.totalorder %s18, 0
    %p144 = por %p142, %p143
    %p145 = scmp.ne.s32.totalorder %s131, %s132
    %p146 = scmp.eq.s32.totalorder %s19, 1
    %p147 = por %p145, %p146
    %p149 = scmp.ne.s32.totalorder %s132, %s148
    %p150 = scmp.eq.s32.totalorder %s19, 0
    %p151 = por %p149, %p150
    %s152 = ssub.s32 %s20, %s39
    %s153 = ssub.s32 %s21, %s35
    %s154 = sor.u32 %s152, %s153
    %p155 = scmp.eq.s32.totalorder %s154, 0
    %s157 = sadd.s32 %s156, 1
    %s158 = scalar_select %p155, %s156, %s157
    %p161 = pneg %p155
    %p162 = scmp.eq.s32.totalorder %s13, 1
    %p163 = por %p161, %p162
    %p164 = scmp.ne.s32.totalorder %s156, %s159
    %p165 = scmp.eq.s32.totalorder %s13, 0
    %p166 = por %p164, %p165
    %p167 = scmp.ne.s32.totalorder %s156, %s159
    %p168 = scmp.eq.s32.totalorder %s18, 1
    %p169 = por %p167, %p168
    %p170 = scmp.ne.s32.totalorder %s159, %s160
    %p171 = scmp.eq.s32.totalorder %s18, 0
    %p172 = por %p170, %p171
    %p173 = scmp.ne.s32.totalorder %s159, %s160
    %p174 = scmp.eq.s32.totalorder %s19, 1
    %p175 = por %p173, %p174
    %p177 = scmp.ne.s32.totalorder %s160, %s176
    %p178 = scmp.eq.s32.totalorder %s19, 0
    %p179 = por %p177, %p178
    %s180 = ssub.s32 %s20, %s39
    %s181 = ssub.s32 %s21, %s35
    %s182 = sor.u32 %s180, %s181
    %p183 = scmp.eq.s32.totalorder %s182, 0
    %s185 = sadd.s32 %s184, 1
    %s186 = scalar_select %p183, %s184, %s185
    %p189 = pneg %p183
    %p190 = scmp.eq.s32.totalorder %s13, 1
    %p191 = por %p189, %p190
    %p192 = scmp.ne.s32.totalorder %s184, %s187
    %p193 = scmp.eq.s32.totalorder %s13, 0
    %p194 = por %p192, %p193
    %p195 = scmp.ne.s32.totalorder %s184, %s187
    %p196 = scmp.eq.s32.totalorder %s18, 1
    %p197 = por %p195, %p196
    %p198 = scmp.ne.s32.totalorder %s187, %s188
    %p199 = scmp.eq.s32.totalorder %s18, 0
    %p200 = por %p198, %p199
    %p201 = scmp.ne.s32.totalorder %s187, %s188
    %p202 = scmp.eq.s32.totalorder %s19, 1
    %p203 = por %p201, %p202
    %p205 = scmp.ne.s32.totalorder %s188, %s204
    %p206 = scmp.eq.s32.totalorder %s19, 0
    %p207 = por %p205, %p206
    %s208 = ssub.s32 %s20, %s39
    %s209 = ssub.s32 %s21, %s35
    %s210 = sor.u32 %s208, %s209
    %p211 = scmp.eq.s32.totalorder %s210, 0
    %s213 = sadd.s32 %s212, 1
    %s214 = scalar_select %p211, %s212, %s213
    %p217 = pneg %p211
    %p218 = scmp.eq.s32.totalorder %s13, 1
    %p219 = por %p217, %p218
    %p220 = scmp.ne.s32.totalorder %s212, %s215
    %p221 = scmp.eq.s32.totalorder %s13, 0
    %p222 = por %p220, %p221
    %p223 = scmp.ne.s32.totalorder %s212, %s215
    %p224 = scmp.eq.s32.totalorder %s18, 1
    %p225 = por %p223, %p224
    %p226 = scmp.ne.s32.totalorder %s215, %s216
    %p227 = scmp.eq.s32.totalorder %s18, 0
    %p228 = por %p226, %p227
    %p229 = scmp.ne.s32.totalorder %s215, %s216
    %p230 = scmp.eq.s32.totalorder %s19, 1
    %p231 = por %p229, %p230
    %p233 = scmp.ne.s32.totalorder %s216, %s232
    %p234 = scmp.eq.s32.totalorder %s19, 0
    %p235 = por %p233, %p234
    %p236 = scmp.le.s32.totalorder 1, %s13
    %p237 = scmp.lt.s32.totalorder %s13, 3
    %p238 = pnand %p236, %p237
    %p239 = pneg %p238
    // Predicated region
    $region9: #{attention_forward.3} parent=5 // pred_check
      _
    $region10: #{attention_forward.3} parent=5 // pred_check_branch
      %241 = sbr.rel (%p238) target = $region12
    $region11: #{attention_forward.3} parent=5 // pred_region
      %s242 = ssub.s32 %s13, 1
      // Predicated region
      $region13: #{attention_forward.3} parent=11 // pred_check
        %p243 = pneg %p88
      $region14: #{attention_forward.3} parent=11 // pred_check_branch
        %245 = sbr.rel (%p243) target = $region16
      $region15: #{attention_forward.3} parent=11 // pred_region
        %s246 = smul.u32 8, %s25
        %p247 = scmp.lt.s32.totalorder %s246, 7
        %s248 = scalar_select %p247, %s246, 7
        %p249 = scmp.lt.s32.totalorder %s24, 0
        %s250 = scalar_select %p249, %s24, 0
        %s251 = sadd.s32 %s250, %s248
        %s252 = smul.addr %s251, 4
        %s253 = scalar_lea.vmem %s1, %s252
        %s254 = smul.u32 8, %s25
      $region16: #{attention_forward.3} parent=11 // pred_fallthru
        _
      // Predicated region
      $region17: #{attention_forward.3} parent=11 // pred_check
        %p255 = pneg %p116
      $region18: #{attention_forward.3} parent=11 // pred_check_branch
        %257 = sbr.rel (%p255) target = $region20
      $region19: #{attention_forward.3} parent=11 // pred_region
        %s258 = smul.u32 8, %s25
        %p259 = scmp.lt.s32.totalorder %s258, 7
        %s260 = scalar_select %p259, %s258, 7
        %p261 = scmp.lt.s32.totalorder %s24, 0
        %s262 = scalar_select %p261, %s24, 0
        %s263 = sadd.s32 %s262, %s260
        %s264 = smul.addr %s263, 4
        %s265 = scalar_lea.vmem %s2, %s264
        %s266 = smul.u32 8, %s25
      $region20: #{attention_forward.3} parent=11 // pred_fallthru
        _
      // Predicated region
      $region21: #{attention_forward.3} parent=11 // pred_check
        %p267 = pneg %p144
      $region22: #{attention_forward.3} parent=11 // pred_check_branch
        %269 = sbr.rel (%p267) target = $region24
      $region23: #{attention_forward.3} parent=11 // pred_region
        %s270 = smul.u32 8, %s25
        %p271 = scmp.lt.s32.totalorder %s270, 7
        %s272 = scalar_select %p271, %s270, 7
        %p273 = scmp.lt.s32.totalorder %s24, 0
        %s274 = scalar_select %p273, %s24, 0
        %s275 = sadd.s32 %s274, %s272
        %s276 = smul.addr %s275, 4
        %s277 = scalar_lea.vmem %s3, %s276
        %s278 = smul.u32 8, %s25
      $region24: #{attention_forward.3} parent=11 // pred_fallthru
        _
    $region12: #{attention_forward.3} parent=5 // pred_fallthru
      _
    %p279 = scmp.lt.s32.totalorder %s13, 2
    // Predicated region
    $region25: #{attention_forward.3} parent=5 // pred_check
      %p280 = pneg %p279
    $region26: #{attention_forward.3} parent=5 // pred_check_branch
      %282 = sbr.rel (%p280) target = $region28
    $region27: #{attention_forward.3} parent=5 // pred_region
      // Predicated region
      $region29: #{attention_forward.3} parent=27 // pred_check
        %p283 = pneg %p54
      $region30: #{attention_forward.3} parent=27 // pred_check_branch
        %285 = sbr.rel (%p283) target = $region32
      $region31: #{attention_forward.3} parent=27 // pred_region
        %s286 = smul.u32 8, %s20
        %p287 = scmp.lt.s32.totalorder %s286, 15
        %s288 = scalar_select %p287, %s286, 15
        %p289 = scmp.lt.s32.totalorder %s22, 0
        %s290 = scalar_select %p289, %s22, 0
        %s291 = sadd.s32 %s290, %s288
        %s292 = smul.addr %s291, 8
        %s293 = scalar_lea.vmem %s0, %s292
        %s294 = smul.u32 8, %s20
      $region32: #{attention_forward.3} parent=27 // pred_fallthru
        _
    $region28: #{attention_forward.3} parent=5 // pred_fallthru
      _
    %p295 = scmp.le.s32.totalorder 1, %s13
    %p296 = scmp.lt.s32.totalorder %s13, 3
    %p297 = pnand %p295, %p296
    %p298 = pneg %p297
    // Predicated region
    $region33: #{attention_forward.3} parent=5 // pred_check
      _
    $region34: #{attention_forward.3} parent=5 // pred_check_branch
      %300 = sbr.rel (%p297) target = $region36
    $region35: #{attention_forward.3} parent=5 // pred_region
      %s301 = ssub.s32 %s13, 1
      %s302 = smul.u32 8, %s23
      %p303 = scmp.lt.s32.totalorder %s302, 15
      %s304 = scalar_select %p303, %s302, 15
      %p305 = scmp.lt.s32.totalorder %s25, 0
      %s306 = scalar_select %p305, %s25, 0
      %s307 = sadd.s32 %s306, %s304
      %s308 = smul.addr %s307, 8
      %s309 = scalar_lea.vmem %s0, %s308
      %p310 = pneg %p60
      %p311 = pneg %p57
      %s312 = smul.u32 8, %s25
      %p313 = scmp.lt.s32.totalorder %s312, 7
      %s314 = scalar_select %p313, %s312, 7
      %p315 = scmp.lt.s32.totalorder %s24, 0
      %s316 = scalar_select %p315, %s24, 0
      %s317 = sadd.s32 %s316, %s314
      %s318 = smul.addr %s317, 4
      %s319 = scalar_lea.vmem %s1, %s318
      %p320 = pneg %p88
      %p321 = pneg %p85
      %s322 = smul.u32 8, %s25
      %p323 = scmp.lt.s32.totalorder %s322, 7
      %s324 = scalar_select %p323, %s322, 7
      %p325 = scmp.lt.s32.totalorder %s24, 0
      %s326 = scalar_select %p325, %s24, 0
      %s327 = sadd.s32 %s326, %s324
      %s328 = smul.addr %s327, 4
      %s329 = scalar_lea.vmem %s2, %s328
      %p330 = pneg %p116
      %p331 = pneg %p113
      %s332 = smul.u32 8, %s25
      %p333 = scmp.lt.s32.totalorder %s332, 7
      %s334 = scalar_select %p333, %s332, 7
      %p335 = scmp.lt.s32.totalorder %s24, 0
      %s336 = scalar_select %p335, %s24, 0
      %s337 = sadd.s32 %s336, %s334
      %s338 = smul.addr %s337, 4
      %s339 = scalar_lea.vmem %s3, %s338
      %p340 = pneg %p144
      %p341 = pneg %p141
      %p342 = pneg %p172
      %p343 = pneg %p169
      %s344 = smul.u32 8, %s23
      %p345 = scmp.lt.s32.totalorder %s344, 15
      %s346 = scalar_select %p345, %s344, 15
      %p347 = scmp.lt.s32.totalorder %s24, 0
      %s348 = scalar_select %p347, %s24, 0
      %s349 = sadd.s32 %s348, %s346
      %s350 = smul.addr %s349, 4
      %s351 = scalar_lea.vmem %s4, %s350
      %p352 = pneg %p200
      %p353 = pneg %p197
      %s354 = smul.u32 8, %s23
      %p355 = scmp.lt.s32.totalorder %s354, 15
      %s356 = scalar_select %p355, %s354, 15
      %p357 = scmp.lt.s32.totalorder %s24, 0
      %s358 = scalar_select %p357, %s24, 0
      %s359 = sadd.s32 %s358, %s356
      %s360 = smul.addr %s359, 4
      %s361 = scalar_lea.vmem %s5, %s360
      %p362 = pneg %p228
      %p363 = pneg %p225
      %s364 = smul.u32 8, %s23
      %p365 = scmp.lt.s32.totalorder %s364, 15
      %s366 = scalar_select %p365, %s364, 15
      %p367 = scmp.lt.s32.totalorder %s24, 0
      %s368 = scalar_select %p367, %s24, 0
      %s369 = sadd.s32 %s368, %s366
      %s370 = smul.addr %s369, 4
      %s371 = scalar_lea.vmem %s6, %s370
      %s372 = smul.u32 8, %s23
      %p373 = scmp.lt.s32.totalorder %s372, 15
      %s374 = scalar_select %p373, %s372, 15
      %p375 = scmp.lt.s32.totalorder %s25, 0
      %s376 = scalar_select %p375, %s25, 0
      %s377 = sadd.s32 %s376, %s374
      %s378 = smul.addr %s377, 8
      %s379 = scalar_lea.vmem %s0, %s378
      %s380 = smul.u32 8, %s23
      %s381 = smul.u32 8, %s25
      %p382 = scmp.lt.s32.totalorder %s381, 7
      %s383 = scalar_select %p382, %s381, 7
      %p384 = scmp.lt.s32.totalorder %s24, 0
      %s385 = scalar_select %p384, %s24, 0
      %s386 = sadd.s32 %s385, %s383
      %s387 = smul.addr %s386, 4
      %s388 = scalar_lea.vmem %s1, %s387
      %s389 = smul.u32 8, %s25
      %s390 = smul.u32 8, %s25
      %p391 = scmp.lt.s32.totalorder %s390, 7
      %s392 = scalar_select %p391, %s390, 7
      %p393 = scmp.lt.s32.totalorder %s24, 0
      %s394 = scalar_select %p393, %s24, 0
      %s395 = sadd.s32 %s394, %s392
      %s396 = smul.addr %s395, 4
      %s397 = scalar_lea.vmem %s2, %s396
      %s398 = smul.u32 8, %s25
      %s399 = smul.u32 8, %s25
      %p400 = scmp.lt.s32.totalorder %s399, 7
      %s401 = scalar_select %p400, %s399, 7
      %p402 = scmp.lt.s32.totalorder %s24, 0
      %s403 = scalar_select %p402, %s24, 0
      %s404 = sadd.s32 %s403, %s401
      %s405 = smul.addr %s404, 4
      %s406 = scalar_lea.vmem %s3, %s405
      %s407 = smul.u32 8, %s25
      %s408 = smul.u32 8, %s23
      %p409 = scmp.lt.s32.totalorder %s408, 15
      %s410 = scalar_select %p409, %s408, 15
      %p411 = scmp.lt.s32.totalorder %s24, 0
      %s412 = scalar_select %p411, %s24, 0
      %s413 = sadd.s32 %s412, %s410
      %s414 = smul.addr %s413, 4
      %s415 = scalar_lea.vmem %s4, %s414
      %s416 = smul.u32 8, %s23
      %s417 = smul.u32 8, %s23
      %p418 = scmp.lt.s32.totalorder %s417, 15
      %s419 = scalar_select %p418, %s417, 15
      %p420 = scmp.lt.s32.totalorder %s24, 0
      %s421 = scalar_select %p420, %s24, 0
      %s422 = sadd.s32 %s421, %s419
      %s423 = smul.addr %s422, 4
      %s424 = scalar_lea.vmem %s5, %s423
      %s425 = smul.u32 8, %s23
      %s426 = smul.u32 8, %s23
      %p427 = scmp.lt.s32.totalorder %s426, 15
      %s428 = scalar_select %p427, %s426, 15
      %p429 = scmp.lt.s32.totalorder %s24, 0
      %s430 = scalar_select %p429, %s24, 0
      %s431 = sadd.s32 %s430, %s428
      %s432 = smul.addr %s431, 4
      %s433 = scalar_lea.vmem %s6, %s432
      %s434 = smul.u32 8, %s23
      %p436 = scmp.eq.s32.totalorder %s25, 0
      // Predicated region
      $region37: #{attention_forward.3} parent=35 // pred_check
        %p437 = pneg %p436
      $region38: #{attention_forward.3} parent=35 // pred_check_branch
        %439 = sbr.rel (%p437) target = $region40
      $region39: #{attention_forward.3} parent=35 // pred_region
        %vm440 = vcmask 523264
        %441 = vst.msk [vmem:[#allocation2] sm:$0xff] %vm440, 0.0
        %442 = vst.msk [vmem:[#allocation2 + $0x8] sm:$0xff] %vm440, 0.0
        %443 = vst.msk [vmem:[#allocation2 + $0x10] sm:$0xff] %vm440, 0.0
        %444 = vst.msk [vmem:[#allocation2 + $0x18] sm:$0xff] %vm440, 0.0
        %445 = vst.msk [vmem:[#allocation2 + $0x20] sm:$0xff] %vm440, 0.0
        %446 = vst.msk [vmem:[#allocation2 + $0x28] sm:$0xff] %vm440, 0.0
        %447 = vst.msk [vmem:[#allocation2 + $0x30] sm:$0xff] %vm440, 0.0
        %448 = vst.msk [vmem:[#allocation2 + $0x38] sm:$0xff] %vm440, 0.0
        %449 = vst.msk [vmem:[#allocation3] sm:$0xff] %vm440, 0.0
        %450 = vst.msk [vmem:[#allocation3 + $0x8] sm:$0xff] %vm440, 0.0
        %451 = vst.msk [vmem:[#allocation3 + $0x10] sm:$0xff] %vm440, 0.0
        %452 = vst.msk [vmem:[#allocation3 + $0x18] sm:$0xff] %vm440, 0.0
        %453 = vst.msk [vmem:[#allocation3 + $0x20] sm:$0xff] %vm440, 0.0
        %454 = vst.msk [vmem:[#allocation3 + $0x28] sm:$0xff] %vm440, 0.0
        %455 = vst.msk [vmem:[#allocation3 + $0x30] sm:$0xff] %vm440, 0.0
        %456 = vst.msk [vmem:[#allocation3 + $0x38] sm:$0xff] %vm440, 0.0
        %457 = vst.msk [vmem:[#allocation4] sm:$0xff] %vm440, 0.0
        %458 = vst.msk [vmem:[#allocation4 + $0x8] sm:$0xff] %vm440, 0.0
        %459 = vst.msk [vmem:[#allocation4 + $0x10] sm:$0xff] %vm440, 0.0
        %460 = vst.msk [vmem:[#allocation4 + $0x18] sm:$0xff] %vm440, 0.0
        %461 = vst.msk [vmem:[#allocation4 + $0x20] sm:$0xff] %vm440, 0.0
        %462 = vst.msk [vmem:[#allocation4 + $0x28] sm:$0xff] %vm440, 0.0
        %463 = vst.msk [vmem:[#allocation4 + $0x30] sm:$0xff] %vm440, 0.0
        %464 = vst.msk [vmem:[#allocation4 + $0x38] sm:$0xff] %vm440, 0.0
      $region40: #{attention_forward.3} parent=35 // pred_fallthru
        _
      %v465 = vld [vmem:[%s379] sm:$0xff]
      %v466 = vld [vmem:[%s379 + $0x8] sm:$0xff]
      %v467 = vld [vmem:[%s379 + $0x10] sm:$0xff]
      %v468 = vld [vmem:[%s379 + $0x18] sm:$0xff]
      %v469 = vld [vmem:[%s379 + $0x20] sm:$0xff]
      %v470 = vld [vmem:[%s379 + $0x28] sm:$0xff]
      %v471 = vld [vmem:[%s379 + $0x30] sm:$0xff]
      %v472 = vld [vmem:[%s379 + $0x38] sm:$0xff]
      %v473 = vpack.c.bf16 %v466, %v465
      %v474 = vpack.c.bf16 %v468, %v467
      %v475 = vpack.c.bf16 %v470, %v469
      %v476 = vpack.c.bf16 %v472, %v471
      %v477 = vld [vmem:[#allocation2] sm:$0xff]
      %v478 = vld [vmem:[#allocation2 + $0x8] sm:$0xff]
      %v479 = vld [vmem:[#allocation2 + $0x10] sm:$0xff]
      %v480 = vld [vmem:[#allocation2 + $0x18] sm:$0xff]
      %v481 = vld [vmem:[#allocation2 + $0x20] sm:$0xff]
      %v482 = vld [vmem:[#allocation2 + $0x28] sm:$0xff]
      %v483 = vld [vmem:[#allocation2 + $0x30] sm:$0xff]
      %v484 = vld [vmem:[#allocation2 + $0x38] sm:$0xff]
      %v485 = vld [vmem:[%s388] sm:$0xf]
      %v486 = vld [vmem:[%s388 + $0x4] sm:$0xf]
      %v487 = vld [vmem:[%s388 + $0x8] sm:$0xf]
      %v488 = vld [vmem:[%s388 + $0xc] sm:$0xf]
      %v489 = vld [vmem:[%s388 + $0x10] sm:$0xf]
      %v490 = vld [vmem:[%s388 + $0x14] sm:$0xf]
      %v491 = vld [vmem:[%s388 + $0x18] sm:$0xf]
      %v492 = vld [vmem:[%s388 + $0x1c] sm:$0xf]
      %v501 = vunpack.c.l.b16 %v485
      %v502 = vunpack.c.l.b16 %v486
      %v503 = vunpack.c.l.b16 %v487
      %v504 = vunpack.c.l.b16 %v488
      %v505 = vunpack.c.l.b16 %v489
      %v506 = vunpack.c.l.b16 %v490
      %v507 = vunpack.c.l.b16 %v491
      %v508 = vunpack.c.l.b16 %v492
      %v509 = vpack.c.b16 %v502, %v501
      %v510 = vpack.c.b16 %v504, %v503
      %v511 = vpack.c.b16 %v506, %v505
      %v512 = vpack.c.b16 %v508, %v507
      %vm517 = vcmask 523264
      %v519 = vsel %vm517, %v473, 0
      %v522 = vsel %vm517, %v474, 0
      %v525 = vsel %vm517, %v475, 0
      %v528 = vsel %vm517, %v476, 0
      %530 = vmatprep.subr.bf16.mxu0 0
      %531 = vmatpush1.bf16.msra.mxu0 0
      %532 = vmatprep.subr.bf16.mxu0 0
      %533 = vmatpush1.bf16.msra.mxu0 0
      %534 = vmatprep.subr.bf16.mxu0 0
      %535 = vmatpush1.bf16.msra.mxu0 0
      %536 = vmatprep.subr.bf16.mxu0 0
      %537 = vmatpush1.bf16.msra.mxu0 0
      %538 = vmatprep.subr.bf16.mxu0 0
      %539 = vmatpush1.bf16.msra.mxu0 %v512
      %540 = vmatprep.subr.bf16.mxu0 0
      %541 = vmatpush1.bf16.msra.mxu0 %v511
      %542 = vmatprep.subr.bf16.mxu0 0
      %543 = vmatpush1.bf16.msra.mxu0 %v510
      %544 = vmatprep.subr.bf16.mxu0 0
      %545 = vmatpush1.bf16.msra.mxu0 %v509
      %546 = vmatprep.subr.bf16.mxu0 0
      %547 = vmatpush2.bf16.msra.mxu0 0
      %548 = vmatprep.subr.bf16.mxu0 0
      %549 = vmatpush2.bf16.msra.mxu0 0
      %550 = vmatprep.subr.bf16.mxu0 0
      %551 = vmatpush2.bf16.msra.mxu0 0
      %552 = vmatprep.subr.bf16.mxu0 0
      %553 = vmatpush2.bf16.msra.mxu0 0
      %554 = vmatprep.subr.bf16.mxu0 0
      %555 = vmatpush2.bf16.msra.mxu0 0
      %556 = vmatprep.subr.bf16.mxu0 0
      %557 = vmatpush2.bf16.msra.mxu0 0
      %558 = vmatprep.subr.bf16.mxu0 0
      %559 = vmatpush2.bf16.msra.mxu0 0
      %560 = vmatprep.subr.bf16.mxu0 0
      %561 = vmatpush2.bf16.msra.mxu0 0
      %562 = vmatprep.mubr.bf16.mxu0 0
      %563 = vmatmul.mubr.bf16.gmra.mxu0 %v519
      %v564 = vpop.f32.mrf.mxu0
      %v565 = vadd.f32 0.0, %v564
      %v566 = vpop.f32.mrf.mxu0
      %v567 = vpop.f32.mrf.mxu0
      %v568 = vadd.f32 0.0, %v567
      %v569 = vpop.f32.mrf.mxu0
      %570 = vmatprep.mubr.bf16.mxu0 0
      %571 = vmatmul.mubr.bf16.gmra.mxu0 %v522
      %v572 = vpop.f32.mrf.mxu0
      %v573 = vadd.f32 0.0, %v572
      %v574 = vpop.f32.mrf.mxu0
      %v575 = vpop.f32.mrf.mxu0
      %v576 = vadd.f32 0.0, %v575
      %v577 = vpop.f32.mrf.mxu0
      %578 = vmatprep.mubr.bf16.mxu0 0
      %579 = vmatmul.mubr.bf16.gmra.mxu0 %v525
      %v580 = vpop.f32.mrf.mxu0
      %v581 = vadd.f32 0.0, %v580
      %v582 = vpop.f32.mrf.mxu0
      %v583 = vpop.f32.mrf.mxu0
      %v584 = vadd.f32 0.0, %v583
      %v585 = vpop.f32.mrf.mxu0
      %586 = vmatprep.mubr.bf16.mxu0 0
      %587 = vmatmul.mubr.bf16.gmra.mxu0 %v528
      %v588 = vpop.f32.mrf.mxu0
      %v589 = vadd.f32 0.0, %v588
      %v590 = vpop.f32.mrf.mxu0
      %v591 = vpop.f32.mrf.mxu0
      %v592 = vadd.f32 0.0, %v591
      %v593 = vpop.f32.mrf.mxu0
      %594 = vdwg.mxu0
      %v595 = vadd.f32 %v477, %v565
      %v596 = vadd.f32 %v478, %v568
      %v597 = vadd.f32 %v479, %v573
      %v598 = vadd.f32 %v480, %v576
      %v599 = vadd.f32 %v481, %v581
      %v600 = vadd.f32 %v482, %v584
      %v601 = vadd.f32 %v483, %v589
      %v602 = vadd.f32 %v484, %v592
      %603 = vst.msk [vmem:[#allocation2] sm:$0xff] %vm517, %v595
      %604 = vst.msk [vmem:[#allocation2 + $0x8] sm:$0xff] %vm517, %v596
      %605 = vst.msk [vmem:[#allocation2 + $0x10] sm:$0xff] %vm517, %v597
      %606 = vst.msk [vmem:[#allocation2 + $0x18] sm:$0xff] %vm517, %v598
      %607 = vst.msk [vmem:[#allocation2 + $0x20] sm:$0xff] %vm517, %v599
      %608 = vst.msk [vmem:[#allocation2 + $0x28] sm:$0xff] %vm517, %v600
      %609 = vst.msk [vmem:[#allocation2 + $0x30] sm:$0xff] %vm517, %v601
      %610 = vst.msk [vmem:[#allocation2 + $0x38] sm:$0xff] %vm517, %v602
      %v611 = vld [vmem:[#allocation3] sm:$0xff]
      %v612 = vld [vmem:[#allocation3 + $0x8] sm:$0xff]
      %v613 = vld [vmem:[#allocation3 + $0x10] sm:$0xff]
      %v614 = vld [vmem:[#allocation3 + $0x18] sm:$0xff]
      %v615 = vld [vmem:[#allocation3 + $0x20] sm:$0xff]
      %v616 = vld [vmem:[#allocation3 + $0x28] sm:$0xff]
      %v617 = vld [vmem:[#allocation3 + $0x30] sm:$0xff]
      %v618 = vld [vmem:[#allocation3 + $0x38] sm:$0xff]
      %v619 = vld [vmem:[%s397] sm:$0xf]
      %v620 = vld [vmem:[%s397 + $0x4] sm:$0xf]
      %v621 = vld [vmem:[%s397 + $0x8] sm:$0xf]
      %v622 = vld [vmem:[%s397 + $0xc] sm:$0xf]
      %v623 = vld [vmem:[%s397 + $0x10] sm:$0xf]
      %v624 = vld [vmem:[%s397 + $0x14] sm:$0xf]
      %v625 = vld [vmem:[%s397 + $0x18] sm:$0xf]
      %v626 = vld [vmem:[%s397 + $0x1c] sm:$0xf]
      %v635 = vunpack.c.l.b16 %v619
      %v636 = vunpack.c.l.b16 %v620
      %v637 = vunpack.c.l.b16 %v621
      %v638 = vunpack.c.l.b16 %v622
      %v639 = vunpack.c.l.b16 %v623
      %v640 = vunpack.c.l.b16 %v624
      %v641 = vunpack.c.l.b16 %v625
      %v642 = vunpack.c.l.b16 %v626
      %v643 = vpack.c.b16 %v636, %v635
      %v644 = vpack.c.b16 %v638, %v637
      %v645 = vpack.c.b16 %v640, %v639
      %v646 = vpack.c.b16 %v642, %v641
      %651 = vmatprep.subr.bf16.mxu0 0
      %652 = vmatpush1.bf16.msra.mxu0 0
      %653 = vmatprep.subr.bf16.mxu0 0
      %654 = vmatpush1.bf16.msra.mxu0 0
      %655 = vmatprep.subr.bf16.mxu0 0
      %656 = vmatpush1.bf16.msra.mxu0 0
      %657 = vmatprep.subr.bf16.mxu0 0
      %658 = vmatpush1.bf16.msra.mxu0 0
      %659 = vmatprep.subr.bf16.mxu0 0
      %660 = vmatpush1.bf16.msra.mxu0 %v646
      %661 = vmatprep.subr.bf16.mxu0 0
      %662 = vmatpush1.bf16.msra.mxu0 %v645
      %663 = vmatprep.subr.bf16.mxu0 0
      %664 = vmatpush1.bf16.msra.mxu0 %v644
      %665 = vmatprep.subr.bf16.mxu0 0
      %666 = vmatpush1.bf16.msra.mxu0 %v643
      %667 = vmatprep.subr.bf16.mxu0 0
      %668 = vmatpush2.bf16.msra.mxu0 0
      %669 = vmatprep.subr.bf16.mxu0 0
      %670 = vmatpush2.bf16.msra.mxu0 0
      %671 = vmatprep.subr.bf16.mxu0 0
      %672 = vmatpush2.bf16.msra.mxu0 0
      %673 = vmatprep.subr.bf16.mxu0 0
      %674 = vmatpush2.bf16.msra.mxu0 0
      %675 = vmatprep.subr.bf16.mxu0 0
      %676 = vmatpush2.bf16.msra.mxu0 0
      %677 = vmatprep.subr.bf16.mxu0 0
      %678 = vmatpush2.bf16.msra.mxu0 0
      %679 = vmatprep.subr.bf16.mxu0 0
      %680 = vmatpush2.bf16.msra.mxu0 0
      %681 = vmatprep.subr.bf16.mxu0 0
      %682 = vmatpush2.bf16.msra.mxu0 0
      %683 = vmatprep.mubr.bf16.mxu0 0
      %684 = vmatmul.mubr.bf16.gmra.mxu0 %v519
      %v685 = vpop.f32.mrf.mxu0
      %v686 = vadd.f32 0.0, %v685
      %v687 = vpop.f32.mrf.mxu0
      %v688 = vpop.f32.mrf.mxu0
      %v689 = vadd.f32 0.0, %v688
      %v690 = vpop.f32.mrf.mxu0
      %691 = vmatprep.mubr.bf16.mxu0 0
      %692 = vmatmul.mubr.bf16.gmra.mxu0 %v522
      %v693 = vpop.f32.mrf.mxu0
      %v694 = vadd.f32 0.0, %v693
      %v695 = vpop.f32.mrf.mxu0
      %v696 = vpop.f32.mrf.mxu0
      %v697 = vadd.f32 0.0, %v696
      %v698 = vpop.f32.mrf.mxu0
      %699 = vmatprep.mubr.bf16.mxu0 0
      %700 = vmatmul.mubr.bf16.gmra.mxu0 %v525
      %v701 = vpop.f32.mrf.mxu0
      %v702 = vadd.f32 0.0, %v701
      %v703 = vpop.f32.mrf.mxu0
      %v704 = vpop.f32.mrf.mxu0
      %v705 = vadd.f32 0.0, %v704
      %v706 = vpop.f32.mrf.mxu0
      %707 = vmatprep.mubr.bf16.mxu0 0
      %708 = vmatmul.mubr.bf16.gmra.mxu0 %v528
      %v709 = vpop.f32.mrf.mxu0
      %v710 = vadd.f32 0.0, %v709
      %v711 = vpop.f32.mrf.mxu0
      %v712 = vpop.f32.mrf.mxu0
      %v713 = vadd.f32 0.0, %v712
      %v714 = vpop.f32.mrf.mxu0
      %715 = vdwg.mxu0
      %v716 = vadd.f32 %v611, %v686
      %v717 = vadd.f32 %v612, %v689
      %v718 = vadd.f32 %v613, %v694
      %v719 = vadd.f32 %v614, %v697
      %v720 = vadd.f32 %v615, %v702
      %v721 = vadd.f32 %v616, %v705
      %v722 = vadd.f32 %v617, %v710
      %v723 = vadd.f32 %v618, %v713
      %724 = vst.msk [vmem:[#allocation3] sm:$0xff] %vm517, %v716
      %725 = vst.msk [vmem:[#allocation3 + $0x8] sm:$0xff] %vm517, %v717
      %726 = vst.msk [vmem:[#allocation3 + $0x10] sm:$0xff] %vm517, %v718
      %727 = vst.msk [vmem:[#allocation3 + $0x18] sm:$0xff] %vm517, %v719
      %728 = vst.msk [vmem:[#allocation3 + $0x20] sm:$0xff] %vm517, %v720
      %729 = vst.msk [vmem:[#allocation3 + $0x28] sm:$0xff] %vm517, %v721
      %730 = vst.msk [vmem:[#allocation3 + $0x30] sm:$0xff] %vm517, %v722
      %731 = vst.msk [vmem:[#allocation3 + $0x38] sm:$0xff] %vm517, %v723
      %v732 = vld [vmem:[#allocation4] sm:$0xff]
      %v733 = vld [vmem:[#allocation4 + $0x8] sm:$0xff]
      %v734 = vld [vmem:[#allocation4 + $0x10] sm:$0xff]
      %v735 = vld [vmem:[#allocation4 + $0x18] sm:$0xff]
      %v736 = vld [vmem:[#allocation4 + $0x20] sm:$0xff]
      %v737 = vld [vmem:[#allocation4 + $0x28] sm:$0xff]
      %v738 = vld [vmem:[#allocation4 + $0x30] sm:$0xff]
      %v739 = vld [vmem:[#allocation4 + $0x38] sm:$0xff]
      %v740 = vld [vmem:[%s406] sm:$0xf]
      %v741 = vld [vmem:[%s406 + $0x4] sm:$0xf]
      %v742 = vld [vmem:[%s406 + $0x8] sm:$0xf]
      %v743 = vld [vmem:[%s406 + $0xc] sm:$0xf]
      %v744 = vld [vmem:[%s406 + $0x10] sm:$0xf]
      %v745 = vld [vmem:[%s406 + $0x14] sm:$0xf]
      %v746 = vld [vmem:[%s406 + $0x18] sm:$0xf]
      %v747 = vld [vmem:[%s406 + $0x1c] sm:$0xf]
      %v756 = vunpack.c.l.b16 %v740
      %v757 = vunpack.c.l.b16 %v741
      %v758 = vunpack.c.l.b16 %v742
      %v759 = vunpack.c.l.b16 %v743
      %v760 = vunpack.c.l.b16 %v744
      %v761 = vunpack.c.l.b16 %v745
      %v762 = vunpack.c.l.b16 %v746
      %v763 = vunpack.c.l.b16 %v747
      %v764 = vpack.c.b16 %v757, %v756
      %v765 = vpack.c.b16 %v759, %v758
      %v766 = vpack.c.b16 %v761, %v760
      %v767 = vpack.c.b16 %v763, %v762
      %772 = vmatprep.subr.bf16.mxu0 0
      %773 = vmatpush1.bf16.msra.mxu0 0
      %774 = vmatprep.subr.bf16.mxu0 0
      %775 = vmatpush1.bf16.msra.mxu0 0
      %776 = vmatprep.subr.bf16.mxu0 0
      %777 = vmatpush1.bf16.msra.mxu0 0
      %778 = vmatprep.subr.bf16.mxu0 0
      %779 = vmatpush1.bf16.msra.mxu0 0
      %780 = vmatprep.subr.bf16.mxu0 0
      %781 = vmatpush1.bf16.msra.mxu0 %v767
      %782 = vmatprep.subr.bf16.mxu0 0
      %783 = vmatpush1.bf16.msra.mxu0 %v766
      %784 = vmatprep.subr.bf16.mxu0 0
      %785 = vmatpush1.bf16.msra.mxu0 %v765
      %786 = vmatprep.subr.bf16.mxu0 0
      %787 = vmatpush1.bf16.msra.mxu0 %v764
      %788 = vmatprep.subr.bf16.mxu0 0
      %789 = vmatpush2.bf16.msra.mxu0 0
      %790 = vmatprep.subr.bf16.mxu0 0
      %791 = vmatpush2.bf16.msra.mxu0 0
      %792 = vmatprep.subr.bf16.mxu0 0
      %793 = vmatpush2.bf16.msra.mxu0 0
      %794 = vmatprep.subr.bf16.mxu0 0
      %795 = vmatpush2.bf16.msra.mxu0 0
      %796 = vmatprep.subr.bf16.mxu0 0
      %797 = vmatpush2.bf16.msra.mxu0 0
      %798 = vmatprep.subr.bf16.mxu0 0
      %799 = vmatpush2.bf16.msra.mxu0 0
      %800 = vmatprep.subr.bf16.mxu0 0
      %801 = vmatpush2.bf16.msra.mxu0 0
      %802 = vmatprep.subr.bf16.mxu0 0
      %803 = vmatpush2.bf16.msra.mxu0 0
      %804 = vmatprep.mubr.bf16.mxu0 0
      %805 = vmatmul.mubr.bf16.gmra.mxu0 %v519
      %v806 = vpop.f32.mrf.mxu0
      %v807 = vadd.f32 0.0, %v806
      %v808 = vpop.f32.mrf.mxu0
      %v809 = vpop.f32.mrf.mxu0
      %v810 = vadd.f32 0.0, %v809
      %v811 = vpop.f32.mrf.mxu0
      %812 = vmatprep.mubr.bf16.mxu0 0
      %813 = vmatmul.mubr.bf16.gmra.mxu0 %v522
      %v814 = vpop.f32.mrf.mxu0
      %v815 = vadd.f32 0.0, %v814
      %v816 = vpop.f32.mrf.mxu0
      %v817 = vpop.f32.mrf.mxu0
      %v818 = vadd.f32 0.0, %v817
      %v819 = vpop.f32.mrf.mxu0
      %820 = vmatprep.mubr.bf16.mxu0 0
      %821 = vmatmul.mubr.bf16.gmra.mxu0 %v525
      %v822 = vpop.f32.mrf.mxu0
      %v823 = vadd.f32 0.0, %v822
      %v824 = vpop.f32.mrf.mxu0
      %v825 = vpop.f32.mrf.mxu0
      %v826 = vadd.f32 0.0, %v825
      %v827 = vpop.f32.mrf.mxu0
      %828 = vmatprep.mubr.bf16.mxu0 0
      %829 = vmatmul.mubr.bf16.gmra.mxu0 %v528
      %v830 = vpop.f32.mrf.mxu0
      %v831 = vadd.f32 0.0, %v830
      %v832 = vpop.f32.mrf.mxu0
      %v833 = vpop.f32.mrf.mxu0
      %v834 = vadd.f32 0.0, %v833
      %v835 = vpop.f32.mrf.mxu0
      %836 = vdwg.mxu0
      %v837 = vadd.f32 %v732, %v807
      %v838 = vadd.f32 %v733, %v810
      %v839 = vadd.f32 %v734, %v815
      %v840 = vadd.f32 %v735, %v818
      %v841 = vadd.f32 %v736, %v823
      %v842 = vadd.f32 %v737, %v826
      %v843 = vadd.f32 %v738, %v831
      %v844 = vadd.f32 %v739, %v834
      %845 = vst.msk [vmem:[#allocation4] sm:$0xff] %vm517, %v837
      %846 = vst.msk [vmem:[#allocation4 + $0x8] sm:$0xff] %vm517, %v838
      %847 = vst.msk [vmem:[#allocation4 + $0x10] sm:$0xff] %vm517, %v839
      %848 = vst.msk [vmem:[#allocation4 + $0x18] sm:$0xff] %vm517, %v840
      %849 = vst.msk [vmem:[#allocation4 + $0x20] sm:$0xff] %vm517, %v841
      %850 = vst.msk [vmem:[#allocation4 + $0x28] sm:$0xff] %vm517, %v842
      %851 = vst.msk [vmem:[#allocation4 + $0x30] sm:$0xff] %vm517, %v843
      %852 = vst.msk [vmem:[#allocation4 + $0x38] sm:$0xff] %vm517, %v844
      // Predicated region
      $region41: #{attention_forward.3} parent=35 // pred_check
        %p853 = pneg %p436
      $region42: #{attention_forward.3} parent=35 // pred_check_branch
        %855 = sbr.rel (%p853) target = $region44
      $region43: #{attention_forward.3} parent=35 // pred_region
        %v856 = vld [vmem:[#allocation2] sm:$0xff]
        %v857 = vld [vmem:[#allocation2 + $0x8] sm:$0xff]
        %v858 = vld [vmem:[#allocation2 + $0x10] sm:$0xff]
        %v859 = vld [vmem:[#allocation2 + $0x18] sm:$0xff]
        %v860 = vld [vmem:[#allocation2 + $0x20] sm:$0xff]
        %v861 = vld [vmem:[#allocation2 + $0x28] sm:$0xff]
        %v862 = vld [vmem:[#allocation2 + $0x30] sm:$0xff]
        %v863 = vld [vmem:[#allocation2 + $0x38] sm:$0xff]
        %v864 = vpack.c.bf16 %v857, %v856
        %v865 = vpack.c.bf16 %v859, %v858
        %v866 = vpack.c.bf16 %v861, %v860
        %v867 = vpack.c.bf16 %v863, %v862
        %v872 = vunpack.c.l.b16 %v864
        %v873 = vunpack.c.h.b16 %v864
        %v874 = vunpack.c.l.b16 %v865
        %v875 = vunpack.c.h.b16 %v865
        %v876 = vunpack.c.l.b16 %v866
        %v877 = vunpack.c.h.b16 %v866
        %v878 = vunpack.c.l.b16 %v867
        %v879 = vunpack.c.h.b16 %v867
        %v880 = vpack.c.b16 %v872, %v872
        %v881 = vpack.c.b16 %v873, %v873
        %v882 = vpack.c.b16 %v874, %v874
        %v883 = vpack.c.b16 %v875, %v875
        %v884 = vpack.c.b16 %v876, %v876
        %v885 = vpack.c.b16 %v877, %v877
        %v886 = vpack.c.b16 %v878, %v878
        %v887 = vpack.c.b16 %v879, %v879
        %vm896 = vcmask 519168
        %897 = vst.msk [vmem:[%s415] sm:$0xf] %vm896, %v880
        %898 = vst.msk [vmem:[%s415 + $0x4] sm:$0xf] %vm896, %v881
        %899 = vst.msk [vmem:[%s415 + $0x8] sm:$0xf] %vm896, %v882
        %900 = vst.msk [vmem:[%s415 + $0xc] sm:$0xf] %vm896, %v883
        %901 = vst.msk [vmem:[%s415 + $0x10] sm:$0xf] %vm896, %v884
        %902 = vst.msk [vmem:[%s415 + $0x14] sm:$0xf] %vm896, %v885
        %903 = vst.msk [vmem:[%s415 + $0x18] sm:$0xf] %vm896, %v886
        %904 = vst.msk [vmem:[%s415 + $0x1c] sm:$0xf] %vm896, %v887
        %v905 = vld [vmem:[#allocation3] sm:$0xff]
        %v906 = vld [vmem:[#allocation3 + $0x8] sm:$0xff]
        %v907 = vld [vmem:[#allocation3 + $0x10] sm:$0xff]
        %v908 = vld [vmem:[#allocation3 + $0x18] sm:$0xff]
        %v909 = vld [vmem:[#allocation3 + $0x20] sm:$0xff]
        %v910 = vld [vmem:[#allocation3 + $0x28] sm:$0xff]
        %v911 = vld [vmem:[#allocation3 + $0x30] sm:$0xff]
        %v912 = vld [vmem:[#allocation3 + $0x38] sm:$0xff]
        %v913 = vpack.c.bf16 %v906, %v905
        %v914 = vpack.c.bf16 %v908, %v907
        %v915 = vpack.c.bf16 %v910, %v909
        %v916 = vpack.c.bf16 %v912, %v911
        %v921 = vunpack.c.l.b16 %v913
        %v922 = vunpack.c.h.b16 %v913
        %v923 = vunpack.c.l.b16 %v914
        %v924 = vunpack.c.h.b16 %v914
        %v925 = vunpack.c.l.b16 %v915
        %v926 = vunpack.c.h.b16 %v915
        %v927 = vunpack.c.l.b16 %v916
        %v928 = vunpack.c.h.b16 %v916
        %v929 = vpack.c.b16 %v921, %v921
        %v930 = vpack.c.b16 %v922, %v922
        %v931 = vpack.c.b16 %v923, %v923
        %v932 = vpack.c.b16 %v924, %v924
        %v933 = vpack.c.b16 %v925, %v925
        %v934 = vpack.c.b16 %v926, %v926
        %v935 = vpack.c.b16 %v927, %v927
        %v936 = vpack.c.b16 %v928, %v928
        %945 = vst.msk [vmem:[%s424] sm:$0xf] %vm896, %v929
        %946 = vst.msk [vmem:[%s424 + $0x4] sm:$0xf] %vm896, %v930
        %947 = vst.msk [vmem:[%s424 + $0x8] sm:$0xf] %vm896, %v931
        %948 = vst.msk [vmem:[%s424 + $0xc] sm:$0xf] %vm896, %v932
        %949 = vst.msk [vmem:[%s424 + $0x10] sm:$0xf] %vm896, %v933
        %950 = vst.msk [vmem:[%s424 + $0x14] sm:$0xf] %vm896, %v934
        %951 = vst.msk [vmem:[%s424 + $0x18] sm:$0xf] %vm896, %v935
        %952 = vst.msk [vmem:[%s424 + $0x1c] sm:$0xf] %vm896, %v936
        %v953 = vld [vmem:[#allocation4] sm:$0xff]
        %v954 = vld [vmem:[#allocation4 + $0x8] sm:$0xff]
        %v955 = vld [vmem:[#allocation4 + $0x10] sm:$0xff]
        %v956 = vld [vmem:[#allocation4 + $0x18] sm:$0xff]
        %v957 = vld [vmem:[#allocation4 + $0x20] sm:$0xff]
        %v958 = vld [vmem:[#allocation4 + $0x28] sm:$0xff]
        %v959 = vld [vmem:[#allocation4 + $0x30] sm:$0xff]
        %v960 = vld [vmem:[#allocation4 + $0x38] sm:$0xff]
        %v961 = vpack.c.bf16 %v954, %v953
        %v962 = vpack.c.bf16 %v956, %v955
        %v963 = vpack.c.bf16 %v958, %v957
        %v964 = vpack.c.bf16 %v960, %v959
        %v969 = vunpack.c.l.b16 %v961
        %v970 = vunpack.c.h.b16 %v961
        %v971 = vunpack.c.l.b16 %v962
        %v972 = vunpack.c.h.b16 %v962
        %v973 = vunpack.c.l.b16 %v963
        %v974 = vunpack.c.h.b16 %v963
        %v975 = vunpack.c.l.b16 %v964
        %v976 = vunpack.c.h.b16 %v964
        %v977 = vpack.c.b16 %v969, %v969
        %v978 = vpack.c.b16 %v970, %v970
        %v979 = vpack.c.b16 %v971, %v971
        %v980 = vpack.c.b16 %v972, %v972
        %v981 = vpack.c.b16 %v973, %v973
        %v982 = vpack.c.b16 %v974, %v974
        %v983 = vpack.c.b16 %v975, %v975
        %v984 = vpack.c.b16 %v976, %v976
        %993 = vst.msk [vmem:[%s433] sm:$0xf] %vm896, %v977
        %994 = vst.msk [vmem:[%s433 + $0x4] sm:$0xf] %vm896, %v978
        %995 = vst.msk [vmem:[%s433 + $0x8] sm:$0xf] %vm896, %v979
        %996 = vst.msk [vmem:[%s433 + $0xc] sm:$0xf] %vm896, %v980
        %997 = vst.msk [vmem:[%s433 + $0x10] sm:$0xf] %vm896, %v981
        %998 = vst.msk [vmem:[%s433 + $0x14] sm:$0xf] %vm896, %v982
        %999 = vst.msk [vmem:[%s433 + $0x18] sm:$0xf] %vm896, %v983
        %1000 = vst.msk [vmem:[%s433 + $0x1c] sm:$0xf] %vm896, %v984
      $region44: #{attention_forward.3} parent=35 // pred_fallthru
        _
      %s1001 = smul.u32 8, %s23
      %p1002 = scmp.lt.s32.totalorder %s1001, 15
      %s1003 = scalar_select %p1002, %s1001, 15
      %p1004 = scmp.lt.s32.totalorder %s24, 0
      %s1005 = scalar_select %p1004, %s24, 0
      %s1006 = sadd.s32 %s1005, %s1003
      %s1007 = smul.addr %s1006, 4
      %s1008 = scalar_lea.vmem %s4, %s1007
      %s1009 = smul.u32 8, %s23
      %p1010 = scmp.lt.s32.totalorder %s1009, 15
      %s1011 = scalar_select %p1010, %s1009, 15
      %p1012 = scmp.lt.s32.totalorder %s24, 0
      %s1013 = scalar_select %p1012, %s24, 0
      %s1014 = sadd.s32 %s1013, %s1011
      %s1015 = smul.addr %s1014, 4
      %s1016 = scalar_lea.vmem %s5, %s1015
      %s1017 = smul.u32 8, %s23
      %p1018 = scmp.lt.s32.totalorder %s1017, 15
      %s1019 = scalar_select %p1018, %s1017, 15
      %p1020 = scmp.lt.s32.totalorder %s24, 0
      %s1021 = scalar_select %p1020, %s24, 0
      %s1022 = sadd.s32 %s1021, %s1019
      %s1023 = smul.addr %s1022, 4
      %s1024 = scalar_lea.vmem %s6, %s1023
      // Predicated region
      $region45: #{attention_forward.3} parent=35 // pred_check
        %p1025 = pneg %p169
      $region46: #{attention_forward.3} parent=35 // pred_check_branch
        %1027 = sbr.rel (%p1025) target = $region48
      $region47: #{attention_forward.3} parent=35 // pred_region
        %s1028 = smul.u32 8, %s23
      $region48: #{attention_forward.3} parent=35 // pred_fallthru
        _
      // Predicated region
      $region49: #{attention_forward.3} parent=35 // pred_check
        %p1029 = pneg %p197
      $region50: #{attention_forward.3} parent=35 // pred_check_branch
        %1031 = sbr.rel (%p1029) target = $region52
      $region51: #{attention_forward.3} parent=35 // pred_region
        %s1032 = smul.u32 8, %s23
      $region52: #{attention_forward.3} parent=35 // pred_fallthru
        _
      // Predicated region
      $region53: #{attention_forward.3} parent=35 // pred_check
        %p1033 = pneg %p225
      $region54: #{attention_forward.3} parent=35 // pred_check_branch
        %1035 = sbr.rel (%p1033) target = $region56
      $region55: #{attention_forward.3} parent=35 // pred_region
        %s1036 = smul.u32 8, %s23
      $region56: #{attention_forward.3} parent=35 // pred_fallthru
        _
    $region36: #{attention_forward.3} parent=5 // pred_fallthru
      _
    %p1037 = scmp.le.s32.totalorder 2, %s13
    // Predicated region
    $region57: #{attention_forward.3} parent=5 // pred_check
      %p1038 = pneg %p1037
    $region58: #{attention_forward.3} parent=5 // pred_check_branch
      %1040 = sbr.rel (%p1038) target = $region60
    $region59: #{attention_forward.3} parent=5 // pred_region
      %s1041 = ssub.s32 %s13, 2
      // Predicated region
      $region61: #{attention_forward.3} parent=59 // pred_check
        %p1042 = pneg %p175
      $region62: #{attention_forward.3} parent=59 // pred_check_branch
        %1044 = sbr.rel (%p1042) target = $region64
      $region63: #{attention_forward.3} parent=59 // pred_region
        %s1045 = smul.u32 8, %s26
        %p1046 = scmp.lt.s32.totalorder %s1045, 15
        %s1047 = scalar_select %p1046, %s1045, 15
        %p1048 = scmp.lt.s32.totalorder %s27, 0
        %s1049 = scalar_select %p1048, %s27, 0
        %s1050 = sadd.s32 %s1049, %s1047
        %s1051 = smul.addr %s1050, 4
        %s1052 = scalar_lea.vmem %s4, %s1051
      $region64: #{attention_forward.3} parent=59 // pred_fallthru
        _
      // Predicated region
      $region65: #{attention_forward.3} parent=59 // pred_check
        %p1053 = pneg %p203
      $region66: #{attention_forward.3} parent=59 // pred_check_branch
        %1055 = sbr.rel (%p1053) target = $region68
      $region67: #{attention_forward.3} parent=59 // pred_region
        %s1056 = smul.u32 8, %s26
        %p1057 = scmp.lt.s32.totalorder %s1056, 15
        %s1058 = scalar_select %p1057, %s1056, 15
        %p1059 = scmp.lt.s32.totalorder %s27, 0
        %s1060 = scalar_select %p1059, %s27, 0
        %s1061 = sadd.s32 %s1060, %s1058
        %s1062 = smul.addr %s1061, 4
        %s1063 = scalar_lea.vmem %s5, %s1062
      $region68: #{attention_forward.3} parent=59 // pred_fallthru
        _
      // Predicated region
      $region69: #{attention_forward.3} parent=59 // pred_check
        %p1064 = pneg %p231
      $region70: #{attention_forward.3} parent=59 // pred_check_branch
        %1066 = sbr.rel (%p1064) target = $region72
      $region71: #{attention_forward.3} parent=59 // pred_region
        %s1067 = smul.u32 8, %s26
        %p1068 = scmp.lt.s32.totalorder %s1067, 15
        %s1069 = scalar_select %p1068, %s1067, 15
        %p1070 = scmp.lt.s32.totalorder %s27, 0
        %s1071 = scalar_select %p1070, %s27, 0
        %s1072 = sadd.s32 %s1071, %s1069
        %s1073 = smul.addr %s1072, 4
        %s1074 = scalar_lea.vmem %s6, %s1073
      $region72: #{attention_forward.3} parent=59 // pred_fallthru
        _
    $region60: #{attention_forward.3} parent=5 // pred_fallthru
      _
  $region6: #{attention_forward.3} parent=0 // loop_footer
    %s17 = sadd.s32 1, %s13
  $region7: #{attention_forward.3} parent=0 // loop_footer_branch
    %12 = sbr.rel target = $region3
  $region8: #{attention_forward.3} parent=0 // loop_exit
    _

// kernel: attention_forward.4
$region0: #{attention_forward.4}
  #allocation0 [shape = 'u32[]', space=smem, size = 0x4, offset = 0x4, fixed_abs, tag = 'smem constant byte address 0x4 - core index']
  #allocation1 [shape = 'u32[144,128]{1,0:T(1,128)}', space=vmem, size = 0x12000, scoped, tag = 'internal scratch']
  #allocation2 [shape = 'f32[64,2]{1,0:T(8,128)}', space=vmem, size = 0x8000, scoped, tag = 'scratch operand']
  #allocation3 [shape = 'f32[64,2]{1,0:T(8,128)}', space=vmem, size = 0x8000, scoped, tag = 'scratch operand']
  #allocation4 [shape = 'f32[64,64]{1,0:T(8,128)}', space=vmem, size = 0x8000, scoped, tag = 'scratch operand']
  %s0 = inlined_call_operand.vmem [shape: bf16[2,64,64], index: 0, kind: input, shape index: {}]
  %s1 = inlined_call_operand.vmem [shape: bf16[2,64,64], index: 1, kind: input, shape index: {}]
  %s2 = inlined_call_operand.vmem [shape: bf16[2,64,64], index: 2, kind: input, shape index: {}]
  %s3 = inlined_call_operand.vmem [shape: bf16[2,64,64], index: 3, kind: output, shape index: {}]
  %s4 = sld [smem:[#allocation0]]
  $region53: #{attention_forward.4} parent=0
    _
  %s6 = ssub.s32 1, %s4
  %s7 = scalar_select 0, %s6, %s4
  loop: start=0, step=1, limit=4
  $region2: #{attention_forward.4} parent=0 // loop_pre_header
    _
  $region3: #{attention_forward.4} parent=0 // loop_header
    %s9 = sphi 0, %s13
    %p10 = scmp.ge.s32.totalorder %s9, 4
    %s16 = sphi 0, %s35
    %s17 = sphi 0, %s31
    %s18 = sphi 0, %s27
    %s19 = sphi 0, %s16
    %s20 = sphi 0, %s17
    %s21 = sphi 0, %s18
    %s22 = sphi 0, %s19
    %s23 = sphi 0, %s20
    %s24 = sphi 0, %s21
    %s40 = sphi 0, %s42
    %s43 = sphi 0, %s40
    %s44 = sphi 0, %s43
    %s60 = sphi 0, %s44
    %s68 = sphi 0, %s70
    %s71 = sphi 0, %s68
    %s72 = sphi 0, %s71
    %s88 = sphi 0, %s72
    %s96 = sphi 0, %s98
    %s99 = sphi 0, %s96
    %s100 = sphi 0, %s99
    %s116 = sphi 0, %s100
    %s124 = sphi 0, %s126
    %s127 = sphi 0, %s124
    %s128 = sphi 0, %s127
    %s144 = sphi 0, %s128
  $region4: #{attention_forward.4} parent=0 // loop_header_branch
    %12 = sbr.rel (%p10) target = $region8
  $region5: #{attention_forward.4} parent=0 // loop_body
    %s14 = ssub.s32 %s9, 1
    %s15 = ssub.s32 %s9, 2
    %s25 = sadd.s32 1, %s18
    %p26 = scmp.ge.s32.totalorder %s25, 1
    %s27 = scalar_select %p26, 0, %s25
    %s28 = sadd.s32 1, %s17
    %s29 = scalar_select %p26, %s28, %s17
    %p30 = scmp.ge.s32.totalorder %s29, 1
    %s31 = scalar_select %p30, 0, %s29
    %s32 = sadd.s32 1, %s16
    %s33 = scalar_select %p30, %s32, %s16
    %p34 = scmp.ge.s32.totalorder %s33, 2
    %s35 = scalar_select %p34, 0, %s33
    %s36 = ssub.s32 %s16, %s35
    %s37 = ssub.s32 %s17, %s31
    %s38 = sor.u32 %s36, %s37
    %p39 = scmp.eq.s32.totalorder %s38, 0
    %s41 = sadd.s32 %s40, 1
    %s42 = scalar_select %p39, %s40, %s41
    %p45 = pneg %p39
    %p46 = scmp.eq.s32.totalorder %s9, 1
    %p47 = por %p45, %p46
    %p48 = scmp.ne.s32.totalorder %s40, %s43
    %p49 = scmp.eq.s32.totalorder %s9, 0
    %p50 = por %p48, %p49
    %p51 = scmp.ne.s32.totalorder %s40, %s43
    %p52 = scmp.eq.s32.totalorder %s14, 1
    %p53 = por %p51, %p52
    %p54 = scmp.ne.s32.totalorder %s43, %s44
    %p55 = scmp.eq.s32.totalorder %s14, 0
    %p56 = por %p54, %p55
    %p57 = scmp.ne.s32.totalorder %s43, %s44
    %p58 = scmp.eq.s32.totalorder %s15, 1
    %p59 = por %p57, %p58
    %p61 = scmp.ne.s32.totalorder %s44, %s60
    %p62 = scmp.eq.s32.totalorder %s15, 0
    %p63 = por %p61, %p62
    %s64 = ssub.s32 %s16, %s35
    %s65 = ssub.s32 %s18, %s27
    %s66 = sor.u32 %s64, %s65
    %p67 = scmp.eq.s32.totalorder %s66, 0
    %s69 = sadd.s32 %s68, 1
    %s70 = scalar_select %p67, %s68, %s69
    %p73 = pneg %p67
    %p74 = scmp.eq.s32.totalorder %s9, 1
    %p75 = por %p73, %p74
    %p76 = scmp.ne.s32.totalorder %s68, %s71
    %p77 = scmp.eq.s32.totalorder %s9, 0
    %p78 = por %p76, %p77
    %p79 = scmp.ne.s32.totalorder %s68, %s71
    %p80 = scmp.eq.s32.totalorder %s14, 1
    %p81 = por %p79, %p80
    %p82 = scmp.ne.s32.totalorder %s71, %s72
    %p83 = scmp.eq.s32.totalorder %s14, 0
    %p84 = por %p82, %p83
    %p85 = scmp.ne.s32.totalorder %s71, %s72
    %p86 = scmp.eq.s32.totalorder %s15, 1
    %p87 = por %p85, %p86
    %p89 = scmp.ne.s32.totalorder %s72, %s88
    %p90 = scmp.eq.s32.totalorder %s15, 0
    %p91 = por %p89, %p90
    %s92 = ssub.s32 %s16, %s35
    %s93 = ssub.s32 %s18, %s27
    %s94 = sor.u32 %s92, %s93
    %p95 = scmp.eq.s32.totalorder %s94, 0
    %s97 = sadd.s32 %s96, 1
    %s98 = scalar_select %p95, %s96, %s97
    %p101 = pneg %p95
    %p102 = scmp.eq.s32.totalorder %s9, 1
    %p103 = por %p101, %p102
    %p104 = scmp.ne.s32.totalorder %s96, %s99
    %p105 = scmp.eq.s32.totalorder %s9, 0
    %p106 = por %p104, %p105
    %p107 = scmp.ne.s32.totalorder %s96, %s99
    %p108 = scmp.eq.s32.totalorder %s14, 1
    %p109 = por %p107, %p108
    %p110 = scmp.ne.s32.totalorder %s99, %s100
    %p111 = scmp.eq.s32.totalorder %s14, 0
    %p112 = por %p110, %p111
    %p113 = scmp.ne.s32.totalorder %s99, %s100
    %p114 = scmp.eq.s32.totalorder %s15, 1
    %p115 = por %p113, %p114
    %p117 = scmp.ne.s32.totalorder %s100, %s116
    %p118 = scmp.eq.s32.totalorder %s15, 0
    %p119 = por %p117, %p118
    %s120 = ssub.s32 %s16, %s35
    %s121 = ssub.s32 %s17, %s31
    %s122 = sor.u32 %s120, %s121
    %p123 = scmp.eq.s32.totalorder %s122, 0
    %s125 = sadd.s32 %s124, 1
    %s126 = scalar_select %p123, %s124, %s125
    %p129 = pneg %p123
    %p130 = scmp.eq.s32.totalorder %s9, 1
    %p131 = por %p129, %p130
    %p132 = scmp.ne.s32.totalorder %s124, %s127
    %p133 = scmp.eq.s32.totalorder %s9, 0
    %p134 = por %p132, %p133
    %p135 = scmp.ne.s32.totalorder %s124, %s127
    %p136 = scmp.eq.s32.totalorder %s14, 1
    %p137 = por %p135, %p136
    %p138 = scmp.ne.s32.totalorder %s127, %s128
    %p139 = scmp.eq.s32.totalorder %s14, 0
    %p140 = por %p138, %p139
    %p141 = scmp.ne.s32.totalorder %s127, %s128
    %p142 = scmp.eq.s32.totalorder %s15, 1
    %p143 = por %p141, %p142
    %p145 = scmp.ne.s32.totalorder %s128, %s144
    %p146 = scmp.eq.s32.totalorder %s15, 0
    %p147 = por %p145, %p146
    %p148 = scmp.le.s32.totalorder 1, %s9
    %p149 = scmp.lt.s32.totalorder %s9, 3
    %p150 = pnand %p148, %p149
    %p151 = pneg %p150
    // Predicated region
    $region9: #{attention_forward.4} parent=5 // pred_check
      _
    $region10: #{attention_forward.4} parent=5 // pred_check_branch
      %153 = sbr.rel (%p150) target = $region12
    $region11: #{attention_forward.4} parent=5 // pred_region
      %s154 = ssub.s32 %s9, 1
    $region12: #{attention_forward.4} parent=5 // pred_fallthru
      _
    %p155 = scmp.lt.s32.totalorder %s9, 2
    // Predicated region
    $region13: #{attention_forward.4} parent=5 // pred_check
      %p156 = pneg %p155
    $region14: #{attention_forward.4} parent=5 // pred_check_branch
      %158 = sbr.rel (%p156) target = $region16
    $region15: #{attention_forward.4} parent=5 // pred_region
      // Predicated region
      $region17: #{attention_forward.4} parent=15 // pred_check
        %p159 = pneg %p50
      $region18: #{attention_forward.4} parent=15 // pred_check_branch
        %161 = sbr.rel (%p159) target = $region20
      $region19: #{attention_forward.4} parent=15 // pred_region
        %s162 = smul.u32 8, %s17
        %p163 = scmp.lt.s32.totalorder %s16, 1
        %s164 = scalar_select %p163, %s16, 1
        %p165 = scmp.lt.s32.totalorder %s162, 7
        %s166 = scalar_select %p165, %s162, 7
        %s167 = smul.addr %s164, 8
        %s168 = sadd.s32 %s166, %s167
        %s169 = smul.addr %s168, 4
        %s170 = scalar_lea.vmem %s0, %s169
        %s171 = smul.u32 8, %s17
      $region20: #{attention_forward.4} parent=15 // pred_fallthru
        _
      // Predicated region
      $region21: #{attention_forward.4} parent=15 // pred_check
        %p172 = pneg %p78
      $region22: #{attention_forward.4} parent=15 // pred_check_branch
        %174 = sbr.rel (%p172) target = $region24
      $region23: #{attention_forward.4} parent=15 // pred_region
        %s175 = smul.u32 8, %s18
        %p176 = scmp.lt.s32.totalorder %s16, 1
        %s177 = scalar_select %p176, %s16, 1
        %p178 = scmp.lt.s32.totalorder %s175, 7
        %s179 = scalar_select %p178, %s175, 7
        %s180 = smul.addr %s177, 8
        %s181 = sadd.s32 %s179, %s180
        %s182 = smul.addr %s181, 4
        %s183 = scalar_lea.vmem %s1, %s182
        %s184 = smul.u32 8, %s18
      $region24: #{attention_forward.4} parent=15 // pred_fallthru
        _
      // Predicated region
      $region25: #{attention_forward.4} parent=15 // pred_check
        %p185 = pneg %p106
      $region26: #{attention_forward.4} parent=15 // pred_check_branch
        %187 = sbr.rel (%p185) target = $region28
      $region27: #{attention_forward.4} parent=15 // pred_region
        %s188 = smul.u32 8, %s18
        %p189 = scmp.lt.s32.totalorder %s16, 1
        %s190 = scalar_select %p189, %s16, 1
        %p191 = scmp.lt.s32.totalorder %s188, 7
        %s192 = scalar_select %p191, %s188, 7
        %s193 = smul.addr %s190, 8
        %s194 = sadd.s32 %s192, %s193
        %s195 = smul.addr %s194, 4
        %s196 = scalar_lea.vmem %s2, %s195
        %s197 = smul.u32 8, %s18
      $region28: #{attention_forward.4} parent=15 // pred_fallthru
        _
    $region16: #{attention_forward.4} parent=5 // pred_fallthru
      _
    %p198 = scmp.le.s32.totalorder 1, %s9
    %p199 = scmp.lt.s32.totalorder %s9, 3
    %p200 = pnand %p198, %p199
    %p201 = pneg %p200
    // Predicated region
    $region29: #{attention_forward.4} parent=5 // pred_check
      _
    $region30: #{attention_forward.4} parent=5 // pred_check_branch
      %203 = sbr.rel (%p200) target = $region32
    $region31: #{attention_forward.4} parent=5 // pred_region
      %s204 = ssub.s32 %s9, 1
      %s205 = smul.u32 8, %s20
      %p206 = scmp.lt.s32.totalorder %s19, 1
      %s207 = scalar_select %p206, %s19, 1
      %p208 = scmp.lt.s32.totalorder %s205, 7
      %s209 = scalar_select %p208, %s205, 7
      %s210 = smul.addr %s207, 8
      %s211 = sadd.s32 %s209, %s210
      %s212 = smul.addr %s211, 4
      %s213 = scalar_lea.vmem %s0, %s212
      %p214 = pneg %p56
      %p215 = pneg %p53
      %s216 = smul.u32 8, %s21
      %p217 = scmp.lt.s32.totalorder %s19, 1
      %s218 = scalar_select %p217, %s19, 1
      %p219 = scmp.lt.s32.totalorder %s216, 7
      %s220 = scalar_select %p219, %s216, 7
      %s221 = smul.addr %s218, 8
      %s222 = sadd.s32 %s220, %s221
      %s223 = smul.addr %s222, 4
      %s224 = scalar_lea.vmem %s1, %s223
      %p225 = pneg %p84
      %p226 = pneg %p81
      %s227 = smul.u32 8, %s21
      %p228 = scmp.lt.s32.totalorder %s19, 1
      %s229 = scalar_select %p228, %s19, 1
      %p230 = scmp.lt.s32.totalorder %s227, 7
      %s231 = scalar_select %p230, %s227, 7
      %s232 = smul.addr %s229, 8
      %s233 = sadd.s32 %s231, %s232
      %s234 = smul.addr %s233, 4
      %s235 = scalar_lea.vmem %s2, %s234
      %p236 = pneg %p112
      %p237 = pneg %p109
      %p238 = pneg %p140
      %p239 = pneg %p137
      %s240 = smul.u32 8, %s20
      %p241 = scmp.lt.s32.totalorder %s19, 1
      %s242 = scalar_select %p241, %s19, 1
      %p243 = scmp.lt.s32.totalorder %s240, 7
      %s244 = scalar_select %p243, %s240, 7
      %s245 = smul.addr %s242, 8
      %s246 = sadd.s32 %s244, %s245
      %s247 = smul.addr %s246, 4
      %s248 = scalar_lea.vmem %s3, %s247
      %s249 = smul.u32 8, %s20
      %p250 = scmp.lt.s32.totalorder %s19, 1
      %s251 = scalar_select %p250, %s19, 1
      %p252 = scmp.lt.s32.totalorder %s249, 7
      %s253 = scalar_select %p252, %s249, 7
      %s254 = smul.addr %s251, 8
      %s255 = sadd.s32 %s253, %s254
      %s256 = smul.addr %s255, 4
      %s257 = scalar_lea.vmem %s0, %s256
      %s258 = smul.u32 8, %s20
      %s259 = smul.u32 8, %s21
      %p260 = scmp.lt.s32.totalorder %s19, 1
      %s261 = scalar_select %p260, %s19, 1
      %p262 = scmp.lt.s32.totalorder %s259, 7
      %s263 = scalar_select %p262, %s259, 7
      %s264 = smul.addr %s261, 8
      %s265 = sadd.s32 %s263, %s264
      %s266 = smul.addr %s265, 4
      %s267 = scalar_lea.vmem %s1, %s266
      %s268 = smul.u32 8, %s21
      %s269 = smul.u32 8, %s21
      %p270 = scmp.lt.s32.totalorder %s19, 1
      %s271 = scalar_select %p270, %s19, 1
      %p272 = scmp.lt.s32.totalorder %s269, 7
      %s273 = scalar_select %p272, %s269, 7
      %s274 = smul.addr %s271, 8
      %s275 = sadd.s32 %s273, %s274
      %s276 = smul.addr %s275, 4
      %s277 = scalar_lea.vmem %s2, %s276
      %s278 = smul.u32 8, %s21
      %s279 = smul.u32 8, %s20
      %p280 = scmp.lt.s32.totalorder %s19, 1
      %s281 = scalar_select %p280, %s19, 1
      %p282 = scmp.lt.s32.totalorder %s279, 7
      %s283 = scalar_select %p282, %s279, 7
      %s284 = smul.addr %s281, 8
      %s285 = sadd.s32 %s283, %s284
      %s286 = smul.addr %s285, 4
      %s287 = scalar_lea.vmem %s3, %s286
      %s288 = smul.u32 8, %s20
      %p290 = scmp.eq.s32.totalorder %s21, 0
      // Predicated region
      $region33: #{attention_forward.4} parent=31 // pred_check
        %p291 = pneg %p290
      $region34: #{attention_forward.4} parent=31 // pred_check_branch
        %293 = sbr.rel (%p291) target = $region36
      $region35: #{attention_forward.4} parent=31 // pred_region
        %vm294 = vcmask 15360
        %295 = vst.msk [vmem:[#allocation2] sm:$0xff] %vm294, -inf
        %296 = vst.msk [vmem:[#allocation2 + $0x8] sm:$0xff] %vm294, -inf
        %297 = vst.msk [vmem:[#allocation2 + $0x10] sm:$0xff] %vm294, -inf
        %298 = vst.msk [vmem:[#allocation2 + $0x18] sm:$0xff] %vm294, -inf
        %299 = vst.msk [vmem:[#allocation2 + $0x20] sm:$0xff] %vm294, -inf
        %300 = vst.msk [vmem:[#allocation2 + $0x28] sm:$0xff] %vm294, -inf
        %301 = vst.msk [vmem:[#allocation2 + $0x30] sm:$0xff] %vm294, -inf
        %302 = vst.msk [vmem:[#allocation2 + $0x38] sm:$0xff] %vm294, -inf
        %303 = vst.msk [vmem:[#allocation3] sm:$0xff] %vm294, 0.0
        %304 = vst.msk [vmem:[#allocation3 + $0x8] sm:$0xff] %vm294, 0.0
        %305 = vst.msk [vmem:[#allocation3 + $0x10] sm:$0xff] %vm294, 0.0
        %306 = vst.msk [vmem:[#allocation3 + $0x18] sm:$0xff] %vm294, 0.0
        %307 = vst.msk [vmem:[#allocation3 + $0x20] sm:$0xff] %vm294, 0.0
        %308 = vst.msk [vmem:[#allocation3 + $0x28] sm:$0xff] %vm294, 0.0
        %309 = vst.msk [vmem:[#allocation3 + $0x30] sm:$0xff] %vm294, 0.0
        %310 = vst.msk [vmem:[#allocation3 + $0x38] sm:$0xff] %vm294, 0.0
        %vm311 = vcmask 523264
        %312 = vst.msk [vmem:[#allocation4] sm:$0xff] %vm311, 0.0
        %313 = vst.msk [vmem:[#allocation4 + $0x8] sm:$0xff] %vm311, 0.0
        %314 = vst.msk [vmem:[#allocation4 + $0x10] sm:$0xff] %vm311, 0.0
        %315 = vst.msk [vmem:[#allocation4 + $0x18] sm:$0xff] %vm311, 0.0
        %316 = vst.msk [vmem:[#allocation4 + $0x20] sm:$0xff] %vm311, 0.0
        %317 = vst.msk [vmem:[#allocation4 + $0x28] sm:$0xff] %vm311, 0.0
        %318 = vst.msk [vmem:[#allocation4 + $0x30] sm:$0xff] %vm311, 0.0
        %319 = vst.msk [vmem:[#allocation4 + $0x38] sm:$0xff] %vm311, 0.0
      $region36: #{attention_forward.4} parent=31 // pred_fallthru
        _
      %v320 = vld [vmem:[%s257] sm:$0xf]
      %v321 = vld [vmem:[%s257 + $0x4] sm:$0xf]
      %v322 = vld [vmem:[%s257 + $0x8] sm:$0xf]
      %v323 = vld [vmem:[%s257 + $0xc] sm:$0xf]
      %v324 = vld [vmem:[%s257 + $0x10] sm:$0xf]
      %v325 = vld [vmem:[%s257 + $0x14] sm:$0xf]
      %v326 = vld [vmem:[%s257 + $0x18] sm:$0xf]
      %v327 = vld [vmem:[%s257 + $0x1c] sm:$0xf]
      %v328 = vld [vmem:[%s267] sm:$0xf]
      %v329 = vld [vmem:[%s267 + $0x4] sm:$0xf]
      %v330 = vld [vmem:[%s267 + $0x8] sm:$0xf]
      %v331 = vld [vmem:[%s267 + $0xc] sm:$0xf]
      %v332 = vld [vmem:[%s267 + $0x10] sm:$0xf]
      %v333 = vld [vmem:[%s267 + $0x14] sm:$0xf]
      %v334 = vld [vmem:[%s267 + $0x18] sm:$0xf]
      %v335 = vld [vmem:[%s267 + $0x1c] sm:$0xf]
      %v344 = vunpack.c.l.b16 %v320
      %v345 = vunpack.c.l.b16 %v321
      %v346 = vunpack.c.l.b16 %v322
      %v347 = vunpack.c.l.b16 %v323
      %v348 = vunpack.c.l.b16 %v324
      %v349 = vunpack.c.l.b16 %v325
      %v350 = vunpack.c.l.b16 %v326
      %v351 = vunpack.c.l.b16 %v327
      %v352 = vpack.c.b16 %v345, %v344
      %v353 = vpack.c.b16 %v347, %v346
      %v354 = vpack.c.b16 %v349, %v348
      %v355 = vpack.c.b16 %v351, %v350
      %v364 = vunpack.c.l.b16 %v328
      %v365 = vunpack.c.l.b16 %v329
      %v366 = vunpack.c.l.b16 %v330
      %v367 = vunpack.c.l.b16 %v331
      %v368 = vunpack.c.l.b16 %v332
      %v369 = vunpack.c.l.b16 %v333
      %v370 = vunpack.c.l.b16 %v334
      %v371 = vunpack.c.l.b16 %v335
      %v372 = vpack.c.b16 %v365, %v364
      %v373 = vpack.c.b16 %v367, %v366
      %v374 = vpack.c.b16 %v369, %v368
      %v375 = vpack.c.b16 %v371, %v370
      %vm376 = vcmask 261120
      %v378 = vsel %vm376, %v352, 0
      %v381 = vsel %vm376, %v353, 0
      %v384 = vsel %vm376, %v354, 0
      %v387 = vsel %vm376, %v355, 0
      %v390 = vsel %vm376, %v372, 0
      %v393 = vsel %vm376, %v373, 0
      %v396 = vsel %vm376, %v374, 0
      %v399 = vsel %vm376, %v375, 0
      %401 = vmatprep.subr.bf16.mxu0 0
      %402 = vmatpush1.bf16.xpose.msra.mxu0 0
      %403 = vmatprep.subr.bf16.mxu0 0
      %404 = vmatpush1.bf16.xpose.msra.mxu0 0
      %405 = vmatprep.subr.bf16.mxu0 0
      %406 = vmatpush1.bf16.xpose.msra.mxu0 0
      %407 = vmatprep.subr.bf16.mxu0 0
      %408 = vmatpush1.bf16.xpose.msra.mxu0 0
      %409 = vmatprep.subr.bf16.mxu0 0
      %410 = vmatpush1.bf16.xpose.msra.mxu0 %v399
      %411 = vmatprep.subr.bf16.mxu0 0
      %412 = vmatpush1.bf16.xpose.msra.mxu0 %v396
      %413 = vmatprep.subr.bf16.mxu0 0
      %414 = vmatpush1.bf16.xpose.msra.mxu0 %v393
      %415 = vmatprep.subr.bf16.mxu0 0
      %416 = vmatpush1.bf16.xpose.msra.mxu0 %v390
      %417 = vmatprep.subr.bf16.mxu0 0
      %418 = vmatpush2.bf16.xpose.msra.mxu0 0
      %419 = vmatprep.subr.bf16.mxu0 0
      %420 = vmatpush2.bf16.xpose.msra.mxu0 0
      %421 = vmatprep.subr.bf16.mxu0 0
      %422 = vmatpush2.bf16.xpose.msra.mxu0 0
      %423 = vmatprep.subr.bf16.mxu0 0
      %424 = vmatpush2.bf16.xpose.msra.mxu0 0
      %425 = vmatprep.subr.bf16.mxu0 0
      %426 = vmatpush2.bf16.xpose.msra.mxu0 0
      %427 = vmatprep.subr.bf16.mxu0 0
      %428 = vmatpush2.bf16.xpose.msra.mxu0 0
      %429 = vmatprep.subr.bf16.mxu0 0
      %430 = vmatpush2.bf16.xpose.msra.mxu0 0
      %431 = vmatprep.subr.bf16.mxu0 0
      %432 = vmatpush2.bf16.xpose.msra.mxu0 0
      %433 = vmatprep.mubr.bf16.mxu0 0
      %434 = vmatmul.mubr.bf16.gmra.mxu0 %v378
      %v435 = vpop.f32.mrf.mxu0
      %v436 = vadd.f32 0.0, %v435
      %v437 = vpop.f32.mrf.mxu0
      %v438 = vpop.f32.mrf.mxu0
      %v439 = vadd.f32 0.0, %v438
      %v440 = vpop.f32.mrf.mxu0
      %441 = vmatprep.mubr.bf16.mxu0 0
      %442 = vmatmul.mubr.bf16.gmra.mxu0 %v381
      %v443 = vpop.f32.mrf.mxu0
      %v444 = vadd.f32 0.0, %v443
      %v445 = vpop.f32.mrf.mxu0
      %v446 = vpop.f32.mrf.mxu0
      %v447 = vadd.f32 0.0, %v446
      %v448 = vpop.f32.mrf.mxu0
      %449 = vmatprep.mubr.bf16.mxu0 0
      %450 = vmatmul.mubr.bf16.gmra.mxu0 %v384
      %v451 = vpop.f32.mrf.mxu0
      %v452 = vadd.f32 0.0, %v451
      %v453 = vpop.f32.mrf.mxu0
      %v454 = vpop.f32.mrf.mxu0
      %v455 = vadd.f32 0.0, %v454
      %v456 = vpop.f32.mrf.mxu0
      %457 = vmatprep.mubr.bf16.mxu0 0
      %458 = vmatmul.mubr.bf16.gmra.mxu0 %v387
      %v459 = vpop.f32.mrf.mxu0
      %v460 = vadd.f32 0.0, %v459
      %v461 = vpop.f32.mrf.mxu0
      %v462 = vpop.f32.mrf.mxu0
      %v463 = vadd.f32 0.0, %v462
      %v464 = vpop.f32.mrf.mxu0
      %465 = vdwg.mxu0
      %v466 = vld [vmem:[#allocation2] sm:$0xff]
      %v467 = vld [vmem:[#allocation2 + $0x8] sm:$0xff]
      %v468 = vld [vmem:[#allocation2 + $0x10] sm:$0xff]
      %v469 = vld [vmem:[#allocation2 + $0x18] sm:$0xff]
      %v470 = vld [vmem:[#allocation2 + $0x20] sm:$0xff]
      %v471 = vld [vmem:[#allocation2 + $0x28] sm:$0xff]
      %v472 = vld [vmem:[#allocation2 + $0x30] sm:$0xff]
      %v473 = vld [vmem:[#allocation2 + $0x38] sm:$0xff]
      %vm474 = vcmask 523264
      %v475 = vsel %vm474, %v436, -inf
      %476 = vmax.xlane.f32.xlu0 %v475
      %v477 = vpop.xlane.xlu0 %476
      %v478 = vsel %vm474, %v439, -inf
      %479 = vmax.xlane.f32.xlu0 %v478
      %v480 = vpop.xlane.xlu0 %479
      %v481 = vsel %vm474, %v444, -inf
      %482 = vmax.xlane.f32.xlu0 %v481
      %v483 = vpop.xlane.xlu0 %482
      %v484 = vsel %vm474, %v447, -inf
      %485 = vmax.xlane.f32.xlu0 %v484
      %v486 = vpop.xlane.xlu0 %485
      %v487 = vsel %vm474, %v452, -inf
      %488 = vmax.xlane.f32.xlu0 %v487
      %v489 = vpop.xlane.xlu0 %488
      %v490 = vsel %vm474, %v455, -inf
      %491 = vmax.xlane.f32.xlu0 %v490
      %v492 = vpop.xlane.xlu0 %491
      %v493 = vsel %vm474, %v460, -inf
      %494 = vmax.xlane.f32.xlu0 %v493
      %v495 = vpop.xlane.xlu0 %494
      %v496 = vsel %vm474, %v463, -inf
      %497 = vmax.xlane.f32.xlu0 %v496
      %v498 = vpop.xlane.xlu0 %497
      %v499 = vmax.f32 %v466, %v477
      %v500 = vmax.f32 %v467, %v480
      %v501 = vmax.f32 %v468, %v483
      %v502 = vmax.f32 %v469, %v486
      %v503 = vmax.f32 %v470, %v489
      %v504 = vmax.f32 %v471, %v492
      %v505 = vmax.f32 %v472, %v495
      %v506 = vmax.f32 %v473, %v498
      %v507 = vsub.f32 %v466, %v499
      %v508 = vsub.f32 %v467, %v500
      %v509 = vsub.f32 %v468, %v501
      %v510 = vsub.f32 %v469, %v502
      %v511 = vsub.f32 %v470, %v503
      %v512 = vsub.f32 %v471, %v504
      %v513 = vsub.f32 %v472, %v505
      %v514 = vsub.f32 %v473, %v506
      %v515 = vmul.f32 %v507, 1.442695
      %v516 = vpow.pop %v515
      %v517 = vmul.f32 %v508, 1.442695
      %v518 = vpow.pop %v517
      %v519 = vmul.f32 %v509, 1.442695
      %v520 = vpow.pop %v519
      %v521 = vmul.f32 %v510, 1.442695
      %v522 = vpow.pop %v521
      %v523 = vmul.f32 %v511, 1.442695
      %v524 = vpow.pop %v523
      %v525 = vmul.f32 %v512, 1.442695
      %v526 = vpow.pop %v525
      %v527 = vmul.f32 %v513, 1.442695
      %v528 = vpow.pop %v527
      %v529 = vmul.f32 %v514, 1.442695
      %v530 = vpow.pop %v529
      %532 = vset.pattern.permute.xlu0 0
      %533 = vperm.xlu0 %532, %v499
      %v534 = vpop.permute.xlu0 %533
      %537 = vset.pattern.permute.xlu0 0
      %538 = vperm.xlu0 %537, %v500
      %v539 = vpop.permute.xlu0 %538
      %542 = vset.pattern.permute.xlu0 0
      %543 = vperm.xlu0 %542, %v501
      %v544 = vpop.permute.xlu0 %543
      %547 = vset.pattern.permute.xlu0 0
      %548 = vperm.xlu0 %547, %v502
      %v549 = vpop.permute.xlu0 %548
      %552 = vset.pattern.permute.xlu0 0
      %553 = vperm.xlu0 %552, %v503
      %v554 = vpop.permute.xlu0 %553
      %557 = vset.pattern.permute.xlu0 0
      %558 = vperm.xlu0 %557, %v504
      %v559 = vpop.permute.xlu0 %558
      %562 = vset.pattern.permute.xlu0 0
      %563 = vperm.xlu0 %562, %v505
      %v564 = vpop.permute.xlu0 %563
      %567 = vset.pattern.permute.xlu0 0
      %568 = vperm.xlu0 %567, %v506
      %v569 = vpop.permute.xlu0 %568
      %v571 = vsub.f32 %v436, %v534
      %v572 = vsub.f32 %v439, %v539
      %v573 = vsub.f32 %v444, %v544
      %v574 = vsub.f32 %v447, %v549
      %v575 = vsub.f32 %v452, %v554
      %v576 = vsub.f32 %v455, %v559
      %v577 = vsub.f32 %v460, %v564
      %v578 = vsub.f32 %v463, %v569
      %v579 = vmul.f32 %v571, 1.442695
      %v580 = vpow.pop %v579
      %v581 = vmul.f32 %v572, 1.442695
      %v582 = vpow.pop %v581
      %v583 = vmul.f32 %v573, 1.442695
      %v584 = vpow.pop %v583
      %v585 = vmul.f32 %v574, 1.442695
      %v586 = vpow.pop %v585
      %v587 = vmul.f32 %v575, 1.442695
      %v588 = vpow.pop %v587
      %v589 = vmul.f32 %v576, 1.442695
      %v590 = vpow.pop %v589
      %v591 = vmul.f32 %v577, 1.442695
      %v592 = vpow.pop %v591
      %v593 = vmul.f32 %v578, 1.442695
      %v594 = vpow.pop %v593
      %v595 = vld [vmem:[#allocation3] sm:$0xff]
      %v596 = vld [vmem:[#allocation3 + $0x8] sm:$0xff]
      %v597 = vld [vmem:[#allocation3 + $0x10] sm:$0xff]
      %v598 = vld [vmem:[#allocation3 + $0x18] sm:$0xff]
      %v599 = vld [vmem:[#allocation3 + $0x20] sm:$0xff]
      %v600 = vld [vmem:[#allocation3 + $0x28] sm:$0xff]
      %v601 = vld [vmem:[#allocation3 + $0x30] sm:$0xff]
      %v602 = vld [vmem:[#allocation3 + $0x38] sm:$0xff]
      %v603 = vmul.f32 %v516, %v595
      %v604 = vmul.f32 %v518, %v596
      %v605 = vmul.f32 %v520, %v597
      %v606 = vmul.f32 %v522, %v598
      %v607 = vmul.f32 %v524, %v599
      %v608 = vmul.f32 %v526, %v600
      %v609 = vmul.f32 %v528, %v601
      %v610 = vmul.f32 %v530, %v602
      %v611 = vsel %vm474, %v580, 0.0
      %612 = vadd.xlane.f32.xlu0 %v611
      %v613 = vpop.xlane.xlu0 %612
      %v614 = vsel %vm474, %v582, 0.0
      %615 = vadd.xlane.f32.xlu0 %v614
      %v616 = vpop.xlane.xlu0 %615
      %v617 = vsel %vm474, %v584, 0.0
      %618 = vadd.xlane.f32.xlu0 %v617
      %v619 = vpop.xlane.xlu0 %618
      %v620 = vsel %vm474, %v586, 0.0
      %621 = vadd.xlane.f32.xlu0 %v620
      %v622 = vpop.xlane.xlu0 %621
      %v623 = vsel %vm474, %v588, 0.0
      %624 = vadd.xlane.f32.xlu0 %v623
      %v625 = vpop.xlane.xlu0 %624
      %v626 = vsel %vm474, %v590, 0.0
      %627 = vadd.xlane.f32.xlu0 %v626
      %v628 = vpop.xlane.xlu0 %627
      %v629 = vsel %vm474, %v592, 0.0
      %630 = vadd.xlane.f32.xlu0 %v629
      %v631 = vpop.xlane.xlu0 %630
      %v632 = vsel %vm474, %v594, 0.0
      %633 = vadd.xlane.f32.xlu0 %v632
      %v634 = vpop.xlane.xlu0 %633
      %v635 = vadd.f32 %v603, %v613
      %v636 = vadd.f32 %v604, %v616
      %v637 = vadd.f32 %v605, %v619
      %v638 = vadd.f32 %v606, %v622
      %v639 = vadd.f32 %v607, %v625
      %v640 = vadd.f32 %v608, %v628
      %v641 = vadd.f32 %v609, %v631
      %v642 = vadd.f32 %v610, %v634
      %vm643 = vcmask 7168
      %644 = vst.msk [vmem:[#allocation3] sm:$0xff] %vm643, %v635
      %645 = vst.msk [vmem:[#allocation3 + $0x8] sm:$0xff] %vm643, %v636
      %646 = vst.msk [vmem:[#allocation3 + $0x10] sm:$0xff] %vm643, %v637
      %647 = vst.msk [vmem:[#allocation3 + $0x18] sm:$0xff] %vm643, %v638
      %648 = vst.msk [vmem:[#allocation3 + $0x20] sm:$0xff] %vm643, %v639
      %649 = vst.msk [vmem:[#allocation3 + $0x28] sm:$0xff] %vm643, %v640
      %650 = vst.msk [vmem:[#allocation3 + $0x30] sm:$0xff] %vm643, %v641
      %651 = vst.msk [vmem:[#allocation3 + $0x38] sm:$0xff] %vm643, %v642
      %v652 = vpack.c.bf16 %v582, %v580
      %v653 = vpack.c.bf16 %v586, %v584
      %v654 = vpack.c.bf16 %v590, %v588
      %v655 = vpack.c.bf16 %v594, %v592
      %v656 = vld [vmem:[%s277] sm:$0xf]
      %v657 = vld [vmem:[%s277 + $0x4] sm:$0xf]
      %v658 = vld [vmem:[%s277 + $0x8] sm:$0xf]
      %v659 = vld [vmem:[%s277 + $0xc] sm:$0xf]
      %v660 = vld [vmem:[%s277 + $0x10] sm:$0xf]
      %v661 = vld [vmem:[%s277 + $0x14] sm:$0xf]
      %v662 = vld [vmem:[%s277 + $0x18] sm:$0xf]
      %v663 = vld [vmem:[%s277 + $0x1c] sm:$0xf]
      %v672 = vunpack.c.l.b16 %v656
      %v673 = vunpack.c.l.b16 %v657
      %v674 = vunpack.c.l.b16 %v658
      %v675 = vunpack.c.l.b16 %v659
      %v676 = vunpack.c.l.b16 %v660
      %v677 = vunpack.c.l.b16 %v661
      %v678 = vunpack.c.l.b16 %v662
      %v679 = vunpack.c.l.b16 %v663
      %v680 = vpack.c.b16 %v673, %v672
      %v681 = vpack.c.b16 %v675, %v674
      %v682 = vpack.c.b16 %v677, %v676
      %v683 = vpack.c.b16 %v679, %v678
      %v689 = vsel %vm474, %v652, 0
      %v692 = vsel %vm474, %v653, 0
      %v695 = vsel %vm474, %v654, 0
      %v698 = vsel %vm474, %v655, 0
      %700 = vmatprep.subr.bf16.mxu0 0
      %701 = vmatpush1.bf16.msra.mxu0 0
      %702 = vmatprep.subr.bf16.mxu0 0
      %703 = vmatpush1.bf16.msra.mxu0 0
      %704 = vmatprep.subr.bf16.mxu0 0
      %705 = vmatpush1.bf16.msra.mxu0 0
      %706 = vmatprep.subr.bf16.mxu0 0
      %707 = vmatpush1.bf16.msra.mxu0 0
      %708 = vmatprep.subr.bf16.mxu0 0
      %709 = vmatpush1.bf16.msra.mxu0 %v683
      %710 = vmatprep.subr.bf16.mxu0 0
      %711 = vmatpush1.bf16.msra.mxu0 %v682
      %712 = vmatprep.subr.bf16.mxu0 0
      %713 = vmatpush1.bf16.msra.mxu0 %v681
      %714 = vmatprep.subr.bf16.mxu0 0
      %715 = vmatpush1.bf16.msra.mxu0 %v680
      %716 = vmatprep.subr.bf16.mxu0 0
      %717 = vmatpush2.bf16.msra.mxu0 0
      %718 = vmatprep.subr.bf16.mxu0 0
      %719 = vmatpush2.bf16.msra.mxu0 0
      %720 = vmatprep.subr.bf16.mxu0 0
      %721 = vmatpush2.bf16.msra.mxu0 0
      %722 = vmatprep.subr.bf16.mxu0 0
      %723 = vmatpush2.bf16.msra.mxu0 0
      %724 = vmatprep.subr.bf16.mxu0 0
      %725 = vmatpush2.bf16.msra.mxu0 0
      %726 = vmatprep.subr.bf16.mxu0 0
      %727 = vmatpush2.bf16.msra.mxu0 0
      %728 = vmatprep.subr.bf16.mxu0 0
      %729 = vmatpush2.bf16.msra.mxu0 0
      %730 = vmatprep.subr.bf16.mxu0 0
      %731 = vmatpush2.bf16.msra.mxu0 0
      %732 = vmatprep.mubr.bf16.mxu0 0
      %733 = vmatmul.mubr.bf16.gmra.mxu0 %v689
      %v734 = vpop.f32.mrf.mxu0
      %v735 = vadd.f32 0.0, %v734
      %v736 = vpop.f32.mrf.mxu0
      %v737 = vpop.f32.mrf.mxu0
      %v738 = vadd.f32 0.0, %v737
      %v739 = vpop.f32.mrf.mxu0
      %740 = vmatprep.mubr.bf16.mxu0 0
      %741 = vmatmul.mubr.bf16.gmra.mxu0 %v692
      %v742 = vpop.f32.mrf.mxu0
      %v743 = vadd.f32 0.0, %v742
      %v744 = vpop.f32.mrf.mxu0
      %v745 = vpop.f32.mrf.mxu0
      %v746 = vadd.f32 0.0, %v745
      %v747 = vpop.f32.mrf.mxu0
      %748 = vmatprep.mubr.bf16.mxu0 0
      %749 = vmatmul.mubr.bf16.gmra.mxu0 %v695
      %v750 = vpop.f32.mrf.mxu0
      %v751 = vadd.f32 0.0, %v750
      %v752 = vpop.f32.mrf.mxu0
      %v753 = vpop.f32.mrf.mxu0
      %v754 = vadd.f32 0.0, %v753
      %v755 = vpop.f32.mrf.mxu0
      %756 = vmatprep.mubr.bf16.mxu0 0
      %757 = vmatmul.mubr.bf16.gmra.mxu0 %v698
      %v758 = vpop.f32.mrf.mxu0
      %v759 = vadd.f32 0.0, %v758
      %v760 = vpop.f32.mrf.mxu0
      %v761 = vpop.f32.mrf.mxu0
      %v762 = vadd.f32 0.0, %v761
      %v763 = vpop.f32.mrf.mxu0
      %764 = vdwg.mxu0
      %v765 = vld [vmem:[#allocation4] sm:$0xff]
      %v766 = vld [vmem:[#allocation4 + $0x8] sm:$0xff]
      %v767 = vld [vmem:[#allocation4 + $0x10] sm:$0xff]
      %v768 = vld [vmem:[#allocation4 + $0x18] sm:$0xff]
      %v769 = vld [vmem:[#allocation4 + $0x20] sm:$0xff]
      %v770 = vld [vmem:[#allocation4 + $0x28] sm:$0xff]
      %v771 = vld [vmem:[#allocation4 + $0x30] sm:$0xff]
      %v772 = vld [vmem:[#allocation4 + $0x38] sm:$0xff]
      %774 = vset.pattern.permute.xlu0 0
      %775 = vperm.xlu0 %774, %v516
      %v776 = vpop.permute.xlu0 %775
      %779 = vset.pattern.permute.xlu0 0
      %780 = vperm.xlu0 %779, %v518
      %v781 = vpop.permute.xlu0 %780
      %784 = vset.pattern.permute.xlu0 0
      %785 = vperm.xlu0 %784, %v520
      %v786 = vpop.permute.xlu0 %785
      %789 = vset.pattern.permute.xlu0 0
      %790 = vperm.xlu0 %789, %v522
      %v791 = vpop.permute.xlu0 %790
      %794 = vset.pattern.permute.xlu0 0
      %795 = vperm.xlu0 %794, %v524
      %v796 = vpop.permute.xlu0 %795
      %799 = vset.pattern.permute.xlu0 0
      %800 = vperm.xlu0 %799, %v526
      %v801 = vpop.permute.xlu0 %800
      %804 = vset.pattern.permute.xlu0 0
      %805 = vperm.xlu0 %804, %v528
      %v806 = vpop.permute.xlu0 %805
      %809 = vset.pattern.permute.xlu0 0
      %810 = vperm.xlu0 %809, %v530
      %v811 = vpop.permute.xlu0 %810
      %v813 = vmul.f32 %v776, %v765
      %v814 = vmul.f32 %v781, %v766
      %v815 = vmul.f32 %v786, %v767
      %v816 = vmul.f32 %v791, %v768
      %v817 = vmul.f32 %v796, %v769
      %v818 = vmul.f32 %v801, %v770
      %v819 = vmul.f32 %v806, %v771
      %v820 = vmul.f32 %v811, %v772
      %v821 = vadd.f32 %v813, %v735
      %v822 = vadd.f32 %v814, %v738
      %v823 = vadd.f32 %v815, %v743
      %v824 = vadd.f32 %v816, %v746
      %v825 = vadd.f32 %v817, %v751
      %v826 = vadd.f32 %v818, %v754
      %v827 = vadd.f32 %v819, %v759
      %v828 = vadd.f32 %v820, %v762
      %829 = vst.msk [vmem:[#allocation4] sm:$0xff] %vm376, %v821
      %830 = vst.msk [vmem:[#allocation4 + $0x8] sm:$0xff] %vm376, %v822
      %831 = vst.msk [vmem:[#allocation4 + $0x10] sm:$0xff] %vm376, %v823
      %832 = vst.msk [vmem:[#allocation4 + $0x18] sm:$0xff] %vm376, %v824
      %833 = vst.msk [vmem:[#allocation4 + $0x20] sm:$0xff] %vm376, %v825
      %834 = vst.msk [vmem:[#allocation4 + $0x28] sm:$0xff] %vm376, %v826
      %835 = vst.msk [vmem:[#allocation4 + $0x30] sm:$0xff] %vm376, %v827
      %836 = vst.msk [vmem:[#allocation4 + $0x38] sm:$0xff] %vm376, %v828
      %837 = vst.msk [vmem:[#allocation2] sm:$0xff] %vm643, %v499
      %838 = vst.msk [vmem:[#allocation2 + $0x8] sm:$0xff] %vm643, %v500
      %839 = vst.msk [vmem:[#allocation2 + $0x10] sm:$0xff] %vm643, %v501
      %840 = vst.msk [vmem:[#allocation2 + $0x18] sm:$0xff] %vm643, %v502
      %841 = vst.msk [vmem:[#allocation2 + $0x20] sm:$0xff] %vm643, %v503
      %842 = vst.msk [vmem:[#allocation2 + $0x28] sm:$0xff] %vm643, %v504
      %843 = vst.msk [vmem:[#allocation2 + $0x30] sm:$0xff] %vm643, %v505
      %844 = vst.msk [vmem:[#allocation2 + $0x38] sm:$0xff] %vm643, %v506
      %v845 = vld [vmem:[%s257] sm:$0xf]
      %v846 = vld [vmem:[%s257 + $0x4] sm:$0xf]
      %v847 = vld [vmem:[%s257 + $0x8] sm:$0xf]
      %v848 = vld [vmem:[%s257 + $0xc] sm:$0xf]
      %v849 = vld [vmem:[%s257 + $0x10] sm:$0xf]
      %v850 = vld [vmem:[%s257 + $0x14] sm:$0xf]
      %v851 = vld [vmem:[%s257 + $0x18] sm:$0xf]
      %v852 = vld [vmem:[%s257 + $0x1c] sm:$0xf]
      %v853 = vld [vmem:[%s267] sm:$0xf]
      %v854 = vld [vmem:[%s267 + $0x4] sm:$0xf]
      %v855 = vld [vmem:[%s267 + $0x8] sm:$0xf]
      %v856 = vld [vmem:[%s267 + $0xc] sm:$0xf]
      %v857 = vld [vmem:[%s267 + $0x10] sm:$0xf]
      %v858 = vld [vmem:[%s267 + $0x14] sm:$0xf]
      %v859 = vld [vmem:[%s267 + $0x18] sm:$0xf]
      %v860 = vld [vmem:[%s267 + $0x1c] sm:$0xf]
      %v869 = vunpack.c.l.b16 %v845
      %v870 = vunpack.c.l.b16 %v846
      %v871 = vunpack.c.l.b16 %v847
      %v872 = vunpack.c.l.b16 %v848
      %v873 = vunpack.c.l.b16 %v849
      %v874 = vunpack.c.l.b16 %v850
      %v875 = vunpack.c.l.b16 %v851
      %v876 = vunpack.c.l.b16 %v852
      %v877 = vpack.c.b16 %v870, %v869
      %v878 = vpack.c.b16 %v872, %v871
      %v879 = vpack.c.b16 %v874, %v873
      %v880 = vpack.c.b16 %v876, %v875
      %881 = vrot.lane.b32.xlu0 %v877, 96
      %v882 = vpop.permute.xlu0 %881
      %883 = vrot.lane.b32.xlu0 %v878, 96
      %v884 = vpop.permute.xlu0 %883
      %885 = vrot.lane.b32.xlu0 %v879, 96
      %v886 = vpop.permute.xlu0 %885
      %887 = vrot.lane.b32.xlu0 %v880, 96
      %v888 = vpop.permute.xlu0 %887
      %v897 = vunpack.c.l.b16 %v853
      %v898 = vunpack.c.l.b16 %v854
      %v899 = vunpack.c.l.b16 %v855
      %v900 = vunpack.c.l.b16 %v856
      %v901 = vunpack.c.l.b16 %v857
      %v902 = vunpack.c.l.b16 %v858
      %v903 = vunpack.c.l.b16 %v859
      %v904 = vunpack.c.l.b16 %v860
      %v905 = vpack.c.b16 %v898, %v897
      %v906 = vpack.c.b16 %v900, %v899
      %v907 = vpack.c.b16 %v902, %v901
      %v908 = vpack.c.b16 %v904, %v903
      %909 = vrot.lane.b32.xlu0 %v905, 96
      %v910 = vpop.permute.xlu0 %909
      %911 = vrot.lane.b32.xlu0 %v906, 96
      %v912 = vpop.permute.xlu0 %911
      %913 = vrot.lane.b32.xlu0 %v907, 96
      %v914 = vpop.permute.xlu0 %913
      %915 = vrot.lane.b32.xlu0 %v908, 96
      %v916 = vpop.permute.xlu0 %915
      %v918 = vsel %vm376, %v882, 0
      %v921 = vsel %vm376, %v884, 0
      %v924 = vsel %vm376, %v886, 0
      %v927 = vsel %vm376, %v888, 0
      %v930 = vsel %vm376, %v910, 0
      %v933 = vsel %vm376, %v912, 0
      %v936 = vsel %vm376, %v914, 0
      %v939 = vsel %vm376, %v916, 0
      %941 = vmatprep.subr.bf16.mxu0 0
      %942 = vmatpush1.bf16.xpose.msra.mxu0 0
      %943 = vmatprep.subr.bf16.mxu0 0
      %944 = vmatpush1.bf16.xpose.msra.mxu0 0
      %945 = vmatprep.subr.bf16.mxu0 0
      %946 = vmatpush1.bf16.xpose.msra.mxu0 0
      %947 = vmatprep.subr.bf16.mxu0 0
      %948 = vmatpush1.bf16.xpose.msra.mxu0 0
      %949 = vmatprep.subr.bf16.mxu0 0
      %950 = vmatpush1.bf16.xpose.msra.mxu0 %v939
      %951 = vmatprep.subr.bf16.mxu0 0
      %952 = vmatpush1.bf16.xpose.msra.mxu0 %v936
      %953 = vmatprep.subr.bf16.mxu0 0
      %954 = vmatpush1.bf16.xpose.msra.mxu0 %v933
      %955 = vmatprep.subr.bf16.mxu0 0
      %956 = vmatpush1.bf16.xpose.msra.mxu0 %v930
      %957 = vmatprep.subr.bf16.mxu0 0
      %958 = vmatpush2.bf16.xpose.msra.mxu0 0
      %959 = vmatprep.subr.bf16.mxu0 0
      %960 = vmatpush2.bf16.xpose.msra.mxu0 0
      %961 = vmatprep.subr.bf16.mxu0 0
      %962 = vmatpush2.bf16.xpose.msra.mxu0 0
      %963 = vmatprep.subr.bf16.mxu0 0
      %964 = vmatpush2.bf16.xpose.msra.mxu0 0
      %965 = vmatprep.subr.bf16.mxu0 0
      %966 = vmatpush2.bf16.xpose.msra.mxu0 0
      %967 = vmatprep.subr.bf16.mxu0 0
      %968 = vmatpush2.bf16.xpose.msra.mxu0 0
      %969 = vmatprep.subr.bf16.mxu0 0
      %970 = vmatpush2.bf16.xpose.msra.mxu0 0
      %971 = vmatprep.subr.bf16.mxu0 0
      %972 = vmatpush2.bf16.xpose.msra.mxu0 0
      %973 = vmatprep.mubr.bf16.mxu0 0
      %974 = vmatmul.mubr.bf16.gmra.mxu0 %v918
      %v975 = vpop.f32.mrf.mxu0
      %v976 = vadd.f32 0.0, %v975
      %v977 = vpop.f32.mrf.mxu0
      %v978 = vpop.f32.mrf.mxu0
      %v979 = vadd.f32 0.0, %v978
      %v980 = vpop.f32.mrf.mxu0
      %981 = vmatprep.mubr.bf16.mxu0 0
      %982 = vmatmul.mubr.bf16.gmra.mxu0 %v921
      %v983 = vpop.f32.mrf.mxu0
      %v984 = vadd.f32 0.0, %v983
      %v985 = vpop.f32.mrf.mxu0
      %v986 = vpop.f32.mrf.mxu0
      %v987 = vadd.f32 0.0, %v986
      %v988 = vpop.f32.mrf.mxu0
      %989 = vmatprep.mubr.bf16.mxu0 0
      %990 = vmatmul.mubr.bf16.gmra.mxu0 %v924
      %v991 = vpop.f32.mrf.mxu0
      %v992 = vadd.f32 0.0, %v991
      %v993 = vpop.f32.mrf.mxu0
      %v994 = vpop.f32.mrf.mxu0
      %v995 = vadd.f32 0.0, %v994
      %v996 = vpop.f32.mrf.mxu0
      %997 = vmatprep.mubr.bf16.mxu0 0
      %998 = vmatmul.mubr.bf16.gmra.mxu0 %v927
      %v999 = vpop.f32.mrf.mxu0
      %v1000 = vadd.f32 0.0, %v999
      %v1001 = vpop.f32.mrf.mxu0
      %v1002 = vpop.f32.mrf.mxu0
      %v1003 = vadd.f32 0.0, %v1002
      %v1004 = vpop.f32.mrf.mxu0
      %1005 = vdwg.mxu0
      %v1006 = vld [vmem:[#allocation2] sm:$0xff]
      %v1007 = vld [vmem:[#allocation2 + $0x8] sm:$0xff]
      %v1008 = vld [vmem:[#allocation2 + $0x10] sm:$0xff]
      %v1009 = vld [vmem:[#allocation2 + $0x18] sm:$0xff]
      %v1010 = vld [vmem:[#allocation2 + $0x20] sm:$0xff]
      %v1011 = vld [vmem:[#allocation2 + $0x28] sm:$0xff]
      %v1012 = vld [vmem:[#allocation2 + $0x30] sm:$0xff]
      %v1013 = vld [vmem:[#allocation2 + $0x38] sm:$0xff]
      %v1014 = vsel %vm474, %v976, -inf
      %1015 = vmax.xlane.f32.xlu0 %v1014
      %v1016 = vpop.xlane.xlu0 %1015
      %v1017 = vsel %vm474, %v979, -inf
      %1018 = vmax.xlane.f32.xlu0 %v1017
      %v1019 = vpop.xlane.xlu0 %1018
      %v1020 = vsel %vm474, %v984, -inf
      %1021 = vmax.xlane.f32.xlu0 %v1020
      %v1022 = vpop.xlane.xlu0 %1021
      %v1023 = vsel %vm474, %v987, -inf
      %1024 = vmax.xlane.f32.xlu0 %v1023
      %v1025 = vpop.xlane.xlu0 %1024
      %v1026 = vsel %vm474, %v992, -inf
      %1027 = vmax.xlane.f32.xlu0 %v1026
      %v1028 = vpop.xlane.xlu0 %1027
      %v1029 = vsel %vm474, %v995, -inf
      %1030 = vmax.xlane.f32.xlu0 %v1029
      %v1031 = vpop.xlane.xlu0 %1030
      %v1032 = vsel %vm474, %v1000, -inf
      %1033 = vmax.xlane.f32.xlu0 %v1032
      %v1034 = vpop.xlane.xlu0 %1033
      %v1035 = vsel %vm474, %v1003, -inf
      %1036 = vmax.xlane.f32.xlu0 %v1035
      %v1037 = vpop.xlane.xlu0 %1036
      %v1038 = vmax.f32 %v1006, %v1016
      %v1039 = vmax.f32 %v1007, %v1019
      %v1040 = vmax.f32 %v1008, %v1022
      %v1041 = vmax.f32 %v1009, %v1025
      %v1042 = vmax.f32 %v1010, %v1028
      %v1043 = vmax.f32 %v1011, %v1031
      %v1044 = vmax.f32 %v1012, %v1034
      %v1045 = vmax.f32 %v1013, %v1037
      %v1046 = vsub.f32 %v1006, %v1038
      %v1047 = vsub.f32 %v1007, %v1039
      %v1048 = vsub.f32 %v1008, %v1040
      %v1049 = vsub.f32 %v1009, %v1041
      %v1050 = vsub.f32 %v1010, %v1042
      %v1051 = vsub.f32 %v1011, %v1043
      %v1052 = vsub.f32 %v1012, %v1044
      %v1053 = vsub.f32 %v1013, %v1045
      %v1054 = vmul.f32 %v1046, 1.442695
      %v1055 = vpow.pop %v1054
      %v1056 = vmul.f32 %v1047, 1.442695
      %v1057 = vpow.pop %v1056
      %v1058 = vmul.f32 %v1048, 1.442695
      %v1059 = vpow.pop %v1058
      %v1060 = vmul.f32 %v1049, 1.442695
      %v1061 = vpow.pop %v1060
      %v1062 = vmul.f32 %v1050, 1.442695
      %v1063 = vpow.pop %v1062
      %v1064 = vmul.f32 %v1051, 1.442695
      %v1065 = vpow.pop %v1064
      %v1066 = vmul.f32 %v1052, 1.442695
      %v1067 = vpow.pop %v1066
      %v1068 = vmul.f32 %v1053, 1.442695
      %v1069 = vpow.pop %v1068
      %1071 = vset.pattern.permute.xlu0 1
      %1072 = vperm.xlu0 %1071, %v1038
      %v1073 = vpop.permute.xlu0 %1072
      %1076 = vset.pattern.permute.xlu0 1
      %1077 = vperm.xlu0 %1076, %v1039
      %v1078 = vpop.permute.xlu0 %1077
      %1081 = vset.pattern.permute.xlu0 1
      %1082 = vperm.xlu0 %1081, %v1040
      %v1083 = vpop.permute.xlu0 %1082
      %1086 = vset.pattern.permute.xlu0 1
      %1087 = vperm.xlu0 %1086, %v1041
      %v1088 = vpop.permute.xlu0 %1087
      %1091 = vset.pattern.permute.xlu0 1
      %1092 = vperm.xlu0 %1091, %v1042
      %v1093 = vpop.permute.xlu0 %1092
      %1096 = vset.pattern.permute.xlu0 1
      %1097 = vperm.xlu0 %1096, %v1043
      %v1098 = vpop.permute.xlu0 %1097
      %1101 = vset.pattern.permute.xlu0 1
      %1102 = vperm.xlu0 %1101, %v1044
      %v1103 = vpop.permute.xlu0 %1102
      %1106 = vset.pattern.permute.xlu0 1
      %1107 = vperm.xlu0 %1106, %v1045
      %v1108 = vpop.permute.xlu0 %1107
      %v1110 = vsub.f32 %v976, %v1073
      %v1111 = vsub.f32 %v979, %v1078
      %v1112 = vsub.f32 %v984, %v1083
      %v1113 = vsub.f32 %v987, %v1088
      %v1114 = vsub.f32 %v992, %v1093
      %v1115 = vsub.f32 %v995, %v1098
      %v1116 = vsub.f32 %v1000, %v1103
      %v1117 = vsub.f32 %v1003, %v1108
      %v1118 = vmul.f32 %v1110, 1.442695
      %v1119 = vpow.pop %v1118
      %v1120 = vmul.f32 %v1111, 1.442695
      %v1121 = vpow.pop %v1120
      %v1122 = vmul.f32 %v1112, 1.442695
      %v1123 = vpow.pop %v1122
      %v1124 = vmul.f32 %v1113, 1.442695
      %v1125 = vpow.pop %v1124
      %v1126 = vmul.f32 %v1114, 1.442695
      %v1127 = vpow.pop %v1126
      %v1128 = vmul.f32 %v1115, 1.442695
      %v1129 = vpow.pop %v1128
      %v1130 = vmul.f32 %v1116, 1.442695
      %v1131 = vpow.pop %v1130
      %v1132 = vmul.f32 %v1117, 1.442695
      %v1133 = vpow.pop %v1132
      %v1134 = vld [vmem:[#allocation3] sm:$0xff]
      %v1135 = vld [vmem:[#allocation3 + $0x8] sm:$0xff]
      %v1136 = vld [vmem:[#allocation3 + $0x10] sm:$0xff]
      %v1137 = vld [vmem:[#allocation3 + $0x18] sm:$0xff]
      %v1138 = vld [vmem:[#allocation3 + $0x20] sm:$0xff]
      %v1139 = vld [vmem:[#allocation3 + $0x28] sm:$0xff]
      %v1140 = vld [vmem:[#allocation3 + $0x30] sm:$0xff]
      %v1141 = vld [vmem:[#allocation3 + $0x38] sm:$0xff]
      %v1142 = vmul.f32 %v1055, %v1134
      %v1143 = vmul.f32 %v1057, %v1135
      %v1144 = vmul.f32 %v1059, %v1136
      %v1145 = vmul.f32 %v1061, %v1137
      %v1146 = vmul.f32 %v1063, %v1138
      %v1147 = vmul.f32 %v1065, %v1139
      %v1148 = vmul.f32 %v1067, %v1140
      %v1149 = vmul.f32 %v1069, %v1141
      %v1150 = vsel %vm474, %v1119, 0.0
      %1151 = vadd.xlane.f32.xlu0 %v1150
      %v1152 = vpop.xlane.xlu0 %1151
      %v1153 = vsel %vm474, %v1121, 0.0
      %1154 = vadd.xlane.f32.xlu0 %v1153
      %v1155 = vpop.xlane.xlu0 %1154
      %v1156 = vsel %vm474, %v1123, 0.0
      %1157 = vadd.xlane.f32.xlu0 %v1156
      %v1158 = vpop.xlane.xlu0 %1157
      %v1159 = vsel %vm474, %v1125, 0.0
      %1160 = vadd.xlane.f32.xlu0 %v1159
      %v1161 = vpop.xlane.xlu0 %1160
      %v1162 = vsel %vm474, %v1127, 0.0
      %1163 = vadd.xlane.f32.xlu0 %v1162
      %v1164 = vpop.xlane.xlu0 %1163
      %v1165 = vsel %vm474, %v1129, 0.0
      %1166 = vadd.xlane.f32.xlu0 %v1165
      %v1167 = vpop.xlane.xlu0 %1166
      %v1168 = vsel %vm474, %v1131, 0.0
      %1169 = vadd.xlane.f32.xlu0 %v1168
      %v1170 = vpop.xlane.xlu0 %1169
      %v1171 = vsel %vm474, %v1133, 0.0
      %1172 = vadd.xlane.f32.xlu0 %v1171
      %v1173 = vpop.xlane.xlu0 %1172
      %v1174 = vadd.f32 %v1142, %v1152
      %v1175 = vadd.f32 %v1143, %v1155
      %v1176 = vadd.f32 %v1144, %v1158
      %v1177 = vadd.f32 %v1145, %v1161
      %v1178 = vadd.f32 %v1146, %v1164
      %v1179 = vadd.f32 %v1147, %v1167
      %v1180 = vadd.f32 %v1148, %v1170
      %v1181 = vadd.f32 %v1149, %v1173
      %vm1182 = vcmask 15368
      %1183 = vst.msk [vmem:[#allocation3] sm:$0xff] %vm1182, %v1174
      %1184 = vst.msk [vmem:[#allocation3 + $0x8] sm:$0xff] %vm1182, %v1175
      %1185 = vst.msk [vmem:[#allocation3 + $0x10] sm:$0xff] %vm1182, %v1176
      %1186 = vst.msk [vmem:[#allocation3 + $0x18] sm:$0xff] %vm1182, %v1177
      %1187 = vst.msk [vmem:[#allocation3 + $0x20] sm:$0xff] %vm1182, %v1178
      %1188 = vst.msk [vmem:[#allocation3 + $0x28] sm:$0xff] %vm1182, %v1179
      %1189 = vst.msk [vmem:[#allocation3 + $0x30] sm:$0xff] %vm1182, %v1180
      %1190 = vst.msk [vmem:[#allocation3 + $0x38] sm:$0xff] %vm1182, %v1181
      %v1191 = vpack.c.bf16 %v1121, %v1119
      %v1192 = vpack.c.bf16 %v1125, %v1123
      %v1193 = vpack.c.bf16 %v1129, %v1127
      %v1194 = vpack.c.bf16 %v1133, %v1131
      %v1195 = vld [vmem:[%s277] sm:$0xf]
      %v1196 = vld [vmem:[%s277 + $0x4] sm:$0xf]
      %v1197 = vld [vmem:[%s277 + $0x8] sm:$0xf]
      %v1198 = vld [vmem:[%s277 + $0xc] sm:$0xf]
      %v1199 = vld [vmem:[%s277 + $0x10] sm:$0xf]
      %v1200 = vld [vmem:[%s277 + $0x14] sm:$0xf]
      %v1201 = vld [vmem:[%s277 + $0x18] sm:$0xf]
      %v1202 = vld [vmem:[%s277 + $0x1c] sm:$0xf]
      %v1211 = vunpack.c.l.b16 %v1195
      %v1212 = vunpack.c.l.b16 %v1196
      %v1213 = vunpack.c.l.b16 %v1197
      %v1214 = vunpack.c.l.b16 %v1198
      %v1215 = vunpack.c.l.b16 %v1199
      %v1216 = vunpack.c.l.b16 %v1200
      %v1217 = vunpack.c.l.b16 %v1201
      %v1218 = vunpack.c.l.b16 %v1202
      %v1219 = vpack.c.b16 %v1212, %v1211
      %v1220 = vpack.c.b16 %v1214, %v1213
      %v1221 = vpack.c.b16 %v1216, %v1215
      %v1222 = vpack.c.b16 %v1218, %v1217
      %1223 = vrot.lane.b32.xlu0 %v1219, 96
      %v1224 = vpop.permute.xlu0 %1223
      %1225 = vrot.lane.b32.xlu0 %v1220, 96
      %v1226 = vpop.permute.xlu0 %1225
      %1227 = vrot.lane.b32.xlu0 %v1221, 96
      %v1228 = vpop.permute.xlu0 %1227
      %1229 = vrot.lane.b32.xlu0 %v1222, 96
      %v1230 = vpop.permute.xlu0 %1229
      %v1236 = vsel %vm474, %v1191, 0
      %v1239 = vsel %vm474, %v1192, 0
      %v1242 = vsel %vm474, %v1193, 0
      %v1245 = vsel %vm474, %v1194, 0
      %1247 = vmatprep.subr.bf16.mxu0 0
      %1248 = vmatpush1.bf16.msra.mxu0 0
      %1249 = vmatprep.subr.bf16.mxu0 0
      %1250 = vmatpush1.bf16.msra.mxu0 0
      %1251 = vmatprep.subr.bf16.mxu0 0
      %1252 = vmatpush1.bf16.msra.mxu0 0
      %1253 = vmatprep.subr.bf16.mxu0 0
      %1254 = vmatpush1.bf16.msra.mxu0 0
      %1255 = vmatprep.subr.bf16.mxu0 0
      %1256 = vmatpush1.bf16.msra.mxu0 %v1230
      %1257 = vmatprep.subr.bf16.mxu0 0
      %1258 = vmatpush1.bf16.msra.mxu0 %v1228
      %1259 = vmatprep.subr.bf16.mxu0 0
      %1260 = vmatpush1.bf16.msra.mxu0 %v1226
      %1261 = vmatprep.subr.bf16.mxu0 0
      %1262 = vmatpush1.bf16.msra.mxu0 %v1224
      %1263 = vmatprep.subr.bf16.mxu0 0
      %1264 = vmatpush2.bf16.msra.mxu0 0
      %1265 = vmatprep.subr.bf16.mxu0 0
      %1266 = vmatpush2.bf16.msra.mxu0 0
      %1267 = vmatprep.subr.bf16.mxu0 0
      %1268 = vmatpush2.bf16.msra.mxu0 0
      %1269 = vmatprep.subr.bf16.mxu0 0
      %1270 = vmatpush2.bf16.msra.mxu0 0
      %1271 = vmatprep.subr.bf16.mxu0 0
      %1272 = vmatpush2.bf16.msra.mxu0 0
      %1273 = vmatprep.subr.bf16.mxu0 0
      %1274 = vmatpush2.bf16.msra.mxu0 0
      %1275 = vmatprep.subr.bf16.mxu0 0
      %1276 = vmatpush2.bf16.msra.mxu0 0
      %1277 = vmatprep.subr.bf16.mxu0 0
      %1278 = vmatpush2.bf16.msra.mxu0 0
      %1279 = vmatprep.mubr.bf16.mxu0 0
      %1280 = vmatmul.mubr.bf16.gmra.mxu0 %v1236
      %v1281 = vpop.f32.mrf.mxu0
      %v1282 = vadd.f32 0.0, %v1281
      %v1283 = vpop.f32.mrf.mxu0
      %v1284 = vpop.f32.mrf.mxu0
      %v1285 = vadd.f32 0.0, %v1284
      %v1286 = vpop.f32.mrf.mxu0
      %1287 = vmatprep.mubr.bf16.mxu0 0
      %1288 = vmatmul.mubr.bf16.gmra.mxu0 %v1239
      %v1289 = vpop.f32.mrf.mxu0
      %v1290 = vadd.f32 0.0, %v1289
      %v1291 = vpop.f32.mrf.mxu0
      %v1292 = vpop.f32.mrf.mxu0
      %v1293 = vadd.f32 0.0, %v1292
      %v1294 = vpop.f32.mrf.mxu0
      %1295 = vmatprep.mubr.bf16.mxu0 0
      %1296 = vmatmul.mubr.bf16.gmra.mxu0 %v1242
      %v1297 = vpop.f32.mrf.mxu0
      %v1298 = vadd.f32 0.0, %v1297
      %v1299 = vpop.f32.mrf.mxu0
      %v1300 = vpop.f32.mrf.mxu0
      %v1301 = vadd.f32 0.0, %v1300
      %v1302 = vpop.f32.mrf.mxu0
      %1303 = vmatprep.mubr.bf16.mxu0 0
      %1304 = vmatmul.mubr.bf16.gmra.mxu0 %v1245
      %v1305 = vpop.f32.mrf.mxu0
      %v1306 = vadd.f32 0.0, %v1305
      %v1307 = vpop.f32.mrf.mxu0
      %v1308 = vpop.f32.mrf.mxu0
      %v1309 = vadd.f32 0.0, %v1308
      %v1310 = vpop.f32.mrf.mxu0
      %1311 = vdwg.mxu0
      %v1312 = vld [vmem:[#allocation4] sm:$0xff]
      %v1313 = vld [vmem:[#allocation4 + $0x8] sm:$0xff]
      %v1314 = vld [vmem:[#allocation4 + $0x10] sm:$0xff]
      %v1315 = vld [vmem:[#allocation4 + $0x18] sm:$0xff]
      %v1316 = vld [vmem:[#allocation4 + $0x20] sm:$0xff]
      %v1317 = vld [vmem:[#allocation4 + $0x28] sm:$0xff]
      %v1318 = vld [vmem:[#allocation4 + $0x30] sm:$0xff]
      %v1319 = vld [vmem:[#allocation4 + $0x38] sm:$0xff]
      %1321 = vset.pattern.permute.xlu0 1
      %1322 = vperm.xlu0 %1321, %v1055
      %v1323 = vpop.permute.xlu0 %1322
      %1326 = vset.pattern.permute.xlu0 1
      %1327 = vperm.xlu0 %1326, %v1057
      %v1328 = vpop.permute.xlu0 %1327
      %1331 = vset.pattern.permute.xlu0 1
      %1332 = vperm.xlu0 %1331, %v1059
      %v1333 = vpop.permute.xlu0 %1332
      %1336 = vset.pattern.permute.xlu0 1
      %1337 = vperm.xlu0 %1336, %v1061
      %v1338 = vpop.permute.xlu0 %1337
      %1341 = vset.pattern.permute.xlu0 1
      %1342 = vperm.xlu0 %1341, %v1063
      %v1343 = vpop.permute.xlu0 %1342
      %1346 = vset.pattern.permute.xlu0 1
      %1347 = vperm.xlu0 %1346, %v1065
      %v1348 = vpop.permute.xlu0 %1347
      %1351 = vset.pattern.permute.xlu0 1
      %1352 = vperm.xlu0 %1351, %v1067
      %v1353 = vpop.permute.xlu0 %1352
      %1356 = vset.pattern.permute.xlu0 1
      %1357 = vperm.xlu0 %1356, %v1069
      %v1358 = vpop.permute.xlu0 %1357
      %v1360 = vmul.f32 %v1323, %v1312
      %v1361 = vmul.f32 %v1328, %v1313
      %v1362 = vmul.f32 %v1333, %v1314
      %v1363 = vmul.f32 %v1338, %v1315
      %v1364 = vmul.f32 %v1343, %v1316
      %v1365 = vmul.f32 %v1348, %v1317
      %v1366 = vmul.f32 %v1353, %v1318
      %v1367 = vmul.f32 %v1358, %v1319
      %1376 = vrot.lane.b32.xlu0 %v1282, 32
      %v1377 = vpop.permute.xlu0 %1376
      %1378 = vrot.lane.b32.xlu0 %v1285, 32
      %v1379 = vpop.permute.xlu0 %1378
      %1380 = vrot.lane.b32.xlu0 %v1290, 32
      %v1381 = vpop.permute.xlu0 %1380
      %1382 = vrot.lane.b32.xlu0 %v1293, 32
      %v1383 = vpop.permute.xlu0 %1382
      %1384 = vrot.lane.b32.xlu0 %v1298, 32
      %v1385 = vpop.permute.xlu0 %1384
      %1386 = vrot.lane.b32.xlu0 %v1301, 32
      %v1387 = vpop.permute.xlu0 %1386
      %1388 = vrot.lane.b32.xlu0 %v1306, 32
      %v1389 = vpop.permute.xlu0 %1388
      %1390 = vrot.lane.b32.xlu0 %v1309, 32
      %v1391 = vpop.permute.xlu0 %1390
      %v1400 = vadd.f32 %v1360, %v1377
      %v1401 = vadd.f32 %v1361, %v1379
      %v1402 = vadd.f32 %v1362, %v1381
      %v1403 = vadd.f32 %v1363, %v1383
      %v1404 = vadd.f32 %v1364, %v1385
      %v1405 = vadd.f32 %v1365, %v1387
      %v1406 = vadd.f32 %v1366, %v1389
      %v1407 = vadd.f32 %v1367, %v1391
      %vm1408 = vcmask 523520
      %1409 = vst.msk [vmem:[#allocation4] sm:$0xff] %vm1408, %v1400
      %1410 = vst.msk [vmem:[#allocation4 + $0x8] sm:$0xff] %vm1408, %v1401
      %1411 = vst.msk [vmem:[#allocation4 + $0x10] sm:$0xff] %vm1408, %v1402
      %1412 = vst.msk [vmem:[#allocation4 + $0x18] sm:$0xff] %vm1408, %v1403
      %1413 = vst.msk [vmem:[#allocation4 + $0x20] sm:$0xff] %vm1408, %v1404
      %1414 = vst.msk [vmem:[#allocation4 + $0x28] sm:$0xff] %vm1408, %v1405
      %1415 = vst.msk [vmem:[#allocation4 + $0x30] sm:$0xff] %vm1408, %v1406
      %1416 = vst.msk [vmem:[#allocation4 + $0x38] sm:$0xff] %vm1408, %v1407
      %1417 = vst.msk [vmem:[#allocation2] sm:$0xff] %vm1182, %v1038
      %1418 = vst.msk [vmem:[#allocation2 + $0x8] sm:$0xff] %vm1182, %v1039
      %1419 = vst.msk [vmem:[#allocation2 + $0x10] sm:$0xff] %vm1182, %v1040
      %1420 = vst.msk [vmem:[#allocation2 + $0x18] sm:$0xff] %vm1182, %v1041
      %1421 = vst.msk [vmem:[#allocation2 + $0x20] sm:$0xff] %vm1182, %v1042
      %1422 = vst.msk [vmem:[#allocation2 + $0x28] sm:$0xff] %vm1182, %v1043
      %1423 = vst.msk [vmem:[#allocation2 + $0x30] sm:$0xff] %vm1182, %v1044
      %1424 = vst.msk [vmem:[#allocation2 + $0x38] sm:$0xff] %vm1182, %v1045
      // Predicated region
      $region37: #{attention_forward.4} parent=31 // pred_check
        %p1425 = pneg %p290
      $region38: #{attention_forward.4} parent=31 // pred_check_branch
        %1427 = sbr.rel (%p1425) target = $region40
      $region39: #{attention_forward.4} parent=31 // pred_region
        %v1428 = vld [vmem:[#allocation3] sm:$0xff]
        %v1429 = vld [vmem:[#allocation3 + $0x8] sm:$0xff]
        %v1430 = vld [vmem:[#allocation3 + $0x10] sm:$0xff]
        %v1431 = vld [vmem:[#allocation3 + $0x18] sm:$0xff]
        %v1432 = vld [vmem:[#allocation3 + $0x20] sm:$0xff]
        %v1433 = vld [vmem:[#allocation3 + $0x28] sm:$0xff]
        %v1434 = vld [vmem:[#allocation3 + $0x30] sm:$0xff]
        %v1435 = vld [vmem:[#allocation3 + $0x38] sm:$0xff]
        %v1436 = vrcp.pop %v1428
        %v1437 = vrcp.pop %v1429
        %v1438 = vrcp.pop %v1430
        %v1439 = vrcp.pop %v1431
        %v1440 = vrcp.pop %v1432
        %v1441 = vrcp.pop %v1433
        %v1442 = vrcp.pop %v1434
        %v1443 = vrcp.pop %v1435
        %v1444 = vld [vmem:[#allocation4] sm:$0xff]
        %v1445 = vld [vmem:[#allocation4 + $0x8] sm:$0xff]
        %v1446 = vld [vmem:[#allocation4 + $0x10] sm:$0xff]
        %v1447 = vld [vmem:[#allocation4 + $0x18] sm:$0xff]
        %v1448 = vld [vmem:[#allocation4 + $0x20] sm:$0xff]
        %v1449 = vld [vmem:[#allocation4 + $0x28] sm:$0xff]
        %v1450 = vld [vmem:[#allocation4 + $0x30] sm:$0xff]
        %v1451 = vld [vmem:[#allocation4 + $0x38] sm:$0xff]
        %1453 = vset.pattern.permute.xlu0 0
        %1454 = vperm.xlu0 %1453, %v1436
        %v1455 = vpop.permute.xlu0 %1454
        %1458 = vset.pattern.permute.xlu0 0
        %1459 = vperm.xlu0 %1458, %v1437
        %v1460 = vpop.permute.xlu0 %1459
        %1463 = vset.pattern.permute.xlu0 0
        %1464 = vperm.xlu0 %1463, %v1438
        %v1465 = vpop.permute.xlu0 %1464
        %1468 = vset.pattern.permute.xlu0 0
        %1469 = vperm.xlu0 %1468, %v1439
        %v1470 = vpop.permute.xlu0 %1469
        %1473 = vset.pattern.permute.xlu0 0
        %1474 = vperm.xlu0 %1473, %v1440
        %v1475 = vpop.permute.xlu0 %1474
        %1478 = vset.pattern.permute.xlu0 0
        %1479 = vperm.xlu0 %1478, %v1441
        %v1480 = vpop.permute.xlu0 %1479
        %1483 = vset.pattern.permute.xlu0 0
        %1484 = vperm.xlu0 %1483, %v1442
        %v1485 = vpop.permute.xlu0 %1484
        %1488 = vset.pattern.permute.xlu0 0
        %1489 = vperm.xlu0 %1488, %v1443
        %v1490 = vpop.permute.xlu0 %1489
        %v1492 = vmul.f32 %v1444, %v1455
        %v1493 = vmul.f32 %v1445, %v1460
        %v1494 = vmul.f32 %v1446, %v1465
        %v1495 = vmul.f32 %v1447, %v1470
        %v1496 = vmul.f32 %v1448, %v1475
        %v1497 = vmul.f32 %v1449, %v1480
        %v1498 = vmul.f32 %v1450, %v1485
        %v1499 = vmul.f32 %v1451, %v1490
        %v1500 = vpack.c.bf16 %v1493, %v1492
        %v1501 = vpack.c.bf16 %v1495, %v1494
        %v1502 = vpack.c.bf16 %v1497, %v1496
        %v1503 = vpack.c.bf16 %v1499, %v1498
        %v1508 = vunpack.c.l.b16 %v1500
        %v1509 = vunpack.c.h.b16 %v1500
        %v1510 = vunpack.c.l.b16 %v1501
        %v1511 = vunpack.c.h.b16 %v1501
        %v1512 = vunpack.c.l.b16 %v1502
        %v1513 = vunpack.c.h.b16 %v1502
        %v1514 = vunpack.c.l.b16 %v1503
        %v1515 = vunpack.c.h.b16 %v1503
        %v1516 = vpack.c.b16 %v1508, %v1508
        %v1517 = vpack.c.b16 %v1509, %v1509
        %v1518 = vpack.c.b16 %v1510, %v1510
        %v1519 = vpack.c.b16 %v1511, %v1511
        %v1520 = vpack.c.b16 %v1512, %v1512
        %v1521 = vpack.c.b16 %v1513, %v1513
        %v1522 = vpack.c.b16 %v1514, %v1514
        %v1523 = vpack.c.b16 %v1515, %v1515
        %vm1532 = vcmask 257024
        %1533 = vst.msk [vmem:[%s287] sm:$0xf] %vm1532, %v1516
        %1534 = vst.msk [vmem:[%s287 + $0x4] sm:$0xf] %vm1532, %v1517
        %1535 = vst.msk [vmem:[%s287 + $0x8] sm:$0xf] %vm1532, %v1518
        %1536 = vst.msk [vmem:[%s287 + $0xc] sm:$0xf] %vm1532, %v1519
        %1537 = vst.msk [vmem:[%s287 + $0x10] sm:$0xf] %vm1532, %v1520
        %1538 = vst.msk [vmem:[%s287 + $0x14] sm:$0xf] %vm1532, %v1521
        %1539 = vst.msk [vmem:[%s287 + $0x18] sm:$0xf] %vm1532, %v1522
        %1540 = vst.msk [vmem:[%s287 + $0x1c] sm:$0xf] %vm1532, %v1523
        %v1541 = vld [vmem:[#allocation3] sm:$0xff]
        %v1542 = vld [vmem:[#allocation3 + $0x8] sm:$0xff]
        %v1543 = vld [vmem:[#allocation3 + $0x10] sm:$0xff]
        %v1544 = vld [vmem:[#allocation3 + $0x18] sm:$0xff]
        %v1545 = vld [vmem:[#allocation3 + $0x20] sm:$0xff]
        %v1546 = vld [vmem:[#allocation3 + $0x28] sm:$0xff]
        %v1547 = vld [vmem:[#allocation3 + $0x30] sm:$0xff]
        %v1548 = vld [vmem:[#allocation3 + $0x38] sm:$0xff]
        %v1549 = vrcp.pop %v1541
        %v1550 = vrcp.pop %v1542
        %v1551 = vrcp.pop %v1543
        %v1552 = vrcp.pop %v1544
        %v1553 = vrcp.pop %v1545
        %v1554 = vrcp.pop %v1546
        %v1555 = vrcp.pop %v1547
        %v1556 = vrcp.pop %v1548
        %v1557 = vld [vmem:[#allocation4] sm:$0xff]
        %v1558 = vld [vmem:[#allocation4 + $0x8] sm:$0xff]
        %v1559 = vld [vmem:[#allocation4 + $0x10] sm:$0xff]
        %v1560 = vld [vmem:[#allocation4 + $0x18] sm:$0xff]
        %v1561 = vld [vmem:[#allocation4 + $0x20] sm:$0xff]
        %v1562 = vld [vmem:[#allocation4 + $0x28] sm:$0xff]
        %v1563 = vld [vmem:[#allocation4 + $0x30] sm:$0xff]
        %v1564 = vld [vmem:[#allocation4 + $0x38] sm:$0xff]
        %1566 = vset.pattern.permute.xlu0 1
        %1567 = vperm.xlu0 %1566, %v1549
        %v1568 = vpop.permute.xlu0 %1567
        %1571 = vset.pattern.permute.xlu0 1
        %1572 = vperm.xlu0 %1571, %v1550
        %v1573 = vpop.permute.xlu0 %1572
        %1576 = vset.pattern.permute.xlu0 1
        %1577 = vperm.xlu0 %1576, %v1551
        %v1578 = vpop.permute.xlu0 %1577
        %1581 = vset.pattern.permute.xlu0 1
        %1582 = vperm.xlu0 %1581, %v1552
        %v1583 = vpop.permute.xlu0 %1582
        %1586 = vset.pattern.permute.xlu0 1
        %1587 = vperm.xlu0 %1586, %v1553
        %v1588 = vpop.permute.xlu0 %1587
        %1591 = vset.pattern.permute.xlu0 1
        %1592 = vperm.xlu0 %1591, %v1554
        %v1593 = vpop.permute.xlu0 %1592
        %1596 = vset.pattern.permute.xlu0 1
        %1597 = vperm.xlu0 %1596, %v1555
        %v1598 = vpop.permute.xlu0 %1597
        %1601 = vset.pattern.permute.xlu0 1
        %1602 = vperm.xlu0 %1601, %v1556
        %v1603 = vpop.permute.xlu0 %1602
        %v1605 = vmul.f32 %v1557, %v1568
        %v1606 = vmul.f32 %v1558, %v1573
        %v1607 = vmul.f32 %v1559, %v1578
        %v1608 = vmul.f32 %v1560, %v1583
        %v1609 = vmul.f32 %v1561, %v1588
        %v1610 = vmul.f32 %v1562, %v1593
        %v1611 = vmul.f32 %v1563, %v1598
        %v1612 = vmul.f32 %v1564, %v1603
        %v1613 = vpack.c.bf16 %v1606, %v1605
        %v1614 = vpack.c.bf16 %v1608, %v1607
        %v1615 = vpack.c.bf16 %v1610, %v1609
        %v1616 = vpack.c.bf16 %v1612, %v1611
        %v1621 = vunpack.c.l.b16 %v1613
        %v1622 = vunpack.c.h.b16 %v1613
        %v1623 = vunpack.c.l.b16 %v1614
        %v1624 = vunpack.c.h.b16 %v1614
        %v1625 = vunpack.c.l.b16 %v1615
        %v1626 = vunpack.c.h.b16 %v1615
        %v1627 = vunpack.c.l.b16 %v1616
        %v1628 = vunpack.c.h.b16 %v1616
        %v1629 = vpack.c.b16 %v1621, %v1621
        %v1630 = vpack.c.b16 %v1622, %v1622
        %v1631 = vpack.c.b16 %v1623, %v1623
        %v1632 = vpack.c.b16 %v1624, %v1624
        %v1633 = vpack.c.b16 %v1625, %v1625
        %v1634 = vpack.c.b16 %v1626, %v1626
        %v1635 = vpack.c.b16 %v1627, %v1627
        %v1636 = vpack.c.b16 %v1628, %v1628
        %vm1645 = vcmask 519424
        %1646 = vst.msk [vmem:[%s287] sm:$0xf] %vm1645, %v1629
        %1647 = vst.msk [vmem:[%s287 + $0x4] sm:$0xf] %vm1645, %v1630
        %1648 = vst.msk [vmem:[%s287 + $0x8] sm:$0xf] %vm1645, %v1631
        %1649 = vst.msk [vmem:[%s287 + $0xc] sm:$0xf] %vm1645, %v1632
        %1650 = vst.msk [vmem:[%s287 + $0x10] sm:$0xf] %vm1645, %v1633
        %1651 = vst.msk [vmem:[%s287 + $0x14] sm:$0xf] %vm1645, %v1634
        %1652 = vst.msk [vmem:[%s287 + $0x18] sm:$0xf] %vm1645, %v1635
        %1653 = vst.msk [vmem:[%s287 + $0x1c] sm:$0xf] %vm1645, %v1636
      $region40: #{attention_forward.4} parent=31 // pred_fallthru
        _
      %s1654 = smul.u32 8, %s20
      %p1655 = scmp.lt.s32.totalorder %s19, 1
      %s1656 = scalar_select %p1655, %s19, 1
      %p1657 = scmp.lt.s32.totalorder %s1654, 7
      %s1658 = scalar_select %p1657, %s1654, 7
      %s1659 = smul.addr %s1656, 8
      %s1660 = sadd.s32 %s1658, %s1659
      %s1661 = smul.addr %s1660, 4
      %s1662 = scalar_lea.vmem %s3, %s1661
      // Predicated region
      $region41: #{attention_forward.4} parent=31 // pred_check
        %p1663 = pneg %p137
      $region42: #{attention_forward.4} parent=31 // pred_check_branch
        %1665 = sbr.rel (%p1663) target = $region44
      $region43: #{attention_forward.4} parent=31 // pred_region
        %s1666 = smul.u32 8, %s20
      $region44: #{attention_forward.4} parent=31 // pred_fallthru
        _
    $region32: #{attention_forward.4} parent=5 // pred_fallthru
      _
    %p1667 = scmp.le.s32.totalorder 2, %s9
    // Predicated region
    $region45: #{attention_forward.4} parent=5 // pred_check
      %p1668 = pneg %p1667
    $region46: #{attention_forward.4} parent=5 // pred_check_branch
      %1670 = sbr.rel (%p1668) target = $region48
    $region47: #{attention_forward.4} parent=5 // pred_region
      %s1671 = ssub.s32 %s9, 2
      // Predicated region
      $region49: #{attention_forward.4} parent=47 // pred_check
        %p1672 = pneg %p143
      $region50: #{attention_forward.4} parent=47 // pred_check_branch
        %1674 = sbr.rel (%p1672) target = $region52
      $region51: #{attention_forward.4} parent=47 // pred_region
        %s1675 = smul.u32 8, %s23
        %p1676 = scmp.lt.s32.totalorder %s22, 1
        %s1677 = scalar_select %p1676, %s22, 1
        %p1678 = scmp.lt.s32.totalorder %s1675, 7
        %s1679 = scalar_select %p1678, %s1675, 7
        %s1680 = smul.addr %s1677, 8
        %s1681 = sadd.s32 %s1679, %s1680
        %s1682 = smul.addr %s1681, 4
        %s1683 = scalar_lea.vmem %s3, %s1682
      $region52: #{attention_forward.4} parent=47 // pred_fallthru
        _
    $region48: #{attention_forward.4} parent=5 // pred_fallthru
      _
  $region6: #{attention_forward.4} parent=0 // loop_footer
    %s13 = sadd.s32 1, %s9
  $region7: #{attention_forward.4} parent=0 // loop_footer_branch
    %8 = sbr.rel target = $region3
  $region8: #{attention_forward.4} parent=0 // loop_exit
    _

</llo_original>
